<compile_context>
chip_gen: v6e
topology: v6e:2x2x1
jax: 0.10.0
libtpu: 0.0.40
codegen_flags: <defaults>
</compile_context>

<pallas_src>
import functools

import jax
import jax.numpy as jnp
from jax.experimental import pallas as pl
from jax.experimental.pallas import tpu as pltpu

EPS = 1e-5
BN_GAMMA = 1.0
BN_BETA = 0.001
LANE = 128
SUBLANE_BF16 = 16  # bf16 sublane tile depth


def _bn_scale_bias(x):
    """BatchNorm1d (training-mode batch stats) folded to per-channel (a, b).

    bn(x) = x * a + b  with  a = gamma*rsqrt(var+eps), b = beta - mean*a.
    Single-pass sum / sum-of-squares reduction in f32 (variance clamped >= 0).
    """
    n, l, c = x.shape
    xf = x.reshape(n * l, c)
    s = jnp.sum(xf, axis=0, keepdims=True)
    ss = jnp.sum(xf * xf, axis=0, keepdims=True)
    inv_cnt = 1.0 / float(n * l)
    mean = s * inv_cnt
    var = jnp.maximum(ss * inv_cnt - mean * mean, 0.0)      # guard cancellation
    a = BN_GAMMA * jax.lax.rsqrt(var + EPS)
    b = BN_BETA - mean * a
    return a.reshape(1, 1, c), b.reshape(1, 1, c)


def _place(x, pad_ref, halo, l):
    """Cast activation to bf16 ONCE and store it tile-aligned into the halo buf."""
    pad_ref[:, halo:halo + l, :] = x.astype(jnp.bfloat16)


def _conv_from_pad(pad_ref, w_flat, K, halo, n, l, cp):
    """'Same' 1-D conv (padding=K//2, no bias) as one im2col MXU matmul.

    Reads the activation previously written by _place; halo rows are zero.
    pad_ref: (N, l + 2*halo, Cp) bf16 scratch
    w_flat:  (K*Cp, Cp) bf16 weight, tap-major rows (row t*Cp+ci == w[t, ci, :])
    """
    p = K // 2
    taps = [pad_ref[:, halo - p + t: halo - p + t + l, :] for t in range(K)]
    # Lane-axis (last-dim) concat of the K bf16 taps -> single fused matmul.
    xcat = taps[0] if K == 1 else jnp.concatenate(taps, axis=-1)
    y = jnp.dot(
        xcat.reshape(n * l, K * cp),
        w_flat,
        preferred_element_type=jnp.float32,
    )
    return y.reshape(n, l, cp)


def make_resconvnet_kernel(block_cfg, halo):
    """block_cfg: tuple of (kernel_sizes, has_downsample) per ResBlock.

    Kernel refs: (x, w_block0..., ..., w_blockB-1..., out, pad_scratch)."""

    def kernel(*refs):
        x_ref, *w_refs, o_ref, pad_ref = refs
        n, l, cp = x_ref.shape

        # Zero the two halo bands ONCE; they are never overwritten afterwards
        # (every conv only rewrites the [halo, halo+l) rows).
        zero_band = jnp.zeros((n, halo, cp), jnp.bfloat16)
        pad_ref[:, :halo, :] = zero_band
        pad_ref[:, halo + l:, :] = zero_band

        x = x_ref[...]                                       # (N, L, Cp) f32
        wi = 0
        for kernel_sizes, has_ds in block_cfg:
            k1, k2, k3 = kernel_sizes
            w1 = w_refs[wi][...]
            w2 = w_refs[wi + 1][...]
            w3 = w_refs[wi + 2][...]
            wi += 3

            # ConvBlock1 (conv->bn->relu).  The bf16 copy of x placed here is
            # also reused by the 1x1 downsample shortcut (no extra cast).
            _place(x, pad_ref, halo, l)
            y1 = _conv_from_pad(pad_ref, w1, k1, halo, n, l, cp)
            if has_ds:
                wds = w_refs[wi][...]
                wi += 1
                res = _conv_from_pad(pad_ref, wds, 1, halo, n, l, cp)
            else:
                res = x                                      # identity shortcut (f32)
            a1, b1 = _bn_scale_bias(y1)
            h = jnp.maximum(y1 * a1 + b1, 0.0)

            # ConvBlock2 (conv->bn->relu).
            _place(h, pad_ref, halo, l)
            y2 = _conv_from_pad(pad_ref, w2, k2, halo, n, l, cp)
            a2, b2 = _bn_scale_bias(y2)
            h = jnp.maximum(y2 * a2 + b2, 0.0)

            # ConvBlock3 (conv->bn, no relu) + shortcut BN + residual add + ReLU,
            # all fused into one elementwise pass.  The spec's ResBlock applies
            # its own BatchNorm to the shortcut in BOTH the identity and the
            # downsample case.
            _place(h, pad_ref, halo, l)
            y3 = _conv_from_pad(pad_ref, w3, k3, halo, n, l, cp)
            a3, b3 = _bn_scale_bias(y3)
            ar, br = _bn_scale_bias(res)
            x = jnp.maximum(y3 * a3 + res * ar + (b3 + br), 0.0)

        o_ref[...] = x

    return kernel


def _prep_conv_weight(w, cp):
    """(K, Cin, Cout) f32 -> (K*cp, cp) bf16, zero-padded, tap-major rows."""
    k, ci, co = w.shape
    wp = jnp.zeros((k, cp, cp), jnp.float32).at[:, :ci, :co].set(w)
    return wp.reshape(k * cp, cp).astype(jnp.bfloat16)


def _prep_ds_weight(w, cp):
    """(Cin, Cout) f32 -> (cp, cp) bf16, zero-padded."""
    ci, co = w.shape
    return jnp.zeros((cp, cp), jnp.float32).at[:ci, :co].set(w).astype(jnp.bfloat16)


@functools.partial(jax.jit, static_argnames=("kernel_sizes",))
def resconvnet_forward(x_ncl, params, kernel_sizes):
    # Odd kernels keep the sequence length constant ('same' padding), which the
    # residual add requires (same constraint as the PyTorch module).
    assert all(k % 2 == 1 for k in kernel_sizes), kernel_sizes

    N, c_in, L = x_ncl.shape
    c_outs = [w1.shape[2] for (w1, _, _, _) in params]
    c_max = max([c_in] + c_outs)
    cp = max(LANE, -(-c_max // LANE) * LANE)        # lane-dense channel width
    max_pad = max(k // 2 for k in kernel_sizes)
    # Halo rounded up to a full bf16 sublane tile so the main activation store
    # into the scratch is tile-aligned.
    halo = max(SUBLANE_BF16, -(-max_pad // SUBLANE_BF16) * SUBLANE_BF16)

    # Layout boundary: PyTorch NCL -> lane-dense NLC (channels padded to cp).
    x = jnp.transpose(x_ncl, (0, 2, 1)).astype(jnp.float32)
    x = jnp.pad(x, ((0, 0), (0, 0), (0, cp - c_in)))

    block_cfg = []
    flat_w = []
    for (w1, w2, w3, wds) in params:
        has_ds = wds is not None
        block_cfg.append((tuple(kernel_sizes), has_ds))
        flat_w += [_prep_conv_weight(w1, cp),
                   _prep_conv_weight(w2, cp),
                   _prep_conv_weight(w3, cp)]
        if has_ds:
            flat_w.append(_prep_ds_weight(wds, cp))

    # Explicit VMEM budget: resident f32 activations/temps + bf16 halo buf +
    # weights, with headroom; clamped to a range that is legal on v5e/v6e/v7x.
    act_bytes = N * L * cp * 4
    pad_bytes = N * (L + 2 * halo) * cp * 2
    w_bytes = sum(int(w.size) * 2 for w in flat_w)
    vmem_limit = int(act_bytes * 12 + pad_bytes * 2 + w_bytes * 2)
    vmem_limit = min(max(vmem_limit, 32 * 1024 * 1024), 64 * 1024 * 1024)

    kernel = make_resconvnet_kernel(tuple(block_cfg), halo)
    vmem = pl.BlockSpec(memory_space=pltpu.MemorySpace.VMEM)
    out = pl.pallas_call(
        kernel,
        out_shape=jax.ShapeDtypeStruct((N, L, cp), jnp.float32),
        in_specs=[vmem] * (1 + len(flat_w)),
        out_specs=vmem,
        scratch_shapes=[
            # Shared bf16 conv halo buffer (zero halo bands, tile-aligned body).
            pltpu.VMEM((N, L + 2 * halo, cp), jnp.bfloat16),
        ],
        compiler_params=pltpu.CompilerParams(vmem_limit_bytes=vmem_limit),
    )(x, *flat_w)

    # Drop the channel padding and go back to PyTorch NCL layout.
    return jnp.transpose(out[:, :, :c_outs[-1]], (0, 2, 1))


def init_resblock_params(key, c_in, c_out, kernel_sizes):
    """Deterministic synthetic weights matching the PyTorch shapes / init scheme.

    Conv weights are stored as (K, C_in, C_out) (PyTorch is (C_out, C_in, K))."""
    k1, k2, k3 = kernel_sizes
    k_a, k_b, k_c, k_d = jax.random.split(key, 4)

    def kaiming_normal(k, K, ci, co):
        std = (2.0 / (ci * K)) ** 0.5
        return jax.random.normal(k, (K, ci, co), jnp.float32) * std

    w1 = kaiming_normal(k_a, k1, c_in, c_out)       # ConvBlock1 (relu=True)
    w2 = kaiming_normal(k_b, k2, c_out, c_out)      # ConvBlock2 (relu=True)
    # ConvBlock3: relu=False -> keeps default Conv1d init (uniform +-1/sqrt(fan_in))
    b3 = 1.0 / (c_out * k3) ** 0.5
    w3 = jax.random.uniform(k_c, (k3, c_out, c_out), jnp.float32, -b3, b3)
    wds = None
    if c_in != c_out:                               # downsample 1x1 conv, default init
        bd = 1.0 / (c_in ** 0.5)
        wds = jax.random.uniform(k_d, (c_in, c_out), jnp.float32, -bd, bd)
    return (w1, w2, w3, wds)


def init_resconvnet_params(key, num_inputs, num_channels, kernel_sizes):
    params = []
    for i, c_out in enumerate(num_channels):
        key, sub = jax.random.split(key)
        c_in = num_inputs if i == 0 else num_channels[i - 1]
        params.append(init_resblock_params(sub, c_in, c_out, kernel_sizes))
    return params


if __name__ == "__main__":
    key = jax.random.PRNGKey(0)
    k_x, k_p = jax.random.split(key)

    # ResConvNet(num_inputs=4, num_channels=[8, 8, 16], kernel_sizes=(3, 3, 3))
    # (exercises both the identity and the 1x1-downsample shortcut paths)
    num_inputs = 4
    num_channels = (8, 8, 16)
    kernel_sizes = (3, 3, 3)
    N, L = 2, 16

    x = jax.random.normal(k_x, (N, num_inputs, L), jnp.float32)   # PyTorch NCL
    params = init_resconvnet_params(k_p, num_inputs, num_channels, kernel_sizes)

    out = resconvnet_forward(x, params, kernel_sizes)
    out = jax.block_until_ready(out)
    assert out.shape == (N, num_channels[-1], L), out.shape
    assert bool(jnp.all(jnp.isfinite(out))) and bool(jnp.all(out >= 0.0))
    print("KERNEL_OK")
</pallas_src>

<mosaic_0001>
module attributes {stable_mosaic.version = 11 : i64} {
  func.func @kernel(%arg0: memref<2x16x128xf32, #tpu.memory_space<vmem>>, %arg1: memref<384x128xbf16, #tpu.memory_space<vmem>>, %arg2: memref<384x128xbf16, #tpu.memory_space<vmem>>, %arg3: memref<384x128xbf16, #tpu.memory_space<vmem>>, %arg4: memref<128x128xbf16, #tpu.memory_space<vmem>>, %arg5: memref<384x128xbf16, #tpu.memory_space<vmem>>, %arg6: memref<384x128xbf16, #tpu.memory_space<vmem>>, %arg7: memref<384x128xbf16, #tpu.memory_space<vmem>>, %arg8: memref<384x128xbf16, #tpu.memory_space<vmem>>, %arg9: memref<384x128xbf16, #tpu.memory_space<vmem>>, %arg10: memref<384x128xbf16, #tpu.memory_space<vmem>>, %arg11: memref<128x128xbf16, #tpu.memory_space<vmem>>, %arg12: memref<2x16x128xf32, #tpu.memory_space<vmem>>, %arg13: memref<2x48x128xbf16, #tpu.memory_space<vmem>>) attributes {dimension_semantics = [], scalar_prefetch = 0 : i64, scratch_operands = 1 : i64, tpu.core_type = #tpu.core_type<tc>} {
    %cst = arith.constant 0.000000e+00 : bf16
    %0 = vector.broadcast %cst : bf16 to vector<2x16x128xbf16>
    %c0 = arith.constant 0 : index
    %c0_0 = arith.constant 0 : index
    %c0_1 = arith.constant 0 : index
    %1 = vector.load %arg13[%c0, %c0_0, %c0_1] : memref<2x48x128xbf16, #tpu.memory_space<vmem>>, vector<2x16x128xbf16>
    tpu.vector_store %arg13[%c0, %c0_0, %c0_1], %0 {strides = array<i32>} : memref<2x48x128xbf16, #tpu.memory_space<vmem>>, vector<2x16x128xbf16>,
    %c0_2 = arith.constant 0 : index
    %c32 = arith.constant 32 : index
    %c0_3 = arith.constant 0 : index
    %2 = vector.load %arg13[%c0_2, %c32, %c0_3] : memref<2x48x128xbf16, #tpu.memory_space<vmem>>, vector<2x16x128xbf16>
    tpu.vector_store %arg13[%c0_2, %c32, %c0_3], %0 {strides = array<i32>} : memref<2x48x128xbf16, #tpu.memory_space<vmem>>, vector<2x16x128xbf16>,
    %c0_4 = arith.constant 0 : index
    %c0_5 = arith.constant 0 : index
    %c0_6 = arith.constant 0 : index
    %3 = vector.load %arg0[%c0_4, %c0_5, %c0_6] : memref<2x16x128xf32, #tpu.memory_space<vmem>>, vector<2x16x128xf32>
    %c0_7 = arith.constant 0 : index
    %c0_8 = arith.constant 0 : index
    %4 = vector.load %arg1[%c0_7, %c0_8] : memref<384x128xbf16, #tpu.memory_space<vmem>>, vector<384x128xbf16>
    %c0_9 = arith.constant 0 : index
    %c0_10 = arith.constant 0 : index
    %5 = vector.load %arg2[%c0_9, %c0_10] : memref<384x128xbf16, #tpu.memory_space<vmem>>, vector<384x128xbf16>
    %c0_11 = arith.constant 0 : index
    %c0_12 = arith.constant 0 : index
    %6 = vector.load %arg3[%c0_11, %c0_12] : memref<384x128xbf16, #tpu.memory_space<vmem>>, vector<384x128xbf16>
    %7 = arith.truncf %3 : vector<2x16x128xf32> to vector<2x16x128xbf16>
    %c0_13 = arith.constant 0 : index
    %c16 = arith.constant 16 : index
    %c0_14 = arith.constant 0 : index
    %8 = vector.load %arg13[%c0_13, %c16, %c0_14] : memref<2x48x128xbf16, #tpu.memory_space<vmem>>, vector<2x16x128xbf16>
    tpu.vector_store %arg13[%c0_13, %c16, %c0_14], %7 {strides = array<i32>} : memref<2x48x128xbf16, #tpu.memory_space<vmem>>, vector<2x16x128xbf16>,
    %c0_15 = arith.constant 0 : index
    %c15 = arith.constant 15 : index
    %c0_16 = arith.constant 0 : index
    %9 = vector.load %arg13[%c0_15, %c15, %c0_16] : memref<2x48x128xbf16, #tpu.memory_space<vmem>>, vector<2x16x128xbf16>
    %c0_17 = arith.constant 0 : index
    %c16_18 = arith.constant 16 : index
    %c0_19 = arith.constant 0 : index
    %10 = vector.load %arg13[%c0_17, %c16_18, %c0_19] : memref<2x48x128xbf16, #tpu.memory_space<vmem>>, vector<2x16x128xbf16>
    %c0_20 = arith.constant 0 : index
    %c17 = arith.constant 17 : index
    %c0_21 = arith.constant 0 : index
    %11 = vector.load %arg13[%c0_20, %c17, %c0_21] : memref<2x48x128xbf16, #tpu.memory_space<vmem>>, vector<2x16x128xbf16>
    %12 = tpu.concatenate %9, %10, %11 in 2 : vector<2x16x128xbf16>, vector<2x16x128xbf16>, vector<2x16x128xbf16> -> vector<2x16x384xbf16>
    %13 = vector.shape_cast %12 : vector<2x16x384xbf16> to vector<32x384xbf16>
    %cst_22 = arith.constant dense<0.000000e+00> : vector<32x128xf32>
    %14 = tpu.matmul %13, %4, %cst_22 {dimension_numbers = #tpu.dot_dimension_numbers<[1], [0], [0], [1], [0, 0, 1, 1], [], []>} : vector<32x384xbf16>, vector<384x128xbf16>, vector<32x128xf32> -> vector<32x128xf32>
    %15 = vector.shape_cast %14 : vector<32x128xf32> to vector<2x16x128xf32>
    %c0_23 = arith.constant 0 : index
    %c0_24 = arith.constant 0 : index
    %16 = vector.load %arg4[%c0_23, %c0_24] : memref<128x128xbf16, #tpu.memory_space<vmem>>, vector<128x128xbf16>
    %c0_25 = arith.constant 0 : index
    %c16_26 = arith.constant 16 : index
    %c0_27 = arith.constant 0 : index
    %17 = vector.load %arg13[%c0_25, %c16_26, %c0_27] : memref<2x48x128xbf16, #tpu.memory_space<vmem>>, vector<2x16x128xbf16>
    %18 = vector.shape_cast %17 : vector<2x16x128xbf16> to vector<32x128xbf16>
    %cst_28 = arith.constant dense<0.000000e+00> : vector<32x128xf32>
    %19 = tpu.matmul %18, %16, %cst_28 {dimension_numbers = #tpu.dot_dimension_numbers<[1], [0], [0], [1], [0, 0, 1, 1], [], []>} : vector<32x128xbf16>, vector<128x128xbf16>, vector<32x128xf32> -> vector<32x128xf32>
    %20 = vector.shape_cast %19 : vector<32x128xf32> to vector<2x16x128xf32>
    %21 = vector.shape_cast %15 : vector<2x16x128xf32> to vector<32x128xf32>
    %cst_29 = arith.constant dense<0.000000e+00> : vector<128xf32>
    %22 = vector.multi_reduction <add>, %21, %cst_29 [0] : vector<32x128xf32> to vector<128xf32>
    %23 = vector.shape_cast %22 : vector<128xf32> to vector<1x128xf32>
    %24 = arith.mulf %21, %21 : vector<32x128xf32>
    %cst_30 = arith.constant dense<0.000000e+00> : vector<128xf32>
    %25 = vector.multi_reduction <add>, %24, %cst_30 [0] : vector<32x128xf32> to vector<128xf32>
    %26 = vector.shape_cast %25 : vector<128xf32> to vector<1x128xf32>
    %cst_31 = arith.constant 3.125000e-02 : f32
    %27 = vector.broadcast %cst_31 : f32 to vector<1x128xf32>
    %28 = arith.mulf %23, %27 : vector<1x128xf32>
    %cst_32 = arith.constant 3.125000e-02 : f32
    %29 = vector.broadcast %cst_32 : f32 to vector<1x128xf32>
    %30 = arith.mulf %26, %29 : vector<1x128xf32>
    %31 = arith.mulf %28, %28 : vector<1x128xf32>
    %32 = arith.subf %30, %31 : vector<1x128xf32>
    %cst_33 = arith.constant 0.000000e+00 : f32
    %33 = vector.broadcast %cst_33 : f32 to vector<1x128xf32>
    %34 = arith.maximumf %32, %33 : vector<1x128xf32>
    %cst_34 = arith.constant 9.99999974E-6 : f32
    %35 = vector.broadcast %cst_34 : f32 to vector<1x128xf32>
    %36 = arith.addf %34, %35 : vector<1x128xf32>
    %37 = math.rsqrt %36 : vector<1x128xf32>
    %cst_35 = arith.constant 1.000000e+00 : f32
    %38 = vector.broadcast %cst_35 : f32 to vector<1x128xf32>
    %39 = arith.mulf %38, %37 : vector<1x128xf32>
    %40 = arith.mulf %28, %39 : vector<1x128xf32>
    %cst_36 = arith.constant 1.000000e-03 : f32
    %41 = vector.broadcast %cst_36 : f32 to vector<1x128xf32>
    %42 = arith.subf %41, %40 : vector<1x128xf32>
    %43 = vector.shape_cast %39 : vector<1x128xf32> to vector<1x1x128xf32>
    %44 = vector.shape_cast %42 : vector<1x128xf32> to vector<1x1x128xf32>
    %45 = vector.broadcast %43 : vector<1x1x128xf32> to vector<2x16x128xf32>
    %46 = arith.mulf %15, %45 : vector<2x16x128xf32>
    %47 = vector.broadcast %44 : vector<1x1x128xf32> to vector<2x16x128xf32>
    %48 = arith.addf %46, %47 : vector<2x16x128xf32>
    %cst_37 = arith.constant 0.000000e+00 : f32
    %49 = vector.broadcast %cst_37 : f32 to vector<2x16x128xf32>
    %50 = arith.maximumf %48, %49 : vector<2x16x128xf32>
    %51 = arith.truncf %50 : vector<2x16x128xf32> to vector<2x16x128xbf16>
    %c0_38 = arith.constant 0 : index
    %c16_39 = arith.constant 16 : index
    %c0_40 = arith.constant 0 : index
    %52 = vector.load %arg13[%c0_38, %c16_39, %c0_40] : memref<2x48x128xbf16, #tpu.memory_space<vmem>>, vector<2x16x128xbf16>
    tpu.vector_store %arg13[%c0_38, %c16_39, %c0_40], %51 {strides = array<i32>} : memref<2x48x128xbf16, #tpu.memory_space<vmem>>, vector<2x16x128xbf16>,
    %c0_41 = arith.constant 0 : index
    %c15_42 = arith.constant 15 : index
    %c0_43 = arith.constant 0 : index
    %53 = vector.load %arg13[%c0_41, %c15_42, %c0_43] : memref<2x48x128xbf16, #tpu.memory_space<vmem>>, vector<2x16x128xbf16>
    %c0_44 = arith.constant 0 : index
    %c16_45 = arith.constant 16 : index
    %c0_46 = arith.constant 0 : index
    %54 = vector.load %arg13[%c0_44, %c16_45, %c0_46] : memref<2x48x128xbf16, #tpu.memory_space<vmem>>, vector<2x16x128xbf16>
    %c0_47 = arith.constant 0 : index
    %c17_48 = arith.constant 17 : index
    %c0_49 = arith.constant 0 : index
    %55 = vector.load %arg13[%c0_47, %c17_48, %c0_49] : memref<2x48x128xbf16, #tpu.memory_space<vmem>>, vector<2x16x128xbf16>
    %56 = tpu.concatenate %53, %54, %55 in 2 : vector<2x16x128xbf16>, vector<2x16x128xbf16>, vector<2x16x128xbf16> -> vector<2x16x384xbf16>
    %57 = vector.shape_cast %56 : vector<2x16x384xbf16> to vector<32x384xbf16>
    %cst_50 = arith.constant dense<0.000000e+00> : vector<32x128xf32>
    %58 = tpu.matmul %57, %5, %cst_50 {dimension_numbers = #tpu.dot_dimension_numbers<[1], [0], [0], [1], [0, 0, 1, 1], [], []>} : vector<32x384xbf16>, vector<384x128xbf16>, vector<32x128xf32> -> vector<32x128xf32>
    %59 = vector.shape_cast %58 : vector<32x128xf32> to vector<2x16x128xf32>
    %60 = vector.shape_cast %59 : vector<2x16x128xf32> to vector<32x128xf32>
    %cst_51 = arith.constant dense<0.000000e+00> : vector<128xf32>
    %61 = vector.multi_reduction <add>, %60, %cst_51 [0] : vector<32x128xf32> to vector<128xf32>
    %62 = vector.shape_cast %61 : vector<128xf32> to vector<1x128xf32>
    %63 = arith.mulf %60, %60 : vector<32x128xf32>
    %cst_52 = arith.constant dense<0.000000e+00> : vector<128xf32>
    %64 = vector.multi_reduction <add>, %63, %cst_52 [0] : vector<32x128xf32> to vector<128xf32>
    %65 = vector.shape_cast %64 : vector<128xf32> to vector<1x128xf32>
    %cst_53 = arith.constant 3.125000e-02 : f32
    %66 = vector.broadcast %cst_53 : f32 to vector<1x128xf32>
    %67 = arith.mulf %62, %66 : vector<1x128xf32>
    %cst_54 = arith.constant 3.125000e-02 : f32
    %68 = vector.broadcast %cst_54 : f32 to vector<1x128xf32>
    %69 = arith.mulf %65, %68 : vector<1x128xf32>
    %70 = arith.mulf %67, %67 : vector<1x128xf32>
    %71 = arith.subf %69, %70 : vector<1x128xf32>
    %cst_55 = arith.constant 0.000000e+00 : f32
    %72 = vector.broadcast %cst_55 : f32 to vector<1x128xf32>
    %73 = arith.maximumf %71, %72 : vector<1x128xf32>
    %cst_56 = arith.constant 9.99999974E-6 : f32
    %74 = vector.broadcast %cst_56 : f32 to vector<1x128xf32>
    %75 = arith.addf %73, %74 : vector<1x128xf32>
    %76 = math.rsqrt %75 : vector<1x128xf32>
    %cst_57 = arith.constant 1.000000e+00 : f32
    %77 = vector.broadcast %cst_57 : f32 to vector<1x128xf32>
    %78 = arith.mulf %77, %76 : vector<1x128xf32>
    %79 = arith.mulf %67, %78 : vector<1x128xf32>
    %cst_58 = arith.constant 1.000000e-03 : f32
    %80 = vector.broadcast %cst_58 : f32 to vector<1x128xf32>
    %81 = arith.subf %80, %79 : vector<1x128xf32>
    %82 = vector.shape_cast %78 : vector<1x128xf32> to vector<1x1x128xf32>
    %83 = vector.shape_cast %81 : vector<1x128xf32> to vector<1x1x128xf32>
    %84 = vector.broadcast %82 : vector<1x1x128xf32> to vector<2x16x128xf32>
    %85 = arith.mulf %59, %84 : vector<2x16x128xf32>
    %86 = vector.broadcast %83 : vector<1x1x128xf32> to vector<2x16x128xf32>
    %87 = arith.addf %85, %86 : vector<2x16x128xf32>
    %cst_59 = arith.constant 0.000000e+00 : f32
    %88 = vector.broadcast %cst_59 : f32 to vector<2x16x128xf32>
    %89 = arith.maximumf %87, %88 : vector<2x16x128xf32>
    %90 = arith.truncf %89 : vector<2x16x128xf32> to vector<2x16x128xbf16>
    %c0_60 = arith.constant 0 : index
    %c16_61 = arith.constant 16 : index
    %c0_62 = arith.constant 0 : index
    %91 = vector.load %arg13[%c0_60, %c16_61, %c0_62] : memref<2x48x128xbf16, #tpu.memory_space<vmem>>, vector<2x16x128xbf16>
    tpu.vector_store %arg13[%c0_60, %c16_61, %c0_62], %90 {strides = array<i32>} : memref<2x48x128xbf16, #tpu.memory_space<vmem>>, vector<2x16x128xbf16>,
    %c0_63 = arith.constant 0 : index
    %c15_64 = arith.constant 15 : index
    %c0_65 = arith.constant 0 : index
    %92 = vector.load %arg13[%c0_63, %c15_64, %c0_65] : memref<2x48x128xbf16, #tpu.memory_space<vmem>>, vector<2x16x128xbf16>
    %c0_66 = arith.constant 0 : index
    %c16_67 = arith.constant 16 : index
    %c0_68 = arith.constant 0 : index
    %93 = vector.load %arg13[%c0_66, %c16_67, %c0_68] : memref<2x48x128xbf16, #tpu.memory_space<vmem>>, vector<2x16x128xbf16>
    %c0_69 = arith.constant 0 : index
    %c17_70 = arith.constant 17 : index
    %c0_71 = arith.constant 0 : index
    %94 = vector.load %arg13[%c0_69, %c17_70, %c0_71] : memref<2x48x128xbf16, #tpu.memory_space<vmem>>, vector<2x16x128xbf16>
    %95 = tpu.concatenate %92, %93, %94 in 2 : vector<2x16x128xbf16>, vector<2x16x128xbf16>, vector<2x16x128xbf16> -> vector<2x16x384xbf16>
    %96 = vector.shape_cast %95 : vector<2x16x384xbf16> to vector<32x384xbf16>
    %cst_72 = arith.constant dense<0.000000e+00> : vector<32x128xf32>
    %97 = tpu.matmul %96, %6, %cst_72 {dimension_numbers = #tpu.dot_dimension_numbers<[1], [0], [0], [1], [0, 0, 1, 1], [], []>} : vector<32x384xbf16>, vector<384x128xbf16>, vector<32x128xf32> -> vector<32x128xf32>
    %98 = vector.shape_cast %97 : vector<32x128xf32> to vector<2x16x128xf32>
    %99 = vector.shape_cast %98 : vector<2x16x128xf32> to vector<32x128xf32>
    %cst_73 = arith.constant dense<0.000000e+00> : vector<128xf32>
    %100 = vector.multi_reduction <add>, %99, %cst_73 [0] : vector<32x128xf32> to vector<128xf32>
    %101 = vector.shape_cast %100 : vector<128xf32> to vector<1x128xf32>
    %102 = arith.mulf %99, %99 : vector<32x128xf32>
    %cst_74 = arith.constant dense<0.000000e+00> : vector<128xf32>
    %103 = vector.multi_reduction <add>, %102, %cst_74 [0] : vector<32x128xf32> to vector<128xf32>
    %104 = vector.shape_cast %103 : vector<128xf32> to vector<1x128xf32>
    %cst_75 = arith.constant 3.125000e-02 : f32
    %105 = vector.broadcast %cst_75 : f32 to vector<1x128xf32>
    %106 = arith.mulf %101, %105 : vector<1x128xf32>
    %cst_76 = arith.constant 3.125000e-02 : f32
    %107 = vector.broadcast %cst_76 : f32 to vector<1x128xf32>
    %108 = arith.mulf %104, %107 : vector<1x128xf32>
    %109 = arith.mulf %106, %106 : vector<1x128xf32>
    %110 = arith.subf %108, %109 : vector<1x128xf32>
    %cst_77 = arith.constant 0.000000e+00 : f32
    %111 = vector.broadcast %cst_77 : f32 to vector<1x128xf32>
    %112 = arith.maximumf %110, %111 : vector<1x128xf32>
    %cst_78 = arith.constant 9.99999974E-6 : f32
    %113 = vector.broadcast %cst_78 : f32 to vector<1x128xf32>
    %114 = arith.addf %112, %113 : vector<1x128xf32>
    %115 = math.rsqrt %114 : vector<1x128xf32>
    %cst_79 = arith.constant 1.000000e+00 : f32
    %116 = vector.broadcast %cst_79 : f32 to vector<1x128xf32>
    %117 = arith.mulf %116, %115 : vector<1x128xf32>
    %118 = arith.mulf %106, %117 : vector<1x128xf32>
    %cst_80 = arith.constant 1.000000e-03 : f32
    %119 = vector.broadcast %cst_80 : f32 to vector<1x128xf32>
    %120 = arith.subf %119, %118 : vector<1x128xf32>
    %121 = vector.shape_cast %117 : vector<1x128xf32> to vector<1x1x128xf32>
    %122 = vector.shape_cast %120 : vector<1x128xf32> to vector<1x1x128xf32>
    %123 = vector.shape_cast %20 : vector<2x16x128xf32> to vector<32x128xf32>
    %cst_81 = arith.constant dense<0.000000e+00> : vector<128xf32>
    %124 = vector.multi_reduction <add>, %123, %cst_81 [0] : vector<32x128xf32> to vector<128xf32>
    %125 = vector.shape_cast %124 : vector<128xf32> to vector<1x128xf32>
    %126 = arith.mulf %123, %123 : vector<32x128xf32>
    %cst_82 = arith.constant dense<0.000000e+00> : vector<128xf32>
    %127 = vector.multi_reduction <add>, %126, %cst_82 [0] : vector<32x128xf32> to vector<128xf32>
    %128 = vector.shape_cast %127 : vector<128xf32> to vector<1x128xf32>
    %cst_83 = arith.constant 3.125000e-02 : f32
    %129 = vector.broadcast %cst_83 : f32 to vector<1x128xf32>
    %130 = arith.mulf %125, %129 : vector<1x128xf32>
    %cst_84 = arith.constant 3.125000e-02 : f32
    %131 = vector.broadcast %cst_84 : f32 to vector<1x128xf32>
    %132 = arith.mulf %128, %131 : vector<1x128xf32>
    %133 = arith.mulf %130, %130 : vector<1x128xf32>
    %134 = arith.subf %132, %133 : vector<1x128xf32>
    %cst_85 = arith.constant 0.000000e+00 : f32
    %135 = vector.broadcast %cst_85 : f32 to vector<1x128xf32>
    %136 = arith.maximumf %134, %135 : vector<1x128xf32>
    %cst_86 = arith.constant 9.99999974E-6 : f32
    %137 = vector.broadcast %cst_86 : f32 to vector<1x128xf32>
    %138 = arith.addf %136, %137 : vector<1x128xf32>
    %139 = math.rsqrt %138 : vector<1x128xf32>
    %cst_87 = arith.constant 1.000000e+00 : f32
    %140 = vector.broadcast %cst_87 : f32 to vector<1x128xf32>
    %141 = arith.mulf %140, %139 : vector<1x128xf32>
    %142 = arith.mulf %130, %141 : vector<1x128xf32>
    %cst_88 = arith.constant 1.000000e-03 : f32
    %143 = vector.broadcast %cst_88 : f32 to vector<1x128xf32>
    %144 = arith.subf %143, %142 : vector<1x128xf32>
    %145 = vector.shape_cast %141 : vector<1x128xf32> to vector<1x1x128xf32>
    %146 = vector.shape_cast %144 : vector<1x128xf32> to vector<1x1x128xf32>
    %147 = vector.broadcast %121 : vector<1x1x128xf32> to vector<2x16x128xf32>
    %148 = arith.mulf %98, %147 : vector<2x16x128xf32>
    %149 = vector.broadcast %145 : vector<1x1x128xf32> to vector<2x16x128xf32>
    %150 = arith.mulf %20, %149 : vector<2x16x128xf32>
    %151 = arith.addf %148, %150 : vector<2x16x128xf32>
    %152 = arith.addf %122, %146 : vector<1x1x128xf32>
    %153 = vector.broadcast %152 : vector<1x1x128xf32> to vector<2x16x128xf32>
    %154 = arith.addf %151, %153 : vector<2x16x128xf32>
    %cst_89 = arith.constant 0.000000e+00 : f32
    %155 = vector.broadcast %cst_89 : f32 to vector<2x16x128xf32>
    %156 = arith.maximumf %154, %155 : vector<2x16x128xf32>
    %c0_90 = arith.constant 0 : index
    %c0_91 = arith.constant 0 : index
    %157 = vector.load %arg5[%c0_90, %c0_91] : memref<384x128xbf16, #tpu.memory_space<vmem>>, vector<384x128xbf16>
    %c0_92 = arith.constant 0 : index
    %c0_93 = arith.constant 0 : index
    %158 = vector.load %arg6[%c0_92, %c0_93] : memref<384x128xbf16, #tpu.memory_space<vmem>>, vector<384x128xbf16>
    %c0_94 = arith.constant 0 : index
    %c0_95 = arith.constant 0 : index
    %159 = vector.load %arg7[%c0_94, %c0_95] : memref<384x128xbf16, #tpu.memory_space<vmem>>, vector<384x128xbf16>
    %160 = arith.truncf %156 : vector<2x16x128xf32> to vector<2x16x128xbf16>
    %c0_96 = arith.constant 0 : index
    %c16_97 = arith.constant 16 : index
    %c0_98 = arith.constant 0 : index
    %161 = vector.load %arg13[%c0_96, %c16_97, %c0_98] : memref<2x48x128xbf16, #tpu.memory_space<vmem>>, vector<2x16x128xbf16>
    tpu.vector_store %arg13[%c0_96, %c16_97, %c0_98], %160 {strides = array<i32>} : memref<2x48x128xbf16, #tpu.memory_space<vmem>>, vector<2x16x128xbf16>,
    %c0_99 = arith.constant 0 : index
    %c15_100 = arith.constant 15 : index
    %c0_101 = arith.constant 0 : index
    %162 = vector.load %arg13[%c0_99, %c15_100, %c0_101] : memref<2x48x128xbf16, #tpu.memory_space<vmem>>, vector<2x16x128xbf16>
    %c0_102 = arith.constant 0 : index
    %c16_103 = arith.constant 16 : index
    %c0_104 = arith.constant 0 : index
    %163 = vector.load %arg13[%c0_102, %c16_103, %c0_104] : memref<2x48x128xbf16, #tpu.memory_space<vmem>>, vector<2x16x128xbf16>
    %c0_105 = arith.constant 0 : index
    %c17_106 = arith.constant 17 : index
    %c0_107 = arith.constant 0 : index
    %164 = vector.load %arg13[%c0_105, %c17_106, %c0_107] : memref<2x48x128xbf16, #tpu.memory_space<vmem>>, vector<2x16x128xbf16>
    %165 = tpu.concatenate %162, %163, %164 in 2 : vector<2x16x128xbf16>, vector<2x16x128xbf16>, vector<2x16x128xbf16> -> vector<2x16x384xbf16>
    %166 = vector.shape_cast %165 : vector<2x16x384xbf16> to vector<32x384xbf16>
    %cst_108 = arith.constant dense<0.000000e+00> : vector<32x128xf32>
    %167 = tpu.matmul %166, %157, %cst_108 {dimension_numbers = #tpu.dot_dimension_numbers<[1], [0], [0], [1], [0, 0, 1, 1], [], []>} : vector<32x384xbf16>, vector<384x128xbf16>, vector<32x128xf32> -> vector<32x128xf32>
    %168 = vector.shape_cast %167 : vector<32x128xf32> to vector<2x16x128xf32>
    %169 = vector.shape_cast %168 : vector<2x16x128xf32> to vector<32x128xf32>
    %cst_109 = arith.constant dense<0.000000e+00> : vector<128xf32>
    %170 = vector.multi_reduction <add>, %169, %cst_109 [0] : vector<32x128xf32> to vector<128xf32>
    %171 = vector.shape_cast %170 : vector<128xf32> to vector<1x128xf32>
    %172 = arith.mulf %169, %169 : vector<32x128xf32>
    %cst_110 = arith.constant dense<0.000000e+00> : vector<128xf32>
    %173 = vector.multi_reduction <add>, %172, %cst_110 [0] : vector<32x128xf32> to vector<128xf32>
    %174 = vector.shape_cast %173 : vector<128xf32> to vector<1x128xf32>
    %cst_111 = arith.constant 3.125000e-02 : f32
    %175 = vector.broadcast %cst_111 : f32 to vector<1x128xf32>
    %176 = arith.mulf %171, %175 : vector<1x128xf32>
    %cst_112 = arith.constant 3.125000e-02 : f32
    %177 = vector.broadcast %cst_112 : f32 to vector<1x128xf32>
    %178 = arith.mulf %174, %177 : vector<1x128xf32>
    %179 = arith.mulf %176, %176 : vector<1x128xf32>
    %180 = arith.subf %178, %179 : vector<1x128xf32>
    %cst_113 = arith.constant 0.000000e+00 : f32
    %181 = vector.broadcast %cst_113 : f32 to vector<1x128xf32>
    %182 = arith.maximumf %180, %181 : vector<1x128xf32>
    %cst_114 = arith.constant 9.99999974E-6 : f32
    %183 = vector.broadcast %cst_114 : f32 to vector<1x128xf32>
    %184 = arith.addf %182, %183 : vector<1x128xf32>
    %185 = math.rsqrt %184 : vector<1x128xf32>
    %cst_115 = arith.constant 1.000000e+00 : f32
    %186 = vector.broadcast %cst_115 : f32 to vector<1x128xf32>
    %187 = arith.mulf %186, %185 : vector<1x128xf32>
    %188 = arith.mulf %176, %187 : vector<1x128xf32>
    %cst_116 = arith.constant 1.000000e-03 : f32
    %189 = vector.broadcast %cst_116 : f32 to vector<1x128xf32>
    %190 = arith.subf %189, %188 : vector<1x128xf32>
    %191 = vector.shape_cast %187 : vector<1x128xf32> to vector<1x1x128xf32>
    %192 = vector.shape_cast %190 : vector<1x128xf32> to vector<1x1x128xf32>
    %193 = vector.broadcast %191 : vector<1x1x128xf32> to vector<2x16x128xf32>
    %194 = arith.mulf %168, %193 : vector<2x16x128xf32>
    %195 = vector.broadcast %192 : vector<1x1x128xf32> to vector<2x16x128xf32>
    %196 = arith.addf %194, %195 : vector<2x16x128xf32>
    %cst_117 = arith.constant 0.000000e+00 : f32
    %197 = vector.broadcast %cst_117 : f32 to vector<2x16x128xf32>
    %198 = arith.maximumf %196, %197 : vector<2x16x128xf32>
    %199 = arith.truncf %198 : vector<2x16x128xf32> to vector<2x16x128xbf16>
    %c0_118 = arith.constant 0 : index
    %c16_119 = arith.constant 16 : index
    %c0_120 = arith.constant 0 : index
    %200 = vector.load %arg13[%c0_118, %c16_119, %c0_120] : memref<2x48x128xbf16, #tpu.memory_space<vmem>>, vector<2x16x128xbf16>
    tpu.vector_store %arg13[%c0_118, %c16_119, %c0_120], %199 {strides = array<i32>} : memref<2x48x128xbf16, #tpu.memory_space<vmem>>, vector<2x16x128xbf16>,
    %c0_121 = arith.constant 0 : index
    %c15_122 = arith.constant 15 : index
    %c0_123 = arith.constant 0 : index
    %201 = vector.load %arg13[%c0_121, %c15_122, %c0_123] : memref<2x48x128xbf16, #tpu.memory_space<vmem>>, vector<2x16x128xbf16>
    %c0_124 = arith.constant 0 : index
    %c16_125 = arith.constant 16 : index
    %c0_126 = arith.constant 0 : index
    %202 = vector.load %arg13[%c0_124, %c16_125, %c0_126] : memref<2x48x128xbf16, #tpu.memory_space<vmem>>, vector<2x16x128xbf16>
    %c0_127 = arith.constant 0 : index
    %c17_128 = arith.constant 17 : index
    %c0_129 = arith.constant 0 : index
    %203 = vector.load %arg13[%c0_127, %c17_128, %c0_129] : memref<2x48x128xbf16, #tpu.memory_space<vmem>>, vector<2x16x128xbf16>
    %204 = tpu.concatenate %201, %202, %203 in 2 : vector<2x16x128xbf16>, vector<2x16x128xbf16>, vector<2x16x128xbf16> -> vector<2x16x384xbf16>
    %205 = vector.shape_cast %204 : vector<2x16x384xbf16> to vector<32x384xbf16>
    %cst_130 = arith.constant dense<0.000000e+00> : vector<32x128xf32>
    %206 = tpu.matmul %205, %158, %cst_130 {dimension_numbers = #tpu.dot_dimension_numbers<[1], [0], [0], [1], [0, 0, 1, 1], [], []>} : vector<32x384xbf16>, vector<384x128xbf16>, vector<32x128xf32> -> vector<32x128xf32>
    %207 = vector.shape_cast %206 : vector<32x128xf32> to vector<2x16x128xf32>
    %208 = vector.shape_cast %207 : vector<2x16x128xf32> to vector<32x128xf32>
    %cst_131 = arith.constant dense<0.000000e+00> : vector<128xf32>
    %209 = vector.multi_reduction <add>, %208, %cst_131 [0] : vector<32x128xf32> to vector<128xf32>
    %210 = vector.shape_cast %209 : vector<128xf32> to vector<1x128xf32>
    %211 = arith.mulf %208, %208 : vector<32x128xf32>
    %cst_132 = arith.constant dense<0.000000e+00> : vector<128xf32>
    %212 = vector.multi_reduction <add>, %211, %cst_132 [0] : vector<32x128xf32> to vector<128xf32>
    %213 = vector.shape_cast %212 : vector<128xf32> to vector<1x128xf32>
    %cst_133 = arith.constant 3.125000e-02 : f32
    %214 = vector.broadcast %cst_133 : f32 to vector<1x128xf32>
    %215 = arith.mulf %210, %214 : vector<1x128xf32>
    %cst_134 = arith.constant 3.125000e-02 : f32
    %216 = vector.broadcast %cst_134 : f32 to vector<1x128xf32>
    %217 = arith.mulf %213, %216 : vector<1x128xf32>
    %218 = arith.mulf %215, %215 : vector<1x128xf32>
    %219 = arith.subf %217, %218 : vector<1x128xf32>
    %cst_135 = arith.constant 0.000000e+00 : f32
    %220 = vector.broadcast %cst_135 : f32 to vector<1x128xf32>
    %221 = arith.maximumf %219, %220 : vector<1x128xf32>
    %cst_136 = arith.constant 9.99999974E-6 : f32
    %222 = vector.broadcast %cst_136 : f32 to vector<1x128xf32>
    %223 = arith.addf %221, %222 : vector<1x128xf32>
    %224 = math.rsqrt %223 : vector<1x128xf32>
    %cst_137 = arith.constant 1.000000e+00 : f32
    %225 = vector.broadcast %cst_137 : f32 to vector<1x128xf32>
    %226 = arith.mulf %225, %224 : vector<1x128xf32>
    %227 = arith.mulf %215, %226 : vector<1x128xf32>
    %cst_138 = arith.constant 1.000000e-03 : f32
    %228 = vector.broadcast %cst_138 : f32 to vector<1x128xf32>
    %229 = arith.subf %228, %227 : vector<1x128xf32>
    %230 = vector.shape_cast %226 : vector<1x128xf32> to vector<1x1x128xf32>
    %231 = vector.shape_cast %229 : vector<1x128xf32> to vector<1x1x128xf32>
    %232 = vector.broadcast %230 : vector<1x1x128xf32> to vector<2x16x128xf32>
    %233 = arith.mulf %207, %232 : vector<2x16x128xf32>
    %234 = vector.broadcast %231 : vector<1x1x128xf32> to vector<2x16x128xf32>
    %235 = arith.addf %233, %234 : vector<2x16x128xf32>
    %cst_139 = arith.constant 0.000000e+00 : f32
    %236 = vector.broadcast %cst_139 : f32 to vector<2x16x128xf32>
    %237 = arith.maximumf %235, %236 : vector<2x16x128xf32>
    %238 = arith.truncf %237 : vector<2x16x128xf32> to vector<2x16x128xbf16>
    %c0_140 = arith.constant 0 : index
    %c16_141 = arith.constant 16 : index
    %c0_142 = arith.constant 0 : index
    %239 = vector.load %arg13[%c0_140, %c16_141, %c0_142] : memref<2x48x128xbf16, #tpu.memory_space<vmem>>, vector<2x16x128xbf16>
    tpu.vector_store %arg13[%c0_140, %c16_141, %c0_142], %238 {strides = array<i32>} : memref<2x48x128xbf16, #tpu.memory_space<vmem>>, vector<2x16x128xbf16>,
    %c0_143 = arith.constant 0 : index
    %c15_144 = arith.constant 15 : index
    %c0_145 = arith.constant 0 : index
    %240 = vector.load %arg13[%c0_143, %c15_144, %c0_145] : memref<2x48x128xbf16, #tpu.memory_space<vmem>>, vector<2x16x128xbf16>
    %c0_146 = arith.constant 0 : index
    %c16_147 = arith.constant 16 : index
    %c0_148 = arith.constant 0 : index
    %241 = vector.load %arg13[%c0_146, %c16_147, %c0_148] : memref<2x48x128xbf16, #tpu.memory_space<vmem>>, vector<2x16x128xbf16>
    %c0_149 = arith.constant 0 : index
    %c17_150 = arith.constant 17 : index
    %c0_151 = arith.constant 0 : index
    %242 = vector.load %arg13[%c0_149, %c17_150, %c0_151] : memref<2x48x128xbf16, #tpu.memory_space<vmem>>, vector<2x16x128xbf16>
    %243 = tpu.concatenate %240, %241, %242 in 2 : vector<2x16x128xbf16>, vector<2x16x128xbf16>, vector<2x16x128xbf16> -> vector<2x16x384xbf16>
    %244 = vector.shape_cast %243 : vector<2x16x384xbf16> to vector<32x384xbf16>
    %cst_152 = arith.constant dense<0.000000e+00> : vector<32x128xf32>
    %245 = tpu.matmul %244, %159, %cst_152 {dimension_numbers = #tpu.dot_dimension_numbers<[1], [0], [0], [1], [0, 0, 1, 1], [], []>} : vector<32x384xbf16>, vector<384x128xbf16>, vector<32x128xf32> -> vector<32x128xf32>
    %246 = vector.shape_cast %245 : vector<32x128xf32> to vector<2x16x128xf32>
    %247 = vector.shape_cast %246 : vector<2x16x128xf32> to vector<32x128xf32>
    %cst_153 = arith.constant dense<0.000000e+00> : vector<128xf32>
    %248 = vector.multi_reduction <add>, %247, %cst_153 [0] : vector<32x128xf32> to vector<128xf32>
    %249 = vector.shape_cast %248 : vector<128xf32> to vector<1x128xf32>
    %250 = arith.mulf %247, %247 : vector<32x128xf32>
    %cst_154 = arith.constant dense<0.000000e+00> : vector<128xf32>
    %251 = vector.multi_reduction <add>, %250, %cst_154 [0] : vector<32x128xf32> to vector<128xf32>
    %252 = vector.shape_cast %251 : vector<128xf32> to vector<1x128xf32>
    %cst_155 = arith.constant 3.125000e-02 : f32
    %253 = vector.broadcast %cst_155 : f32 to vector<1x128xf32>
    %254 = arith.mulf %249, %253 : vector<1x128xf32>
    %cst_156 = arith.constant 3.125000e-02 : f32
    %255 = vector.broadcast %cst_156 : f32 to vector<1x128xf32>
    %256 = arith.mulf %252, %255 : vector<1x128xf32>
    %257 = arith.mulf %254, %254 : vector<1x128xf32>
    %258 = arith.subf %256, %257 : vector<1x128xf32>
    %cst_157 = arith.constant 0.000000e+00 : f32
    %259 = vector.broadcast %cst_157 : f32 to vector<1x128xf32>
    %260 = arith.maximumf %258, %259 : vector<1x128xf32>
    %cst_158 = arith.constant 9.99999974E-6 : f32
    %261 = vector.broadcast %cst_158 : f32 to vector<1x128xf32>
    %262 = arith.addf %260, %261 : vector<1x128xf32>
    %263 = math.rsqrt %262 : vector<1x128xf32>
    %cst_159 = arith.constant 1.000000e+00 : f32
    %264 = vector.broadcast %cst_159 : f32 to vector<1x128xf32>
    %265 = arith.mulf %264, %263 : vector<1x128xf32>
    %266 = arith.mulf %254, %265 : vector<1x128xf32>
    %cst_160 = arith.constant 1.000000e-03 : f32
    %267 = vector.broadcast %cst_160 : f32 to vector<1x128xf32>
    %268 = arith.subf %267, %266 : vector<1x128xf32>
    %269 = vector.shape_cast %265 : vector<1x128xf32> to vector<1x1x128xf32>
    %270 = vector.shape_cast %268 : vector<1x128xf32> to vector<1x1x128xf32>
    %271 = vector.shape_cast %156 : vector<2x16x128xf32> to vector<32x128xf32>
    %cst_161 = arith.constant dense<0.000000e+00> : vector<128xf32>
    %272 = vector.multi_reduction <add>, %271, %cst_161 [0] : vector<32x128xf32> to vector<128xf32>
    %273 = vector.shape_cast %272 : vector<128xf32> to vector<1x128xf32>
    %274 = arith.mulf %271, %271 : vector<32x128xf32>
    %cst_162 = arith.constant dense<0.000000e+00> : vector<128xf32>
    %275 = vector.multi_reduction <add>, %274, %cst_162 [0] : vector<32x128xf32> to vector<128xf32>
    %276 = vector.shape_cast %275 : vector<128xf32> to vector<1x128xf32>
    %cst_163 = arith.constant 3.125000e-02 : f32
    %277 = vector.broadcast %cst_163 : f32 to vector<1x128xf32>
    %278 = arith.mulf %273, %277 : vector<1x128xf32>
    %cst_164 = arith.constant 3.125000e-02 : f32
    %279 = vector.broadcast %cst_164 : f32 to vector<1x128xf32>
    %280 = arith.mulf %276, %279 : vector<1x128xf32>
    %281 = arith.mulf %278, %278 : vector<1x128xf32>
    %282 = arith.subf %280, %281 : vector<1x128xf32>
    %cst_165 = arith.constant 0.000000e+00 : f32
    %283 = vector.broadcast %cst_165 : f32 to vector<1x128xf32>
    %284 = arith.maximumf %282, %283 : vector<1x128xf32>
    %cst_166 = arith.constant 9.99999974E-6 : f32
    %285 = vector.broadcast %cst_166 : f32 to vector<1x128xf32>
    %286 = arith.addf %284, %285 : vector<1x128xf32>
    %287 = math.rsqrt %286 : vector<1x128xf32>
    %cst_167 = arith.constant 1.000000e+00 : f32
    %288 = vector.broadcast %cst_167 : f32 to vector<1x128xf32>
    %289 = arith.mulf %288, %287 : vector<1x128xf32>
    %290 = arith.mulf %278, %289 : vector<1x128xf32>
    %cst_168 = arith.constant 1.000000e-03 : f32
    %291 = vector.broadcast %cst_168 : f32 to vector<1x128xf32>
    %292 = arith.subf %291, %290 : vector<1x128xf32>
    %293 = vector.shape_cast %289 : vector<1x128xf32> to vector<1x1x128xf32>
    %294 = vector.shape_cast %292 : vector<1x128xf32> to vector<1x1x128xf32>
    %295 = vector.broadcast %269 : vector<1x1x128xf32> to vector<2x16x128xf32>
    %296 = arith.mulf %246, %295 : vector<2x16x128xf32>
    %297 = vector.broadcast %293 : vector<1x1x128xf32> to vector<2x16x128xf32>
    %298 = arith.mulf %156, %297 : vector<2x16x128xf32>
    %299 = arith.addf %296, %298 : vector<2x16x128xf32>
    %300 = arith.addf %270, %294 : vector<1x1x128xf32>
    %301 = vector.broadcast %300 : vector<1x1x128xf32> to vector<2x16x128xf32>
    %302 = arith.addf %299, %301 : vector<2x16x128xf32>
    %cst_169 = arith.constant 0.000000e+00 : f32
    %303 = vector.broadcast %cst_169 : f32 to vector<2x16x128xf32>
    %304 = arith.maximumf %302, %303 : vector<2x16x128xf32>
    %c0_170 = arith.constant 0 : index
    %c0_171 = arith.constant 0 : index
    %305 = vector.load %arg8[%c0_170, %c0_171] : memref<384x128xbf16, #tpu.memory_space<vmem>>, vector<384x128xbf16>
    %c0_172 = arith.constant 0 : index
    %c0_173 = arith.constant 0 : index
    %306 = vector.load %arg9[%c0_172, %c0_173] : memref<384x128xbf16, #tpu.memory_space<vmem>>, vector<384x128xbf16>
    %c0_174 = arith.constant 0 : index
    %c0_175 = arith.constant 0 : index
    %307 = vector.load %arg10[%c0_174, %c0_175] : memref<384x128xbf16, #tpu.memory_space<vmem>>, vector<384x128xbf16>
    %308 = arith.truncf %304 : vector<2x16x128xf32> to vector<2x16x128xbf16>
    %c0_176 = arith.constant 0 : index
    %c16_177 = arith.constant 16 : index
    %c0_178 = arith.constant 0 : index
    %309 = vector.load %arg13[%c0_176, %c16_177, %c0_178] : memref<2x48x128xbf16, #tpu.memory_space<vmem>>, vector<2x16x128xbf16>
    tpu.vector_store %arg13[%c0_176, %c16_177, %c0_178], %308 {strides = array<i32>} : memref<2x48x128xbf16, #tpu.memory_space<vmem>>, vector<2x16x128xbf16>,
    %c0_179 = arith.constant 0 : index
    %c15_180 = arith.constant 15 : index
    %c0_181 = arith.constant 0 : index
    %310 = vector.load %arg13[%c0_179, %c15_180, %c0_181] : memref<2x48x128xbf16, #tpu.memory_space<vmem>>, vector<2x16x128xbf16>
    %c0_182 = arith.constant 0 : index
    %c16_183 = arith.constant 16 : index
    %c0_184 = arith.constant 0 : index
    %311 = vector.load %arg13[%c0_182, %c16_183, %c0_184] : memref<2x48x128xbf16, #tpu.memory_space<vmem>>, vector<2x16x128xbf16>
    %c0_185 = arith.constant 0 : index
    %c17_186 = arith.constant 17 : index
    %c0_187 = arith.constant 0 : index
    %312 = vector.load %arg13[%c0_185, %c17_186, %c0_187] : memref<2x48x128xbf16, #tpu.memory_space<vmem>>, vector<2x16x128xbf16>
    %313 = tpu.concatenate %310, %311, %312 in 2 : vector<2x16x128xbf16>, vector<2x16x128xbf16>, vector<2x16x128xbf16> -> vector<2x16x384xbf16>
    %314 = vector.shape_cast %313 : vector<2x16x384xbf16> to vector<32x384xbf16>
    %cst_188 = arith.constant dense<0.000000e+00> : vector<32x128xf32>
    %315 = tpu.matmul %314, %305, %cst_188 {dimension_numbers = #tpu.dot_dimension_numbers<[1], [0], [0], [1], [0, 0, 1, 1], [], []>} : vector<32x384xbf16>, vector<384x128xbf16>, vector<32x128xf32> -> vector<32x128xf32>
    %316 = vector.shape_cast %315 : vector<32x128xf32> to vector<2x16x128xf32>
    %c0_189 = arith.constant 0 : index
    %c0_190 = arith.constant 0 : index
    %317 = vector.load %arg11[%c0_189, %c0_190] : memref<128x128xbf16, #tpu.memory_space<vmem>>, vector<128x128xbf16>
    %c0_191 = arith.constant 0 : index
    %c16_192 = arith.constant 16 : index
    %c0_193 = arith.constant 0 : index
    %318 = vector.load %arg13[%c0_191, %c16_192, %c0_193] : memref<2x48x128xbf16, #tpu.memory_space<vmem>>, vector<2x16x128xbf16>
    %319 = vector.shape_cast %318 : vector<2x16x128xbf16> to vector<32x128xbf16>
    %cst_194 = arith.constant dense<0.000000e+00> : vector<32x128xf32>
    %320 = tpu.matmul %319, %317, %cst_194 {dimension_numbers = #tpu.dot_dimension_numbers<[1], [0], [0], [1], [0, 0, 1, 1], [], []>} : vector<32x128xbf16>, vector<128x128xbf16>, vector<32x128xf32> -> vector<32x128xf32>
    %321 = vector.shape_cast %320 : vector<32x128xf32> to vector<2x16x128xf32>
    %322 = vector.shape_cast %316 : vector<2x16x128xf32> to vector<32x128xf32>
    %cst_195 = arith.constant dense<0.000000e+00> : vector<128xf32>
    %323 = vector.multi_reduction <add>, %322, %cst_195 [0] : vector<32x128xf32> to vector<128xf32>
    %324 = vector.shape_cast %323 : vector<128xf32> to vector<1x128xf32>
    %325 = arith.mulf %322, %322 : vector<32x128xf32>
    %cst_196 = arith.constant dense<0.000000e+00> : vector<128xf32>
    %326 = vector.multi_reduction <add>, %325, %cst_196 [0] : vector<32x128xf32> to vector<128xf32>
    %327 = vector.shape_cast %326 : vector<128xf32> to vector<1x128xf32>
    %cst_197 = arith.constant 3.125000e-02 : f32
    %328 = vector.broadcast %cst_197 : f32 to vector<1x128xf32>
    %329 = arith.mulf %324, %328 : vector<1x128xf32>
    %cst_198 = arith.constant 3.125000e-02 : f32
    %330 = vector.broadcast %cst_198 : f32 to vector<1x128xf32>
    %331 = arith.mulf %327, %330 : vector<1x128xf32>
    %332 = arith.mulf %329, %329 : vector<1x128xf32>
    %333 = arith.subf %331, %332 : vector<1x128xf32>
    %cst_199 = arith.constant 0.000000e+00 : f32
    %334 = vector.broadcast %cst_199 : f32 to vector<1x128xf32>
    %335 = arith.maximumf %333, %334 : vector<1x128xf32>
    %cst_200 = arith.constant 9.99999974E-6 : f32
    %336 = vector.broadcast %cst_200 : f32 to vector<1x128xf32>
    %337 = arith.addf %335, %336 : vector<1x128xf32>
    %338 = math.rsqrt %337 : vector<1x128xf32>
    %cst_201 = arith.constant 1.000000e+00 : f32
    %339 = vector.broadcast %cst_201 : f32 to vector<1x128xf32>
    %340 = arith.mulf %339, %338 : vector<1x128xf32>
    %341 = arith.mulf %329, %340 : vector<1x128xf32>
    %cst_202 = arith.constant 1.000000e-03 : f32
    %342 = vector.broadcast %cst_202 : f32 to vector<1x128xf32>
    %343 = arith.subf %342, %341 : vector<1x128xf32>
    %344 = vector.shape_cast %340 : vector<1x128xf32> to vector<1x1x128xf32>
    %345 = vector.shape_cast %343 : vector<1x128xf32> to vector<1x1x128xf32>
    %346 = vector.broadcast %344 : vector<1x1x128xf32> to vector<2x16x128xf32>
    %347 = arith.mulf %316, %346 : vector<2x16x128xf32>
    %348 = vector.broadcast %345 : vector<1x1x128xf32> to vector<2x16x128xf32>
    %349 = arith.addf %347, %348 : vector<2x16x128xf32>
    %cst_203 = arith.constant 0.000000e+00 : f32
    %350 = vector.broadcast %cst_203 : f32 to vector<2x16x128xf32>
    %351 = arith.maximumf %349, %350 : vector<2x16x128xf32>
    %352 = arith.truncf %351 : vector<2x16x128xf32> to vector<2x16x128xbf16>
    %c0_204 = arith.constant 0 : index
    %c16_205 = arith.constant 16 : index
    %c0_206 = arith.constant 0 : index
    %353 = vector.load %arg13[%c0_204, %c16_205, %c0_206] : memref<2x48x128xbf16, #tpu.memory_space<vmem>>, vector<2x16x128xbf16>
    tpu.vector_store %arg13[%c0_204, %c16_205, %c0_206], %352 {strides = array<i32>} : memref<2x48x128xbf16, #tpu.memory_space<vmem>>, vector<2x16x128xbf16>,
    %c0_207 = arith.constant 0 : index
    %c15_208 = arith.constant 15 : index
    %c0_209 = arith.constant 0 : index
    %354 = vector.load %arg13[%c0_207, %c15_208, %c0_209] : memref<2x48x128xbf16, #tpu.memory_space<vmem>>, vector<2x16x128xbf16>
    %c0_210 = arith.constant 0 : index
    %c16_211 = arith.constant 16 : index
    %c0_212 = arith.constant 0 : index
    %355 = vector.load %arg13[%c0_210, %c16_211, %c0_212] : memref<2x48x128xbf16, #tpu.memory_space<vmem>>, vector<2x16x128xbf16>
    %c0_213 = arith.constant 0 : index
    %c17_214 = arith.constant 17 : index
    %c0_215 = arith.constant 0 : index
    %356 = vector.load %arg13[%c0_213, %c17_214, %c0_215] : memref<2x48x128xbf16, #tpu.memory_space<vmem>>, vector<2x16x128xbf16>
    %357 = tpu.concatenate %354, %355, %356 in 2 : vector<2x16x128xbf16>, vector<2x16x128xbf16>, vector<2x16x128xbf16> -> vector<2x16x384xbf16>
    %358 = vector.shape_cast %357 : vector<2x16x384xbf16> to vector<32x384xbf16>
    %cst_216 = arith.constant dense<0.000000e+00> : vector<32x128xf32>
    %359 = tpu.matmul %358, %306, %cst_216 {dimension_numbers = #tpu.dot_dimension_numbers<[1], [0], [0], [1], [0, 0, 1, 1], [], []>} : vector<32x384xbf16>, vector<384x128xbf16>, vector<32x128xf32> -> vector<32x128xf32>
    %360 = vector.shape_cast %359 : vector<32x128xf32> to vector<2x16x128xf32>
    %361 = vector.shape_cast %360 : vector<2x16x128xf32> to vector<32x128xf32>
    %cst_217 = arith.constant dense<0.000000e+00> : vector<128xf32>
    %362 = vector.multi_reduction <add>, %361, %cst_217 [0] : vector<32x128xf32> to vector<128xf32>
    %363 = vector.shape_cast %362 : vector<128xf32> to vector<1x128xf32>
    %364 = arith.mulf %361, %361 : vector<32x128xf32>
    %cst_218 = arith.constant dense<0.000000e+00> : vector<128xf32>
    %365 = vector.multi_reduction <add>, %364, %cst_218 [0] : vector<32x128xf32> to vector<128xf32>
    %366 = vector.shape_cast %365 : vector<128xf32> to vector<1x128xf32>
    %cst_219 = arith.constant 3.125000e-02 : f32
    %367 = vector.broadcast %cst_219 : f32 to vector<1x128xf32>
    %368 = arith.mulf %363, %367 : vector<1x128xf32>
    %cst_220 = arith.constant 3.125000e-02 : f32
    %369 = vector.broadcast %cst_220 : f32 to vector<1x128xf32>
    %370 = arith.mulf %366, %369 : vector<1x128xf32>
    %371 = arith.mulf %368, %368 : vector<1x128xf32>
    %372 = arith.subf %370, %371 : vector<1x128xf32>
    %cst_221 = arith.constant 0.000000e+00 : f32
    %373 = vector.broadcast %cst_221 : f32 to vector<1x128xf32>
    %374 = arith.maximumf %372, %373 : vector<1x128xf32>
    %cst_222 = arith.constant 9.99999974E-6 : f32
    %375 = vector.broadcast %cst_222 : f32 to vector<1x128xf32>
    %376 = arith.addf %374, %375 : vector<1x128xf32>
    %377 = math.rsqrt %376 : vector<1x128xf32>
    %cst_223 = arith.constant 1.000000e+00 : f32
    %378 = vector.broadcast %cst_223 : f32 to vector<1x128xf32>
    %379 = arith.mulf %378, %377 : vector<1x128xf32>
    %380 = arith.mulf %368, %379 : vector<1x128xf32>
    %cst_224 = arith.constant 1.000000e-03 : f32
    %381 = vector.broadcast %cst_224 : f32 to vector<1x128xf32>
    %382 = arith.subf %381, %380 : vector<1x128xf32>
    %383 = vector.shape_cast %379 : vector<1x128xf32> to vector<1x1x128xf32>
    %384 = vector.shape_cast %382 : vector<1x128xf32> to vector<1x1x128xf32>
    %385 = vector.broadcast %383 : vector<1x1x128xf32> to vector<2x16x128xf32>
    %386 = arith.mulf %360, %385 : vector<2x16x128xf32>
    %387 = vector.broadcast %384 : vector<1x1x128xf32> to vector<2x16x128xf32>
    %388 = arith.addf %386, %387 : vector<2x16x128xf32>
    %cst_225 = arith.constant 0.000000e+00 : f32
    %389 = vector.broadcast %cst_225 : f32 to vector<2x16x128xf32>
    %390 = arith.maximumf %388, %389 : vector<2x16x128xf32>
    %391 = arith.truncf %390 : vector<2x16x128xf32> to vector<2x16x128xbf16>
    %c0_226 = arith.constant 0 : index
    %c16_227 = arith.constant 16 : index
    %c0_228 = arith.constant 0 : index
    %392 = vector.load %arg13[%c0_226, %c16_227, %c0_228] : memref<2x48x128xbf16, #tpu.memory_space<vmem>>, vector<2x16x128xbf16>
    tpu.vector_store %arg13[%c0_226, %c16_227, %c0_228], %391 {strides = array<i32>} : memref<2x48x128xbf16, #tpu.memory_space<vmem>>, vector<2x16x128xbf16>,
    %c0_229 = arith.constant 0 : index
    %c15_230 = arith.constant 15 : index
    %c0_231 = arith.constant 0 : index
    %393 = vector.load %arg13[%c0_229, %c15_230, %c0_231] : memref<2x48x128xbf16, #tpu.memory_space<vmem>>, vector<2x16x128xbf16>
    %c0_232 = arith.constant 0 : index
    %c16_233 = arith.constant 16 : index
    %c0_234 = arith.constant 0 : index
    %394 = vector.load %arg13[%c0_232, %c16_233, %c0_234] : memref<2x48x128xbf16, #tpu.memory_space<vmem>>, vector<2x16x128xbf16>
    %c0_235 = arith.constant 0 : index
    %c17_236 = arith.constant 17 : index
    %c0_237 = arith.constant 0 : index
    %395 = vector.load %arg13[%c0_235, %c17_236, %c0_237] : memref<2x48x128xbf16, #tpu.memory_space<vmem>>, vector<2x16x128xbf16>
    %396 = tpu.concatenate %393, %394, %395 in 2 : vector<2x16x128xbf16>, vector<2x16x128xbf16>, vector<2x16x128xbf16> -> vector<2x16x384xbf16>
    %397 = vector.shape_cast %396 : vector<2x16x384xbf16> to vector<32x384xbf16>
    %cst_238 = arith.constant dense<0.000000e+00> : vector<32x128xf32>
    %398 = tpu.matmul %397, %307, %cst_238 {dimension_numbers = #tpu.dot_dimension_numbers<[1], [0], [0], [1], [0, 0, 1, 1], [], []>} : vector<32x384xbf16>, vector<384x128xbf16>, vector<32x128xf32> -> vector<32x128xf32>
    %399 = vector.shape_cast %398 : vector<32x128xf32> to vector<2x16x128xf32>
    %400 = vector.shape_cast %399 : vector<2x16x128xf32> to vector<32x128xf32>
    %cst_239 = arith.constant dense<0.000000e+00> : vector<128xf32>
    %401 = vector.multi_reduction <add>, %400, %cst_239 [0] : vector<32x128xf32> to vector<128xf32>
    %402 = vector.shape_cast %401 : vector<128xf32> to vector<1x128xf32>
    %403 = arith.mulf %400, %400 : vector<32x128xf32>
    %cst_240 = arith.constant dense<0.000000e+00> : vector<128xf32>
    %404 = vector.multi_reduction <add>, %403, %cst_240 [0] : vector<32x128xf32> to vector<128xf32>
    %405 = vector.shape_cast %404 : vector<128xf32> to vector<1x128xf32>
    %cst_241 = arith.constant 3.125000e-02 : f32
    %406 = vector.broadcast %cst_241 : f32 to vector<1x128xf32>
    %407 = arith.mulf %402, %406 : vector<1x128xf32>
    %cst_242 = arith.constant 3.125000e-02 : f32
    %408 = vector.broadcast %cst_242 : f32 to vector<1x128xf32>
    %409 = arith.mulf %405, %408 : vector<1x128xf32>
    %410 = arith.mulf %407, %407 : vector<1x128xf32>
    %411 = arith.subf %409, %410 : vector<1x128xf32>
    %cst_243 = arith.constant 0.000000e+00 : f32
    %412 = vector.broadcast %cst_243 : f32 to vector<1x128xf32>
    %413 = arith.maximumf %411, %412 : vector<1x128xf32>
    %cst_244 = arith.constant 9.99999974E-6 : f32
    %414 = vector.broadcast %cst_244 : f32 to vector<1x128xf32>
    %415 = arith.addf %413, %414 : vector<1x128xf32>
    %416 = math.rsqrt %415 : vector<1x128xf32>
    %cst_245 = arith.constant 1.000000e+00 : f32
    %417 = vector.broadcast %cst_245 : f32 to vector<1x128xf32>
    %418 = arith.mulf %417, %416 : vector<1x128xf32>
    %419 = arith.mulf %407, %418 : vector<1x128xf32>
    %cst_246 = arith.constant 1.000000e-03 : f32
    %420 = vector.broadcast %cst_246 : f32 to vector<1x128xf32>
    %421 = arith.subf %420, %419 : vector<1x128xf32>
    %422 = vector.shape_cast %418 : vector<1x128xf32> to vector<1x1x128xf32>
    %423 = vector.shape_cast %421 : vector<1x128xf32> to vector<1x1x128xf32>
    %424 = vector.shape_cast %321 : vector<2x16x128xf32> to vector<32x128xf32>
    %cst_247 = arith.constant dense<0.000000e+00> : vector<128xf32>
    %425 = vector.multi_reduction <add>, %424, %cst_247 [0] : vector<32x128xf32> to vector<128xf32>
    %426 = vector.shape_cast %425 : vector<128xf32> to vector<1x128xf32>
    %427 = arith.mulf %424, %424 : vector<32x128xf32>
    %cst_248 = arith.constant dense<0.000000e+00> : vector<128xf32>
    %428 = vector.multi_reduction <add>, %427, %cst_248 [0] : vector<32x128xf32> to vector<128xf32>
    %429 = vector.shape_cast %428 : vector<128xf32> to vector<1x128xf32>
    %cst_249 = arith.constant 3.125000e-02 : f32
    %430 = vector.broadcast %cst_249 : f32 to vector<1x128xf32>
    %431 = arith.mulf %426, %430 : vector<1x128xf32>
    %cst_250 = arith.constant 3.125000e-02 : f32
    %432 = vector.broadcast %cst_250 : f32 to vector<1x128xf32>
    %433 = arith.mulf %429, %432 : vector<1x128xf32>
    %434 = arith.mulf %431, %431 : vector<1x128xf32>
    %435 = arith.subf %433, %434 : vector<1x128xf32>
    %cst_251 = arith.constant 0.000000e+00 : f32
    %436 = vector.broadcast %cst_251 : f32 to vector<1x128xf32>
    %437 = arith.maximumf %435, %436 : vector<1x128xf32>
    %cst_252 = arith.constant 9.99999974E-6 : f32
    %438 = vector.broadcast %cst_252 : f32 to vector<1x128xf32>
    %439 = arith.addf %437, %438 : vector<1x128xf32>
    %440 = math.rsqrt %439 : vector<1x128xf32>
    %cst_253 = arith.constant 1.000000e+00 : f32
    %441 = vector.broadcast %cst_253 : f32 to vector<1x128xf32>
    %442 = arith.mulf %441, %440 : vector<1x128xf32>
    %443 = arith.mulf %431, %442 : vector<1x128xf32>
    %cst_254 = arith.constant 1.000000e-03 : f32
    %444 = vector.broadcast %cst_254 : f32 to vector<1x128xf32>
    %445 = arith.subf %444, %443 : vector<1x128xf32>
    %446 = vector.shape_cast %442 : vector<1x128xf32> to vector<1x1x128xf32>
    %447 = vector.shape_cast %445 : vector<1x128xf32> to vector<1x1x128xf32>
    %448 = vector.broadcast %422 : vector<1x1x128xf32> to vector<2x16x128xf32>
    %449 = arith.mulf %399, %448 : vector<2x16x128xf32>
    %450 = vector.broadcast %446 : vector<1x1x128xf32> to vector<2x16x128xf32>
    %451 = arith.mulf %321, %450 : vector<2x16x128xf32>
    %452 = arith.addf %449, %451 : vector<2x16x128xf32>
    %453 = arith.addf %423, %447 : vector<1x1x128xf32>
    %454 = vector.broadcast %453 : vector<1x1x128xf32> to vector<2x16x128xf32>
    %455 = arith.addf %452, %454 : vector<2x16x128xf32>
    %cst_255 = arith.constant 0.000000e+00 : f32
    %456 = vector.broadcast %cst_255 : f32 to vector<2x16x128xf32>
    %457 = arith.maximumf %455, %456 : vector<2x16x128xf32>
    %c0_256 = arith.constant 0 : index
    %c0_257 = arith.constant 0 : index
    %c0_258 = arith.constant 0 : index
    %458 = vector.load %arg12[%c0_256, %c0_257, %c0_258] : memref<2x16x128xf32, #tpu.memory_space<vmem>>, vector<2x16x128xf32>
    tpu.vector_store %arg12[%c0_256, %c0_257, %c0_258], %457 {strides = array<i32>} : memref<2x16x128xf32, #tpu.memory_space<vmem>>, vector<2x16x128xf32>,
    return
  }
}

</mosaic_0001>

<llo_original>
// kernel: resconvnet_forward.1
$region0: #{resconvnet_forward.1}
  #allocation0 [shape = 'u32[]', space=smem, size = 0x4, offset = 0x4, fixed_abs, tag = 'smem constant byte address 0x4 - core index']
  #allocation1 [shape = 'u32[144,128]{1,0:T(1,128)}', space=vmem, size = 0x12000, scoped, tag = 'internal scratch']
  #allocation2 [shape = 'bf16[2,48,128]{2,1,0:T(8,128)(2,1)}', space=vmem, size = 0x6000, scoped, tag = 'scratch operand']
  %s0 = inlined_call_operand.vmem [shape: f32[2,16,128], index: 0, kind: input, shape index: {}]
  %s1 = inlined_call_operand.vmem [shape: bf16[384,128], index: 1, kind: input, shape index: {}]
  %s2 = inlined_call_operand.vmem [shape: bf16[384,128], index: 2, kind: input, shape index: {}]
  %s3 = inlined_call_operand.vmem [shape: bf16[384,128], index: 3, kind: input, shape index: {}]
  %s4 = inlined_call_operand.vmem [shape: bf16[128,128], index: 4, kind: input, shape index: {}]
  %s5 = inlined_call_operand.vmem [shape: bf16[384,128], index: 5, kind: input, shape index: {}]
  %s6 = inlined_call_operand.vmem [shape: bf16[384,128], index: 6, kind: input, shape index: {}]
  %s7 = inlined_call_operand.vmem [shape: bf16[384,128], index: 7, kind: input, shape index: {}]
  %s8 = inlined_call_operand.vmem [shape: bf16[384,128], index: 8, kind: input, shape index: {}]
  %s9 = inlined_call_operand.vmem [shape: bf16[384,128], index: 9, kind: input, shape index: {}]
  %s10 = inlined_call_operand.vmem [shape: bf16[384,128], index: 10, kind: input, shape index: {}]
  %s11 = inlined_call_operand.vmem [shape: bf16[128,128], index: 11, kind: input, shape index: {}]
  %s12 = inlined_call_operand.vmem [shape: f32[2,16,128], index: 12, kind: output, shape index: {}]
  %s13 = sld [smem:[#allocation0]]
  $region58: #{resconvnet_forward.1} parent=0
    _
  %s15 = ssub.s32 1, %s13
  %s16 = scalar_select 0, %s15, %s13
  // Predicated region
  $region2: #{resconvnet_forward.1} parent=0 // pred_check
    _
  $region3: #{resconvnet_forward.1} parent=0 // pred_check_branch
    %18 = sbr.rel (0) target = $region5
  $region4: #{resconvnet_forward.1} parent=0 // pred_region
    _
  $region5: #{resconvnet_forward.1} parent=0 // pred_fallthru
    _
  // Predicated region
  $region6: #{resconvnet_forward.1} parent=0 // pred_check
    _
  $region7: #{resconvnet_forward.1} parent=0 // pred_check_branch
    %20 = sbr.rel (0) target = $region9
  $region8: #{resconvnet_forward.1} parent=0 // pred_region
    _
  $region9: #{resconvnet_forward.1} parent=0 // pred_fallthru
    _
  // Predicated region
  $region10: #{resconvnet_forward.1} parent=0 // pred_check
    _
  $region11: #{resconvnet_forward.1} parent=0 // pred_check_branch
    %22 = sbr.rel (0) target = $region13
  $region12: #{resconvnet_forward.1} parent=0 // pred_region
    _
  $region13: #{resconvnet_forward.1} parent=0 // pred_fallthru
    _
  // Predicated region
  $region14: #{resconvnet_forward.1} parent=0 // pred_check
    _
  $region15: #{resconvnet_forward.1} parent=0 // pred_check_branch
    %24 = sbr.rel (0) target = $region17
  $region16: #{resconvnet_forward.1} parent=0 // pred_region
    _
  $region17: #{resconvnet_forward.1} parent=0 // pred_fallthru
    _
  // Predicated region
  $region18: #{resconvnet_forward.1} parent=0 // pred_check
    _
  $region19: #{resconvnet_forward.1} parent=0 // pred_check_branch
    %26 = sbr.rel (0) target = $region21
  $region20: #{resconvnet_forward.1} parent=0 // pred_region
    _
  $region21: #{resconvnet_forward.1} parent=0 // pred_fallthru
    _
  // Predicated region
  $region22: #{resconvnet_forward.1} parent=0 // pred_check
    _
  $region23: #{resconvnet_forward.1} parent=0 // pred_check_branch
    %28 = sbr.rel (0) target = $region25
  $region24: #{resconvnet_forward.1} parent=0 // pred_region
    _
  $region25: #{resconvnet_forward.1} parent=0 // pred_fallthru
    _
  // Predicated region
  $region26: #{resconvnet_forward.1} parent=0 // pred_check
    _
  $region27: #{resconvnet_forward.1} parent=0 // pred_check_branch
    %30 = sbr.rel (0) target = $region29
  $region28: #{resconvnet_forward.1} parent=0 // pred_region
    _
  $region29: #{resconvnet_forward.1} parent=0 // pred_fallthru
    _
  // Predicated region
  $region30: #{resconvnet_forward.1} parent=0 // pred_check
    _
  $region31: #{resconvnet_forward.1} parent=0 // pred_check_branch
    %32 = sbr.rel (0) target = $region33
  $region32: #{resconvnet_forward.1} parent=0 // pred_region
    _
  $region33: #{resconvnet_forward.1} parent=0 // pred_fallthru
    _
  // Predicated region
  $region34: #{resconvnet_forward.1} parent=0 // pred_check
    _
  $region35: #{resconvnet_forward.1} parent=0 // pred_check_branch
    %34 = sbr.rel (0) target = $region37
  $region36: #{resconvnet_forward.1} parent=0 // pred_region
    _
  $region37: #{resconvnet_forward.1} parent=0 // pred_fallthru
    _
  // Predicated region
  $region38: #{resconvnet_forward.1} parent=0 // pred_check
    _
  $region39: #{resconvnet_forward.1} parent=0 // pred_check_branch
    %36 = sbr.rel (0) target = $region41
  $region40: #{resconvnet_forward.1} parent=0 // pred_region
    _
  $region41: #{resconvnet_forward.1} parent=0 // pred_fallthru
    _
  // Predicated region
  $region42: #{resconvnet_forward.1} parent=0 // pred_check
    _
  $region43: #{resconvnet_forward.1} parent=0 // pred_check_branch
    %38 = sbr.rel (0) target = $region45
  $region44: #{resconvnet_forward.1} parent=0 // pred_region
    _
  $region45: #{resconvnet_forward.1} parent=0 // pred_fallthru
    _
  // Predicated region
  $region46: #{resconvnet_forward.1} parent=0 // pred_check
    _
  $region47: #{resconvnet_forward.1} parent=0 // pred_check_branch
    %40 = sbr.rel (0) target = $region49
  $region48: #{resconvnet_forward.1} parent=0 // pred_region
    _
  $region49: #{resconvnet_forward.1} parent=0 // pred_fallthru
    _
  %42 = vst [vmem:[#allocation2] sm:$0xf] 0
  %43 = vst [vmem:[#allocation2 + $0x4] sm:$0xf] 0
  %44 = vst [vmem:[#allocation2 + $0x18] sm:$0xf] 0
  %45 = vst [vmem:[#allocation2 + $0x1c] sm:$0xf] 0
  %46 = vst [vmem:[#allocation2 + $0x10] sm:$0xf] 0
  %47 = vst [vmem:[#allocation2 + $0x14] sm:$0xf] 0
  %48 = vst [vmem:[#allocation2 + $0x28] sm:$0xf] 0
  %49 = vst [vmem:[#allocation2 + $0x2c] sm:$0xf] 0
  %v50 = vld [vmem:[%s0] sm:$0xff]
  %v51 = vld [vmem:[%s0 + $0x8] sm:$0xff]
  %v52 = vld [vmem:[%s0 + $0x10] sm:$0xff]
  %v53 = vld [vmem:[%s0 + $0x18] sm:$0xff]
  %v54 = vld [vmem:[%s1] sm:$0xf]
  %v55 = vld [vmem:[%s1 + $0x4] sm:$0xf]
  %v56 = vld [vmem:[%s1 + $0x8] sm:$0xf]
  %v57 = vld [vmem:[%s1 + $0xc] sm:$0xf]
  %v58 = vld [vmem:[%s1 + $0x10] sm:$0xf]
  %v59 = vld [vmem:[%s1 + $0x14] sm:$0xf]
  %v60 = vld [vmem:[%s1 + $0x18] sm:$0xf]
  %v61 = vld [vmem:[%s1 + $0x1c] sm:$0xf]
  %v62 = vld [vmem:[%s1 + $0x20] sm:$0xf]
  %v63 = vld [vmem:[%s1 + $0x24] sm:$0xf]
  %v64 = vld [vmem:[%s1 + $0x28] sm:$0xf]
  %v65 = vld [vmem:[%s1 + $0x2c] sm:$0xf]
  %v66 = vld [vmem:[%s1 + $0x30] sm:$0xf]
  %v67 = vld [vmem:[%s1 + $0x34] sm:$0xf]
  %v68 = vld [vmem:[%s1 + $0x38] sm:$0xf]
  %v69 = vld [vmem:[%s1 + $0x3c] sm:$0xf]
  %v70 = vld [vmem:[%s1 + $0x40] sm:$0xf]
  %v71 = vld [vmem:[%s1 + $0x44] sm:$0xf]
  %v72 = vld [vmem:[%s1 + $0x48] sm:$0xf]
  %v73 = vld [vmem:[%s1 + $0x4c] sm:$0xf]
  %v74 = vld [vmem:[%s1 + $0x50] sm:$0xf]
  %v75 = vld [vmem:[%s1 + $0x54] sm:$0xf]
  %v76 = vld [vmem:[%s1 + $0x58] sm:$0xf]
  %v77 = vld [vmem:[%s1 + $0x5c] sm:$0xf]
  %v78 = vld [vmem:[%s1 + $0x60] sm:$0xf]
  %v79 = vld [vmem:[%s1 + $0x64] sm:$0xf]
  %v80 = vld [vmem:[%s1 + $0x68] sm:$0xf]
  %v81 = vld [vmem:[%s1 + $0x6c] sm:$0xf]
  %v82 = vld [vmem:[%s1 + $0x70] sm:$0xf]
  %v83 = vld [vmem:[%s1 + $0x74] sm:$0xf]
  %v84 = vld [vmem:[%s1 + $0x78] sm:$0xf]
  %v85 = vld [vmem:[%s1 + $0x7c] sm:$0xf]
  %v86 = vld [vmem:[%s1 + $0x80] sm:$0xf]
  %v87 = vld [vmem:[%s1 + $0x84] sm:$0xf]
  %v88 = vld [vmem:[%s1 + $0x88] sm:$0xf]
  %v89 = vld [vmem:[%s1 + $0x8c] sm:$0xf]
  %v90 = vld [vmem:[%s1 + $0x90] sm:$0xf]
  %v91 = vld [vmem:[%s1 + $0x94] sm:$0xf]
  %v92 = vld [vmem:[%s1 + $0x98] sm:$0xf]
  %v93 = vld [vmem:[%s1 + $0x9c] sm:$0xf]
  %v94 = vld [vmem:[%s1 + $0xa0] sm:$0xf]
  %v95 = vld [vmem:[%s1 + $0xa4] sm:$0xf]
  %v96 = vld [vmem:[%s1 + $0xa8] sm:$0xf]
  %v97 = vld [vmem:[%s1 + $0xac] sm:$0xf]
  %v98 = vld [vmem:[%s1 + $0xb0] sm:$0xf]
  %v99 = vld [vmem:[%s1 + $0xb4] sm:$0xf]
  %v100 = vld [vmem:[%s1 + $0xb8] sm:$0xf]
  %v101 = vld [vmem:[%s1 + $0xbc] sm:$0xf]
  %v102 = vld [vmem:[%s2] sm:$0xf]
  %v103 = vld [vmem:[%s2 + $0x4] sm:$0xf]
  %v104 = vld [vmem:[%s2 + $0x8] sm:$0xf]
  %v105 = vld [vmem:[%s2 + $0xc] sm:$0xf]
  %v106 = vld [vmem:[%s2 + $0x10] sm:$0xf]
  %v107 = vld [vmem:[%s2 + $0x14] sm:$0xf]
  %v108 = vld [vmem:[%s2 + $0x18] sm:$0xf]
  %v109 = vld [vmem:[%s2 + $0x1c] sm:$0xf]
  %v110 = vld [vmem:[%s2 + $0x20] sm:$0xf]
  %v111 = vld [vmem:[%s2 + $0x24] sm:$0xf]
  %v112 = vld [vmem:[%s2 + $0x28] sm:$0xf]
  %v113 = vld [vmem:[%s2 + $0x2c] sm:$0xf]
  %v114 = vld [vmem:[%s2 + $0x30] sm:$0xf]
  %v115 = vld [vmem:[%s2 + $0x34] sm:$0xf]
  %v116 = vld [vmem:[%s2 + $0x38] sm:$0xf]
  %v117 = vld [vmem:[%s2 + $0x3c] sm:$0xf]
  %v118 = vld [vmem:[%s2 + $0x40] sm:$0xf]
  %v119 = vld [vmem:[%s2 + $0x44] sm:$0xf]
  %v120 = vld [vmem:[%s2 + $0x48] sm:$0xf]
  %v121 = vld [vmem:[%s2 + $0x4c] sm:$0xf]
  %v122 = vld [vmem:[%s2 + $0x50] sm:$0xf]
  %v123 = vld [vmem:[%s2 + $0x54] sm:$0xf]
  %v124 = vld [vmem:[%s2 + $0x58] sm:$0xf]
  %v125 = vld [vmem:[%s2 + $0x5c] sm:$0xf]
  %v126 = vld [vmem:[%s2 + $0x60] sm:$0xf]
  %v127 = vld [vmem:[%s2 + $0x64] sm:$0xf]
  %v128 = vld [vmem:[%s2 + $0x68] sm:$0xf]
  %v129 = vld [vmem:[%s2 + $0x6c] sm:$0xf]
  %v130 = vld [vmem:[%s2 + $0x70] sm:$0xf]
  %v131 = vld [vmem:[%s2 + $0x74] sm:$0xf]
  %v132 = vld [vmem:[%s2 + $0x78] sm:$0xf]
  %v133 = vld [vmem:[%s2 + $0x7c] sm:$0xf]
  %v134 = vld [vmem:[%s2 + $0x80] sm:$0xf]
  %v135 = vld [vmem:[%s2 + $0x84] sm:$0xf]
  %v136 = vld [vmem:[%s2 + $0x88] sm:$0xf]
  %v137 = vld [vmem:[%s2 + $0x8c] sm:$0xf]
  %v138 = vld [vmem:[%s2 + $0x90] sm:$0xf]
  %v139 = vld [vmem:[%s2 + $0x94] sm:$0xf]
  %v140 = vld [vmem:[%s2 + $0x98] sm:$0xf]
  %v141 = vld [vmem:[%s2 + $0x9c] sm:$0xf]
  %v142 = vld [vmem:[%s2 + $0xa0] sm:$0xf]
  %v143 = vld [vmem:[%s2 + $0xa4] sm:$0xf]
  %v144 = vld [vmem:[%s2 + $0xa8] sm:$0xf]
  %v145 = vld [vmem:[%s2 + $0xac] sm:$0xf]
  %v146 = vld [vmem:[%s2 + $0xb0] sm:$0xf]
  %v147 = vld [vmem:[%s2 + $0xb4] sm:$0xf]
  %v148 = vld [vmem:[%s2 + $0xb8] sm:$0xf]
  %v149 = vld [vmem:[%s2 + $0xbc] sm:$0xf]
  %v150 = vld [vmem:[%s3] sm:$0xf]
  %v151 = vld [vmem:[%s3 + $0x4] sm:$0xf]
  %v152 = vld [vmem:[%s3 + $0x8] sm:$0xf]
  %v153 = vld [vmem:[%s3 + $0xc] sm:$0xf]
  %v154 = vld [vmem:[%s3 + $0x10] sm:$0xf]
  %v155 = vld [vmem:[%s3 + $0x14] sm:$0xf]
  %v156 = vld [vmem:[%s3 + $0x18] sm:$0xf]
  %v157 = vld [vmem:[%s3 + $0x1c] sm:$0xf]
  %v158 = vld [vmem:[%s3 + $0x20] sm:$0xf]
  %v159 = vld [vmem:[%s3 + $0x24] sm:$0xf]
  %v160 = vld [vmem:[%s3 + $0x28] sm:$0xf]
  %v161 = vld [vmem:[%s3 + $0x2c] sm:$0xf]
  %v162 = vld [vmem:[%s3 + $0x30] sm:$0xf]
  %v163 = vld [vmem:[%s3 + $0x34] sm:$0xf]
  %v164 = vld [vmem:[%s3 + $0x38] sm:$0xf]
  %v165 = vld [vmem:[%s3 + $0x3c] sm:$0xf]
  %v166 = vld [vmem:[%s3 + $0x40] sm:$0xf]
  %v167 = vld [vmem:[%s3 + $0x44] sm:$0xf]
  %v168 = vld [vmem:[%s3 + $0x48] sm:$0xf]
  %v169 = vld [vmem:[%s3 + $0x4c] sm:$0xf]
  %v170 = vld [vmem:[%s3 + $0x50] sm:$0xf]
  %v171 = vld [vmem:[%s3 + $0x54] sm:$0xf]
  %v172 = vld [vmem:[%s3 + $0x58] sm:$0xf]
  %v173 = vld [vmem:[%s3 + $0x5c] sm:$0xf]
  %v174 = vld [vmem:[%s3 + $0x60] sm:$0xf]
  %v175 = vld [vmem:[%s3 + $0x64] sm:$0xf]
  %v176 = vld [vmem:[%s3 + $0x68] sm:$0xf]
  %v177 = vld [vmem:[%s3 + $0x6c] sm:$0xf]
  %v178 = vld [vmem:[%s3 + $0x70] sm:$0xf]
  %v179 = vld [vmem:[%s3 + $0x74] sm:$0xf]
  %v180 = vld [vmem:[%s3 + $0x78] sm:$0xf]
  %v181 = vld [vmem:[%s3 + $0x7c] sm:$0xf]
  %v182 = vld [vmem:[%s3 + $0x80] sm:$0xf]
  %v183 = vld [vmem:[%s3 + $0x84] sm:$0xf]
  %v184 = vld [vmem:[%s3 + $0x88] sm:$0xf]
  %v185 = vld [vmem:[%s3 + $0x8c] sm:$0xf]
  %v186 = vld [vmem:[%s3 + $0x90] sm:$0xf]
  %v187 = vld [vmem:[%s3 + $0x94] sm:$0xf]
  %v188 = vld [vmem:[%s3 + $0x98] sm:$0xf]
  %v189 = vld [vmem:[%s3 + $0x9c] sm:$0xf]
  %v190 = vld [vmem:[%s3 + $0xa0] sm:$0xf]
  %v191 = vld [vmem:[%s3 + $0xa4] sm:$0xf]
  %v192 = vld [vmem:[%s3 + $0xa8] sm:$0xf]
  %v193 = vld [vmem:[%s3 + $0xac] sm:$0xf]
  %v194 = vld [vmem:[%s3 + $0xb0] sm:$0xf]
  %v195 = vld [vmem:[%s3 + $0xb4] sm:$0xf]
  %v196 = vld [vmem:[%s3 + $0xb8] sm:$0xf]
  %v197 = vld [vmem:[%s3 + $0xbc] sm:$0xf]
  %v198 = vpack.c.bf16 %v51, %v50
  %v199 = vpack.c.bf16 %v53, %v52
  %v202 = vunpack.c.l.b16 %v198
  %v203 = vunpack.c.h.b16 %v198
  %v204 = vunpack.c.l.b16 %v199
  %v205 = vunpack.c.h.b16 %v199
  %v206 = vpack.c.b16 %v202, %v202
  %v207 = vpack.c.b16 %v203, %v203
  %v208 = vpack.c.b16 %v204, %v204
  %v209 = vpack.c.b16 %v205, %v205
  %214 = vst [vmem:[#allocation2 + $0x8] sm:$0xf] %v206
  %215 = vst [vmem:[#allocation2 + $0xc] sm:$0xf] %v207
  %216 = vst [vmem:[#allocation2 + $0x20] sm:$0xf] %v208
  %217 = vst [vmem:[#allocation2 + $0x24] sm:$0xf] %v209
  %v218 = vld [vmem:[#allocation2 + $0x4] sm:$0x8]
  %v219 = vld [vmem:[#allocation2 + $0x8] sm:$0xf]
  %v220 = vld [vmem:[#allocation2 + $0xc] sm:$0xf]
  %v221 = vld [vmem:[#allocation2 + $0x1c] sm:$0x8]
  %v222 = vld [vmem:[#allocation2 + $0x20] sm:$0xf]
  %v223 = vld [vmem:[#allocation2 + $0x24] sm:$0xf]
  %v224 = vld [vmem:[#allocation2 + $0x10] sm:$0x1]
  %v225 = vld [vmem:[#allocation2 + $0x28] sm:$0x1]
  %v232 = vunpack.c.l.b16 %v218
  %v233 = vunpack.c.l.b16 %v219
  %v234 = vunpack.c.l.b16 %v220
  %v235 = vunpack.c.l.b16 %v221
  %v236 = vunpack.c.l.b16 %v222
  %v237 = vunpack.c.l.b16 %v223
  %v238 = vpack.c.b16 %v233, %v232
  %v239 = vpack.c.b16 %v234, %v234
  %v240 = vpack.c.b16 %v236, %v235
  %v241 = vpack.c.b16 %v237, %v237
  %v242 = vpack.c.b16 %v234, %v233
  %v243 = vpack.c.b16 %v237, %v236
  %v245 = vshrl.u32 %v242, 16
  %v247 = vrot.slane %v245, 4
  %v248 = vshll.u32 %v242, 16
  %v250 = vrot.slane %v248, 5
  %v251 = vor.u32 %v247, %v250
  %v253 = vshrl.u32 %v243, 16
  %v255 = vrot.slane %v253, 4
  %v256 = vshll.u32 %v243, 16
  %v258 = vrot.slane %v256, 5
  %v259 = vor.u32 %v255, %v258
  %v262 = vunpack.c.l.b16 %v224
  %v263 = vunpack.c.l.b16 %v225
  %v264 = vpack.c.b16 %v262, %v262
  %v265 = vpack.c.b16 %v263, %v263
  %vm266 = vcmask 1042432
  %v267 = vrot.slane %v242, 5
  %v268 = vrot.slane %v264, 5
  %v269 = vsel %vm266, %v267, %v268
  %v270 = vrot.slane %v243, 5
  %v271 = vrot.slane %v265, 5
  %v272 = vsel %vm266, %v270, %v271
  %vm273 = vsmask.f32 4352
  %v275 = vshrl.u32 %v238, 16
  %v277 = vrot.slane %v275, 3
  %v278 = vshll.u32 %v238, 16
  %v280 = vrot.slane %v278, 4
  %v281 = vor.u32 %v277, %v280
  %v283 = vshrl.u32 %v239, 16
  %v285 = vrot.slane %v283, 3
  %v286 = vshll.u32 %v239, 16
  %v288 = vrot.slane %v286, 4
  %v289 = vor.u32 %v285, %v288
  %v290 = vsel %vm273, %v281, %v289
  %v292 = vshrl.u32 %v251, 16
  %v294 = vrot.slane %v292, 3
  %v295 = vshll.u32 %v251, 16
  %v297 = vrot.slane %v295, 4
  %v298 = vor.u32 %v294, %v297
  %v299 = vsel %vm273, %v298, %v298
  %v301 = vshrl.u32 %v267, 16
  %v303 = vrot.slane %v301, 3
  %v304 = vshll.u32 %v267, 16
  %v306 = vrot.slane %v304, 4
  %v307 = vor.u32 %v303, %v306
  %v309 = vshrl.u32 %v269, 16
  %v311 = vrot.slane %v309, 3
  %v312 = vshll.u32 %v269, 16
  %v314 = vrot.slane %v312, 4
  %v315 = vor.u32 %v311, %v314
  %v316 = vsel %vm273, %v307, %v315
  %v318 = vshrl.u32 %v240, 16
  %v320 = vrot.slane %v318, 3
  %v321 = vshll.u32 %v240, 16
  %v323 = vrot.slane %v321, 4
  %v324 = vor.u32 %v320, %v323
  %v326 = vshrl.u32 %v241, 16
  %v328 = vrot.slane %v326, 3
  %v329 = vshll.u32 %v241, 16
  %v331 = vrot.slane %v329, 4
  %v332 = vor.u32 %v328, %v331
  %v333 = vsel %vm273, %v324, %v332
  %v335 = vshrl.u32 %v259, 16
  %v337 = vrot.slane %v335, 3
  %v338 = vshll.u32 %v259, 16
  %v340 = vrot.slane %v338, 4
  %v341 = vor.u32 %v337, %v340
  %v342 = vsel %vm273, %v341, %v341
  %v344 = vshrl.u32 %v270, 16
  %v346 = vrot.slane %v344, 3
  %v347 = vshll.u32 %v270, 16
  %v349 = vrot.slane %v347, 4
  %v350 = vor.u32 %v346, %v349
  %v352 = vshrl.u32 %v272, 16
  %v354 = vrot.slane %v352, 3
  %v355 = vshll.u32 %v272, 16
  %v357 = vrot.slane %v355, 4
  %v358 = vor.u32 %v354, %v357
  %v359 = vsel %vm273, %v350, %v358
  %v414 = vunpack.c.l.b16 %v54
  %v415 = vunpack.c.l.b16 %v55
  %v416 = vunpack.c.l.b16 %v56
  %v417 = vunpack.c.l.b16 %v57
  %v418 = vunpack.c.l.b16 %v58
  %v419 = vunpack.c.l.b16 %v59
  %v420 = vunpack.c.l.b16 %v60
  %v421 = vunpack.c.l.b16 %v61
  %v422 = vunpack.c.l.b16 %v62
  %v423 = vunpack.c.l.b16 %v63
  %v424 = vunpack.c.l.b16 %v64
  %v425 = vunpack.c.l.b16 %v65
  %v426 = vunpack.c.l.b16 %v66
  %v427 = vunpack.c.l.b16 %v67
  %v428 = vunpack.c.l.b16 %v68
  %v429 = vunpack.c.l.b16 %v69
  %v430 = vunpack.c.l.b16 %v70
  %v431 = vunpack.c.l.b16 %v71
  %v432 = vunpack.c.l.b16 %v72
  %v433 = vunpack.c.l.b16 %v73
  %v434 = vunpack.c.l.b16 %v74
  %v435 = vunpack.c.l.b16 %v75
  %v436 = vunpack.c.l.b16 %v76
  %v437 = vunpack.c.l.b16 %v77
  %v438 = vunpack.c.l.b16 %v78
  %v439 = vunpack.c.l.b16 %v79
  %v440 = vunpack.c.l.b16 %v80
  %v441 = vunpack.c.l.b16 %v81
  %v442 = vunpack.c.l.b16 %v82
  %v443 = vunpack.c.l.b16 %v83
  %v444 = vunpack.c.l.b16 %v84
  %v445 = vunpack.c.l.b16 %v85
  %v446 = vunpack.c.l.b16 %v86
  %v447 = vunpack.c.l.b16 %v87
  %v448 = vunpack.c.l.b16 %v88
  %v449 = vunpack.c.l.b16 %v89
  %v450 = vunpack.c.l.b16 %v90
  %v451 = vunpack.c.l.b16 %v91
  %v452 = vunpack.c.l.b16 %v92
  %v453 = vunpack.c.l.b16 %v93
  %v454 = vunpack.c.l.b16 %v94
  %v455 = vunpack.c.l.b16 %v95
  %v456 = vunpack.c.l.b16 %v96
  %v457 = vunpack.c.l.b16 %v97
  %v458 = vunpack.c.l.b16 %v98
  %v459 = vunpack.c.l.b16 %v99
  %v460 = vunpack.c.l.b16 %v100
  %v461 = vunpack.c.l.b16 %v101
  %v462 = vpack.c.b16 %v415, %v414
  %v463 = vpack.c.b16 %v417, %v416
  %v464 = vpack.c.b16 %v419, %v418
  %v465 = vpack.c.b16 %v421, %v420
  %v466 = vpack.c.b16 %v423, %v422
  %v467 = vpack.c.b16 %v425, %v424
  %v468 = vpack.c.b16 %v427, %v426
  %v469 = vpack.c.b16 %v429, %v428
  %v470 = vpack.c.b16 %v431, %v430
  %v471 = vpack.c.b16 %v433, %v432
  %v472 = vpack.c.b16 %v435, %v434
  %v473 = vpack.c.b16 %v437, %v436
  %v474 = vpack.c.b16 %v439, %v438
  %v475 = vpack.c.b16 %v441, %v440
  %v476 = vpack.c.b16 %v443, %v442
  %v477 = vpack.c.b16 %v445, %v444
  %v478 = vpack.c.b16 %v447, %v446
  %v479 = vpack.c.b16 %v449, %v448
  %v480 = vpack.c.b16 %v451, %v450
  %v481 = vpack.c.b16 %v453, %v452
  %v482 = vpack.c.b16 %v455, %v454
  %v483 = vpack.c.b16 %v457, %v456
  %v484 = vpack.c.b16 %v459, %v458
  %v485 = vpack.c.b16 %v461, %v460
  %510 = vmatprep.subr.bf16.mxu0 0
  %511 = vmatpush1.bf16.msra.mxu0 %v469
  %512 = vmatprep.subr.bf16.mxu0 0
  %513 = vmatpush1.bf16.msra.mxu0 %v468
  %514 = vmatprep.subr.bf16.mxu0 0
  %515 = vmatpush1.bf16.msra.mxu0 %v467
  %516 = vmatprep.subr.bf16.mxu0 0
  %517 = vmatpush1.bf16.msra.mxu0 %v466
  %518 = vmatprep.subr.bf16.mxu0 0
  %519 = vmatpush1.bf16.msra.mxu0 %v465
  %520 = vmatprep.subr.bf16.mxu0 0
  %521 = vmatpush1.bf16.msra.mxu0 %v464
  %522 = vmatprep.subr.bf16.mxu0 0
  %523 = vmatpush1.bf16.msra.mxu0 %v463
  %524 = vmatprep.subr.bf16.mxu0 0
  %525 = vmatpush1.bf16.msra.mxu0 %v462
  %526 = vmatprep.subr.bf16.mxu0 0
  %527 = vmatpush2.bf16.msra.mxu0 %v477
  %528 = vmatprep.subr.bf16.mxu0 0
  %529 = vmatpush2.bf16.msra.mxu0 %v476
  %530 = vmatprep.subr.bf16.mxu0 0
  %531 = vmatpush2.bf16.msra.mxu0 %v475
  %532 = vmatprep.subr.bf16.mxu0 0
  %533 = vmatpush2.bf16.msra.mxu0 %v474
  %534 = vmatprep.subr.bf16.mxu0 0
  %535 = vmatpush2.bf16.msra.mxu0 %v473
  %536 = vmatprep.subr.bf16.mxu0 0
  %537 = vmatpush2.bf16.msra.mxu0 %v472
  %538 = vmatprep.subr.bf16.mxu0 0
  %539 = vmatpush2.bf16.msra.mxu0 %v471
  %540 = vmatprep.subr.bf16.mxu0 0
  %541 = vmatpush2.bf16.msra.mxu0 %v470
  %542 = vmatprep.mubr.bf16.mxu0 %v299
  %543 = vmatmul.mubr.bf16.gmra.mxu0 %v290
  %v544 = vpop.f32.mrf.mxu0
  %v545 = vadd.f32 0.0, %v544
  %v546 = vpop.f32.mrf.mxu0
  %v547 = vpop.f32.mrf.mxu0
  %v548 = vadd.f32 0.0, %v547
  %v549 = vpop.f32.mrf.mxu0
  %550 = vmatprep.mubr.bf16.mxu0 %v342
  %551 = vmatmul.mubr.bf16.gmra.mxu0 %v333
  %v552 = vpop.f32.mrf.mxu0
  %v553 = vadd.f32 0.0, %v552
  %v554 = vpop.f32.mrf.mxu0
  %v555 = vpop.f32.mrf.mxu0
  %v556 = vadd.f32 0.0, %v555
  %v557 = vpop.f32.mrf.mxu0
  %558 = vdwg.mxu0
  %559 = vmatprep.subr.bf16.mxu0 0
  %560 = vmatpush1.bf16.msra.mxu0 %v485
  %561 = vmatprep.subr.bf16.mxu0 0
  %562 = vmatpush1.bf16.msra.mxu0 %v484
  %563 = vmatprep.subr.bf16.mxu0 0
  %564 = vmatpush1.bf16.msra.mxu0 %v483
  %565 = vmatprep.subr.bf16.mxu0 0
  %566 = vmatpush1.bf16.msra.mxu0 %v482
  %567 = vmatprep.subr.bf16.mxu0 0
  %568 = vmatpush1.bf16.msra.mxu0 %v481
  %569 = vmatprep.subr.bf16.mxu0 0
  %570 = vmatpush1.bf16.msra.mxu0 %v480
  %571 = vmatprep.subr.bf16.mxu0 0
  %572 = vmatpush1.bf16.msra.mxu0 %v479
  %573 = vmatprep.subr.bf16.mxu0 0
  %574 = vmatpush1.bf16.msra.mxu0 %v478
  %575 = vmatprep.subr.bf16.mxu0 0
  %576 = vmatpush2.bf16.msra.mxu0 0
  %577 = vmatprep.subr.bf16.mxu0 0
  %578 = vmatpush2.bf16.msra.mxu0 0
  %579 = vmatprep.subr.bf16.mxu0 0
  %580 = vmatpush2.bf16.msra.mxu0 0
  %581 = vmatprep.subr.bf16.mxu0 0
  %582 = vmatpush2.bf16.msra.mxu0 0
  %583 = vmatprep.subr.bf16.mxu0 0
  %584 = vmatpush2.bf16.msra.mxu0 0
  %585 = vmatprep.subr.bf16.mxu0 0
  %586 = vmatpush2.bf16.msra.mxu0 0
  %587 = vmatprep.subr.bf16.mxu0 0
  %588 = vmatpush2.bf16.msra.mxu0 0
  %589 = vmatprep.subr.bf16.mxu0 0
  %590 = vmatpush2.bf16.msra.mxu0 0
  %591 = vmatprep.mubr.bf16.mxu0 0
  %592 = vmatmul.mubr.bf16.gmra.mxu0 %v316
  %v593 = vpop.f32.mrf.mxu0
  %v594 = vadd.f32 %v545, %v593
  %v595 = vpop.f32.mrf.mxu0
  %v596 = vpop.f32.mrf.mxu0
  %v597 = vadd.f32 %v548, %v596
  %v598 = vpop.f32.mrf.mxu0
  %599 = vmatprep.mubr.bf16.mxu0 0
  %600 = vmatmul.mubr.bf16.gmra.mxu0 %v359
  %v601 = vpop.f32.mrf.mxu0
  %v602 = vadd.f32 %v553, %v601
  %v603 = vpop.f32.mrf.mxu0
  %v604 = vpop.f32.mrf.mxu0
  %v605 = vadd.f32 %v556, %v604
  %v606 = vpop.f32.mrf.mxu0
  %607 = vdwg.mxu0
  %v608 = vld [vmem:[%s4] sm:$0xf]
  %v609 = vld [vmem:[%s4 + $0x4] sm:$0xf]
  %v610 = vld [vmem:[%s4 + $0x8] sm:$0xf]
  %v611 = vld [vmem:[%s4 + $0xc] sm:$0xf]
  %v612 = vld [vmem:[%s4 + $0x10] sm:$0xf]
  %v613 = vld [vmem:[%s4 + $0x14] sm:$0xf]
  %v614 = vld [vmem:[%s4 + $0x18] sm:$0xf]
  %v615 = vld [vmem:[%s4 + $0x1c] sm:$0xf]
  %v616 = vld [vmem:[%s4 + $0x20] sm:$0xf]
  %v617 = vld [vmem:[%s4 + $0x24] sm:$0xf]
  %v618 = vld [vmem:[%s4 + $0x28] sm:$0xf]
  %v619 = vld [vmem:[%s4 + $0x2c] sm:$0xf]
  %v620 = vld [vmem:[%s4 + $0x30] sm:$0xf]
  %v621 = vld [vmem:[%s4 + $0x34] sm:$0xf]
  %v622 = vld [vmem:[%s4 + $0x38] sm:$0xf]
  %v623 = vld [vmem:[%s4 + $0x3c] sm:$0xf]
  %v642 = vunpack.c.l.b16 %v608
  %v643 = vunpack.c.l.b16 %v609
  %v644 = vunpack.c.l.b16 %v610
  %v645 = vunpack.c.l.b16 %v611
  %v646 = vunpack.c.l.b16 %v612
  %v647 = vunpack.c.l.b16 %v613
  %v648 = vunpack.c.l.b16 %v614
  %v649 = vunpack.c.l.b16 %v615
  %v650 = vunpack.c.l.b16 %v616
  %v651 = vunpack.c.l.b16 %v617
  %v652 = vunpack.c.l.b16 %v618
  %v653 = vunpack.c.l.b16 %v619
  %v654 = vunpack.c.l.b16 %v620
  %v655 = vunpack.c.l.b16 %v621
  %v656 = vunpack.c.l.b16 %v622
  %v657 = vunpack.c.l.b16 %v623
  %v658 = vpack.c.b16 %v643, %v642
  %v659 = vpack.c.b16 %v645, %v644
  %v660 = vpack.c.b16 %v647, %v646
  %v661 = vpack.c.b16 %v649, %v648
  %v662 = vpack.c.b16 %v651, %v650
  %v663 = vpack.c.b16 %v653, %v652
  %v664 = vpack.c.b16 %v655, %v654
  %v665 = vpack.c.b16 %v657, %v656
  %674 = vmatprep.subr.bf16.mxu0 0
  %675 = vmatpush1.bf16.msra.mxu0 %v665
  %676 = vmatprep.subr.bf16.mxu0 0
  %677 = vmatpush1.bf16.msra.mxu0 %v664
  %678 = vmatprep.subr.bf16.mxu0 0
  %679 = vmatpush1.bf16.msra.mxu0 %v663
  %680 = vmatprep.subr.bf16.mxu0 0
  %681 = vmatpush1.bf16.msra.mxu0 %v662
  %682 = vmatprep.subr.bf16.mxu0 0
  %683 = vmatpush1.bf16.msra.mxu0 %v661
  %684 = vmatprep.subr.bf16.mxu0 0
  %685 = vmatpush1.bf16.msra.mxu0 %v660
  %686 = vmatprep.subr.bf16.mxu0 0
  %687 = vmatpush1.bf16.msra.mxu0 %v659
  %688 = vmatprep.subr.bf16.mxu0 0
  %689 = vmatpush1.bf16.msra.mxu0 %v658
  %690 = vmatprep.subr.bf16.mxu0 0
  %691 = vmatpush2.bf16.msra.mxu0 0
  %692 = vmatprep.subr.bf16.mxu0 0
  %693 = vmatpush2.bf16.msra.mxu0 0
  %694 = vmatprep.subr.bf16.mxu0 0
  %695 = vmatpush2.bf16.msra.mxu0 0
  %696 = vmatprep.subr.bf16.mxu0 0
  %697 = vmatpush2.bf16.msra.mxu0 0
  %698 = vmatprep.subr.bf16.mxu0 0
  %699 = vmatpush2.bf16.msra.mxu0 0
  %700 = vmatprep.subr.bf16.mxu0 0
  %701 = vmatpush2.bf16.msra.mxu0 0
  %702 = vmatprep.subr.bf16.mxu0 0
  %703 = vmatpush2.bf16.msra.mxu0 0
  %704 = vmatprep.subr.bf16.mxu0 0
  %705 = vmatpush2.bf16.msra.mxu0 0
  %706 = vmatprep.mubr.bf16.mxu0 0
  %707 = vmatmul.mubr.bf16.gmra.mxu0 %v242
  %v708 = vpop.f32.mrf.mxu0
  %v709 = vadd.f32 0.0, %v708
  %v710 = vpop.f32.mrf.mxu0
  %v711 = vpop.f32.mrf.mxu0
  %v712 = vadd.f32 0.0, %v711
  %v713 = vpop.f32.mrf.mxu0
  %714 = vmatprep.mubr.bf16.mxu0 0
  %715 = vmatmul.mubr.bf16.gmra.mxu0 %v243
  %v716 = vpop.f32.mrf.mxu0
  %v717 = vadd.f32 0.0, %v716
  %v718 = vpop.f32.mrf.mxu0
  %v719 = vpop.f32.mrf.mxu0
  %v720 = vadd.f32 0.0, %v719
  %v721 = vpop.f32.mrf.mxu0
  %722 = vdwg.mxu0
  %v723 = vadd.f32 %v594, %v597
  %v724 = vadd.f32 %v723, %v602
  %v725 = vadd.f32 %v724, %v605
  %v726 = vrot.slane %v725, 4
  %v727 = vadd.f32 %v725, %v726
  %v728 = vrot.slane %v727, 2
  %v729 = vadd.f32 %v727, %v728
  %v730 = vrot.slane %v729, 1
  %v731 = vadd.f32 %v729, %v730
  %v732 = vmul.f32 %v594, %v594
  %v733 = vmul.f32 %v597, %v597
  %v734 = vmul.f32 %v602, %v602
  %v735 = vmul.f32 %v605, %v605
  %v736 = vadd.f32 %v732, %v733
  %v737 = vadd.f32 %v736, %v734
  %v738 = vadd.f32 %v737, %v735
  %v739 = vrot.slane %v738, 4
  %v740 = vadd.f32 %v738, %v739
  %v741 = vrot.slane %v740, 2
  %v742 = vadd.f32 %v740, %v741
  %v743 = vrot.slane %v742, 1
  %v744 = vadd.f32 %v742, %v743
  %v745 = vmul.f32 %v731, 0.03125
  %v746 = vmul.f32 %v744, 0.03125
  %v747 = vmul.f32 %v745, %v745
  %v748 = vsub.f32 %v746, %v747
  %v749 = vmax.f32 %v748, 0.0
  %v750 = vadd.f32 %v749, 1e-05
  %v751 = vrsqrt.pop %v750
  %v752 = vmul.f32 %v745, %v751
  %v753 = vsub.f32 0.001, %v752
  %v754 = vmul.f32 %v594, %v751
  %v755 = vmul.f32 %v597, %v751
  %v756 = vmul.f32 %v602, %v751
  %v757 = vmul.f32 %v605, %v751
  %v758 = vadd.f32 %v754, %v753
  %v759 = vadd.f32 %v755, %v753
  %v760 = vadd.f32 %v756, %v753
  %v761 = vadd.f32 %v757, %v753
  %v762 = vmax.f32 %v758, 0.0
  %v763 = vmax.f32 %v759, 0.0
  %v764 = vmax.f32 %v760, 0.0
  %v765 = vmax.f32 %v761, 0.0
  %v766 = vpack.c.bf16 %v763, %v762
  %v767 = vpack.c.bf16 %v765, %v764
  %v770 = vunpack.c.l.b16 %v766
  %v771 = vunpack.c.h.b16 %v766
  %v772 = vunpack.c.l.b16 %v767
  %v773 = vunpack.c.h.b16 %v767
  %v774 = vpack.c.b16 %v770, %v770
  %v775 = vpack.c.b16 %v771, %v771
  %v776 = vpack.c.b16 %v772, %v772
  %v777 = vpack.c.b16 %v773, %v773
  %782 = vst [vmem:[#allocation2 + $0x8] sm:$0xf] %v774
  %783 = vst [vmem:[#allocation2 + $0xc] sm:$0xf] %v775
  %784 = vst [vmem:[#allocation2 + $0x20] sm:$0xf] %v776
  %785 = vst [vmem:[#allocation2 + $0x24] sm:$0xf] %v777
  %v786 = vld [vmem:[#allocation2 + $0x4] sm:$0x8]
  %v787 = vld [vmem:[#allocation2 + $0x8] sm:$0xf]
  %v788 = vld [vmem:[#allocation2 + $0xc] sm:$0xf]
  %v789 = vld [vmem:[#allocation2 + $0x1c] sm:$0x8]
  %v790 = vld [vmem:[#allocation2 + $0x20] sm:$0xf]
  %v791 = vld [vmem:[#allocation2 + $0x24] sm:$0xf]
  %v792 = vld [vmem:[#allocation2 + $0x10] sm:$0x1]
  %v793 = vld [vmem:[#allocation2 + $0x28] sm:$0x1]
  %v800 = vunpack.c.l.b16 %v786
  %v801 = vunpack.c.l.b16 %v787
  %v802 = vunpack.c.l.b16 %v788
  %v803 = vunpack.c.l.b16 %v789
  %v804 = vunpack.c.l.b16 %v790
  %v805 = vunpack.c.l.b16 %v791
  %v806 = vpack.c.b16 %v801, %v800
  %v807 = vpack.c.b16 %v802, %v802
  %v808 = vpack.c.b16 %v804, %v803
  %v809 = vpack.c.b16 %v805, %v805
  %v810 = vpack.c.b16 %v802, %v801
  %v811 = vpack.c.b16 %v805, %v804
  %v813 = vshrl.u32 %v810, 16
  %v815 = vrot.slane %v813, 4
  %v816 = vshll.u32 %v810, 16
  %v818 = vrot.slane %v816, 5
  %v819 = vor.u32 %v815, %v818
  %v821 = vshrl.u32 %v811, 16
  %v823 = vrot.slane %v821, 4
  %v824 = vshll.u32 %v811, 16
  %v826 = vrot.slane %v824, 5
  %v827 = vor.u32 %v823, %v826
  %v830 = vunpack.c.l.b16 %v792
  %v831 = vunpack.c.l.b16 %v793
  %v832 = vpack.c.b16 %v830, %v830
  %v833 = vpack.c.b16 %v831, %v831
  %v834 = vrot.slane %v810, 5
  %v835 = vrot.slane %v832, 5
  %v836 = vsel %vm266, %v834, %v835
  %v837 = vrot.slane %v811, 5
  %v838 = vrot.slane %v833, 5
  %v839 = vsel %vm266, %v837, %v838
  %v841 = vshrl.u32 %v806, 16
  %v843 = vrot.slane %v841, 3
  %v844 = vshll.u32 %v806, 16
  %v846 = vrot.slane %v844, 4
  %v847 = vor.u32 %v843, %v846
  %v849 = vshrl.u32 %v807, 16
  %v851 = vrot.slane %v849, 3
  %v852 = vshll.u32 %v807, 16
  %v854 = vrot.slane %v852, 4
  %v855 = vor.u32 %v851, %v854
  %v856 = vsel %vm273, %v847, %v855
  %v858 = vshrl.u32 %v819, 16
  %v860 = vrot.slane %v858, 3
  %v861 = vshll.u32 %v819, 16
  %v863 = vrot.slane %v861, 4
  %v864 = vor.u32 %v860, %v863
  %v865 = vsel %vm273, %v864, %v864
  %v867 = vshrl.u32 %v834, 16
  %v869 = vrot.slane %v867, 3
  %v870 = vshll.u32 %v834, 16
  %v872 = vrot.slane %v870, 4
  %v873 = vor.u32 %v869, %v872
  %v875 = vshrl.u32 %v836, 16
  %v877 = vrot.slane %v875, 3
  %v878 = vshll.u32 %v836, 16
  %v880 = vrot.slane %v878, 4
  %v881 = vor.u32 %v877, %v880
  %v882 = vsel %vm273, %v873, %v881
  %v884 = vshrl.u32 %v808, 16
  %v886 = vrot.slane %v884, 3
  %v887 = vshll.u32 %v808, 16
  %v889 = vrot.slane %v887, 4
  %v890 = vor.u32 %v886, %v889
  %v892 = vshrl.u32 %v809, 16
  %v894 = vrot.slane %v892, 3
  %v895 = vshll.u32 %v809, 16
  %v897 = vrot.slane %v895, 4
  %v898 = vor.u32 %v894, %v897
  %v899 = vsel %vm273, %v890, %v898
  %v901 = vshrl.u32 %v827, 16
  %v903 = vrot.slane %v901, 3
  %v904 = vshll.u32 %v827, 16
  %v906 = vrot.slane %v904, 4
  %v907 = vor.u32 %v903, %v906
  %v908 = vsel %vm273, %v907, %v907
  %v910 = vshrl.u32 %v837, 16
  %v912 = vrot.slane %v910, 3
  %v913 = vshll.u32 %v837, 16
  %v915 = vrot.slane %v913, 4
  %v916 = vor.u32 %v912, %v915
  %v918 = vshrl.u32 %v839, 16
  %v920 = vrot.slane %v918, 3
  %v921 = vshll.u32 %v839, 16
  %v923 = vrot.slane %v921, 4
  %v924 = vor.u32 %v920, %v923
  %v925 = vsel %vm273, %v916, %v924
  %v980 = vunpack.c.l.b16 %v102
  %v981 = vunpack.c.l.b16 %v103
  %v982 = vunpack.c.l.b16 %v104
  %v983 = vunpack.c.l.b16 %v105
  %v984 = vunpack.c.l.b16 %v106
  %v985 = vunpack.c.l.b16 %v107
  %v986 = vunpack.c.l.b16 %v108
  %v987 = vunpack.c.l.b16 %v109
  %v988 = vunpack.c.l.b16 %v110
  %v989 = vunpack.c.l.b16 %v111
  %v990 = vunpack.c.l.b16 %v112
  %v991 = vunpack.c.l.b16 %v113
  %v992 = vunpack.c.l.b16 %v114
  %v993 = vunpack.c.l.b16 %v115
  %v994 = vunpack.c.l.b16 %v116
  %v995 = vunpack.c.l.b16 %v117
  %v996 = vunpack.c.l.b16 %v118
  %v997 = vunpack.c.l.b16 %v119
  %v998 = vunpack.c.l.b16 %v120
  %v999 = vunpack.c.l.b16 %v121
  %v1000 = vunpack.c.l.b16 %v122
  %v1001 = vunpack.c.l.b16 %v123
  %v1002 = vunpack.c.l.b16 %v124
  %v1003 = vunpack.c.l.b16 %v125
  %v1004 = vunpack.c.l.b16 %v126
  %v1005 = vunpack.c.l.b16 %v127
  %v1006 = vunpack.c.l.b16 %v128
  %v1007 = vunpack.c.l.b16 %v129
  %v1008 = vunpack.c.l.b16 %v130
  %v1009 = vunpack.c.l.b16 %v131
  %v1010 = vunpack.c.l.b16 %v132
  %v1011 = vunpack.c.l.b16 %v133
  %v1012 = vunpack.c.l.b16 %v134
  %v1013 = vunpack.c.l.b16 %v135
  %v1014 = vunpack.c.l.b16 %v136
  %v1015 = vunpack.c.l.b16 %v137
  %v1016 = vunpack.c.l.b16 %v138
  %v1017 = vunpack.c.l.b16 %v139
  %v1018 = vunpack.c.l.b16 %v140
  %v1019 = vunpack.c.l.b16 %v141
  %v1020 = vunpack.c.l.b16 %v142
  %v1021 = vunpack.c.l.b16 %v143
  %v1022 = vunpack.c.l.b16 %v144
  %v1023 = vunpack.c.l.b16 %v145
  %v1024 = vunpack.c.l.b16 %v146
  %v1025 = vunpack.c.l.b16 %v147
  %v1026 = vunpack.c.l.b16 %v148
  %v1027 = vunpack.c.l.b16 %v149
  %v1028 = vpack.c.b16 %v981, %v980
  %v1029 = vpack.c.b16 %v983, %v982
  %v1030 = vpack.c.b16 %v985, %v984
  %v1031 = vpack.c.b16 %v987, %v986
  %v1032 = vpack.c.b16 %v989, %v988
  %v1033 = vpack.c.b16 %v991, %v990
  %v1034 = vpack.c.b16 %v993, %v992
  %v1035 = vpack.c.b16 %v995, %v994
  %v1036 = vpack.c.b16 %v997, %v996
  %v1037 = vpack.c.b16 %v999, %v998
  %v1038 = vpack.c.b16 %v1001, %v1000
  %v1039 = vpack.c.b16 %v1003, %v1002
  %v1040 = vpack.c.b16 %v1005, %v1004
  %v1041 = vpack.c.b16 %v1007, %v1006
  %v1042 = vpack.c.b16 %v1009, %v1008
  %v1043 = vpack.c.b16 %v1011, %v1010
  %v1044 = vpack.c.b16 %v1013, %v1012
  %v1045 = vpack.c.b16 %v1015, %v1014
  %v1046 = vpack.c.b16 %v1017, %v1016
  %v1047 = vpack.c.b16 %v1019, %v1018
  %v1048 = vpack.c.b16 %v1021, %v1020
  %v1049 = vpack.c.b16 %v1023, %v1022
  %v1050 = vpack.c.b16 %v1025, %v1024
  %v1051 = vpack.c.b16 %v1027, %v1026
  %1076 = vmatprep.subr.bf16.mxu0 0
  %1077 = vmatpush1.bf16.msra.mxu0 %v1035
  %1078 = vmatprep.subr.bf16.mxu0 0
  %1079 = vmatpush1.bf16.msra.mxu0 %v1034
  %1080 = vmatprep.subr.bf16.mxu0 0
  %1081 = vmatpush1.bf16.msra.mxu0 %v1033
  %1082 = vmatprep.subr.bf16.mxu0 0
  %1083 = vmatpush1.bf16.msra.mxu0 %v1032
  %1084 = vmatprep.subr.bf16.mxu0 0
  %1085 = vmatpush1.bf16.msra.mxu0 %v1031
  %1086 = vmatprep.subr.bf16.mxu0 0
  %1087 = vmatpush1.bf16.msra.mxu0 %v1030
  %1088 = vmatprep.subr.bf16.mxu0 0
  %1089 = vmatpush1.bf16.msra.mxu0 %v1029
  %1090 = vmatprep.subr.bf16.mxu0 0
  %1091 = vmatpush1.bf16.msra.mxu0 %v1028
  %1092 = vmatprep.subr.bf16.mxu0 0
  %1093 = vmatpush2.bf16.msra.mxu0 %v1043
  %1094 = vmatprep.subr.bf16.mxu0 0
  %1095 = vmatpush2.bf16.msra.mxu0 %v1042
  %1096 = vmatprep.subr.bf16.mxu0 0
  %1097 = vmatpush2.bf16.msra.mxu0 %v1041
  %1098 = vmatprep.subr.bf16.mxu0 0
  %1099 = vmatpush2.bf16.msra.mxu0 %v1040
  %1100 = vmatprep.subr.bf16.mxu0 0
  %1101 = vmatpush2.bf16.msra.mxu0 %v1039
  %1102 = vmatprep.subr.bf16.mxu0 0
  %1103 = vmatpush2.bf16.msra.mxu0 %v1038
  %1104 = vmatprep.subr.bf16.mxu0 0
  %1105 = vmatpush2.bf16.msra.mxu0 %v1037
  %1106 = vmatprep.subr.bf16.mxu0 0
  %1107 = vmatpush2.bf16.msra.mxu0 %v1036
  %1108 = vmatprep.mubr.bf16.mxu0 %v865
  %1109 = vmatmul.mubr.bf16.gmra.mxu0 %v856
  %v1110 = vpop.f32.mrf.mxu0
  %v1111 = vadd.f32 0.0, %v1110
  %v1112 = vpop.f32.mrf.mxu0
  %v1113 = vpop.f32.mrf.mxu0
  %v1114 = vadd.f32 0.0, %v1113
  %v1115 = vpop.f32.mrf.mxu0
  %1116 = vmatprep.mubr.bf16.mxu0 %v908
  %1117 = vmatmul.mubr.bf16.gmra.mxu0 %v899
  %v1118 = vpop.f32.mrf.mxu0
  %v1119 = vadd.f32 0.0, %v1118
  %v1120 = vpop.f32.mrf.mxu0
  %v1121 = vpop.f32.mrf.mxu0
  %v1122 = vadd.f32 0.0, %v1121
  %v1123 = vpop.f32.mrf.mxu0
  %1124 = vdwg.mxu0
  %1125 = vmatprep.subr.bf16.mxu0 0
  %1126 = vmatpush1.bf16.msra.mxu0 %v1051
  %1127 = vmatprep.subr.bf16.mxu0 0
  %1128 = vmatpush1.bf16.msra.mxu0 %v1050
  %1129 = vmatprep.subr.bf16.mxu0 0
  %1130 = vmatpush1.bf16.msra.mxu0 %v1049
  %1131 = vmatprep.subr.bf16.mxu0 0
  %1132 = vmatpush1.bf16.msra.mxu0 %v1048
  %1133 = vmatprep.subr.bf16.mxu0 0
  %1134 = vmatpush1.bf16.msra.mxu0 %v1047
  %1135 = vmatprep.subr.bf16.mxu0 0
  %1136 = vmatpush1.bf16.msra.mxu0 %v1046
  %1137 = vmatprep.subr.bf16.mxu0 0
  %1138 = vmatpush1.bf16.msra.mxu0 %v1045
  %1139 = vmatprep.subr.bf16.mxu0 0
  %1140 = vmatpush1.bf16.msra.mxu0 %v1044
  %1141 = vmatprep.subr.bf16.mxu0 0
  %1142 = vmatpush2.bf16.msra.mxu0 0
  %1143 = vmatprep.subr.bf16.mxu0 0
  %1144 = vmatpush2.bf16.msra.mxu0 0
  %1145 = vmatprep.subr.bf16.mxu0 0
  %1146 = vmatpush2.bf16.msra.mxu0 0
  %1147 = vmatprep.subr.bf16.mxu0 0
  %1148 = vmatpush2.bf16.msra.mxu0 0
  %1149 = vmatprep.subr.bf16.mxu0 0
  %1150 = vmatpush2.bf16.msra.mxu0 0
  %1151 = vmatprep.subr.bf16.mxu0 0
  %1152 = vmatpush2.bf16.msra.mxu0 0
  %1153 = vmatprep.subr.bf16.mxu0 0
  %1154 = vmatpush2.bf16.msra.mxu0 0
  %1155 = vmatprep.subr.bf16.mxu0 0
  %1156 = vmatpush2.bf16.msra.mxu0 0
  %1157 = vmatprep.mubr.bf16.mxu0 0
  %1158 = vmatmul.mubr.bf16.gmra.mxu0 %v882
  %v1159 = vpop.f32.mrf.mxu0
  %v1160 = vadd.f32 %v1111, %v1159
  %v1161 = vpop.f32.mrf.mxu0
  %v1162 = vpop.f32.mrf.mxu0
  %v1163 = vadd.f32 %v1114, %v1162
  %v1164 = vpop.f32.mrf.mxu0
  %1165 = vmatprep.mubr.bf16.mxu0 0
  %1166 = vmatmul.mubr.bf16.gmra.mxu0 %v925
  %v1167 = vpop.f32.mrf.mxu0
  %v1168 = vadd.f32 %v1119, %v1167
  %v1169 = vpop.f32.mrf.mxu0
  %v1170 = vpop.f32.mrf.mxu0
  %v1171 = vadd.f32 %v1122, %v1170
  %v1172 = vpop.f32.mrf.mxu0
  %1173 = vdwg.mxu0
  %v1174 = vadd.f32 %v1160, %v1163
  %v1175 = vadd.f32 %v1174, %v1168
  %v1176 = vadd.f32 %v1175, %v1171
  %v1177 = vrot.slane %v1176, 4
  %v1178 = vadd.f32 %v1176, %v1177
  %v1179 = vrot.slane %v1178, 2
  %v1180 = vadd.f32 %v1178, %v1179
  %v1181 = vrot.slane %v1180, 1
  %v1182 = vadd.f32 %v1180, %v1181
  %v1183 = vmul.f32 %v1160, %v1160
  %v1184 = vmul.f32 %v1163, %v1163
  %v1185 = vmul.f32 %v1168, %v1168
  %v1186 = vmul.f32 %v1171, %v1171
  %v1187 = vadd.f32 %v1183, %v1184
  %v1188 = vadd.f32 %v1187, %v1185
  %v1189 = vadd.f32 %v1188, %v1186
  %v1190 = vrot.slane %v1189, 4
  %v1191 = vadd.f32 %v1189, %v1190
  %v1192 = vrot.slane %v1191, 2
  %v1193 = vadd.f32 %v1191, %v1192
  %v1194 = vrot.slane %v1193, 1
  %v1195 = vadd.f32 %v1193, %v1194
  %v1196 = vmul.f32 %v1182, 0.03125
  %v1197 = vmul.f32 %v1195, 0.03125
  %v1198 = vmul.f32 %v1196, %v1196
  %v1199 = vsub.f32 %v1197, %v1198
  %v1200 = vmax.f32 %v1199, 0.0
  %v1201 = vadd.f32 %v1200, 1e-05
  %v1202 = vrsqrt.pop %v1201
  %v1203 = vmul.f32 %v1196, %v1202
  %v1204 = vsub.f32 0.001, %v1203
  %v1205 = vmul.f32 %v1160, %v1202
  %v1206 = vmul.f32 %v1163, %v1202
  %v1207 = vmul.f32 %v1168, %v1202
  %v1208 = vmul.f32 %v1171, %v1202
  %v1209 = vadd.f32 %v1205, %v1204
  %v1210 = vadd.f32 %v1206, %v1204
  %v1211 = vadd.f32 %v1207, %v1204
  %v1212 = vadd.f32 %v1208, %v1204
  %v1213 = vmax.f32 %v1209, 0.0
  %v1214 = vmax.f32 %v1210, 0.0
  %v1215 = vmax.f32 %v1211, 0.0
  %v1216 = vmax.f32 %v1212, 0.0
  %v1217 = vpack.c.bf16 %v1214, %v1213
  %v1218 = vpack.c.bf16 %v1216, %v1215
  %v1221 = vunpack.c.l.b16 %v1217
  %v1222 = vunpack.c.h.b16 %v1217
  %v1223 = vunpack.c.l.b16 %v1218
  %v1224 = vunpack.c.h.b16 %v1218
  %v1225 = vpack.c.b16 %v1221, %v1221
  %v1226 = vpack.c.b16 %v1222, %v1222
  %v1227 = vpack.c.b16 %v1223, %v1223
  %v1228 = vpack.c.b16 %v1224, %v1224
  %1233 = vst [vmem:[#allocation2 + $0x8] sm:$0xf] %v1225
  %1234 = vst [vmem:[#allocation2 + $0xc] sm:$0xf] %v1226
  %1235 = vst [vmem:[#allocation2 + $0x20] sm:$0xf] %v1227
  %1236 = vst [vmem:[#allocation2 + $0x24] sm:$0xf] %v1228
  %v1237 = vld [vmem:[#allocation2 + $0x4] sm:$0x8]
  %v1238 = vld [vmem:[#allocation2 + $0x8] sm:$0xf]
  %v1239 = vld [vmem:[#allocation2 + $0xc] sm:$0xf]
  %v1240 = vld [vmem:[#allocation2 + $0x1c] sm:$0x8]
  %v1241 = vld [vmem:[#allocation2 + $0x20] sm:$0xf]
  %v1242 = vld [vmem:[#allocation2 + $0x24] sm:$0xf]
  %v1243 = vld [vmem:[#allocation2 + $0x10] sm:$0x1]
  %v1244 = vld [vmem:[#allocation2 + $0x28] sm:$0x1]
  %v1251 = vunpack.c.l.b16 %v1237
  %v1252 = vunpack.c.l.b16 %v1238
  %v1253 = vunpack.c.l.b16 %v1239
  %v1254 = vunpack.c.l.b16 %v1240
  %v1255 = vunpack.c.l.b16 %v1241
  %v1256 = vunpack.c.l.b16 %v1242
  %v1257 = vpack.c.b16 %v1252, %v1251
  %v1258 = vpack.c.b16 %v1253, %v1253
  %v1259 = vpack.c.b16 %v1255, %v1254
  %v1260 = vpack.c.b16 %v1256, %v1256
  %v1261 = vpack.c.b16 %v1253, %v1252
  %v1262 = vpack.c.b16 %v1256, %v1255
  %v1264 = vshrl.u32 %v1261, 16
  %v1266 = vrot.slane %v1264, 4
  %v1267 = vshll.u32 %v1261, 16
  %v1269 = vrot.slane %v1267, 5
  %v1270 = vor.u32 %v1266, %v1269
  %v1272 = vshrl.u32 %v1262, 16
  %v1274 = vrot.slane %v1272, 4
  %v1275 = vshll.u32 %v1262, 16
  %v1277 = vrot.slane %v1275, 5
  %v1278 = vor.u32 %v1274, %v1277
  %v1281 = vunpack.c.l.b16 %v1243
  %v1282 = vunpack.c.l.b16 %v1244
  %v1283 = vpack.c.b16 %v1281, %v1281
  %v1284 = vpack.c.b16 %v1282, %v1282
  %v1285 = vrot.slane %v1261, 5
  %v1286 = vrot.slane %v1283, 5
  %v1287 = vsel %vm266, %v1285, %v1286
  %v1288 = vrot.slane %v1262, 5
  %v1289 = vrot.slane %v1284, 5
  %v1290 = vsel %vm266, %v1288, %v1289
  %v1292 = vshrl.u32 %v1257, 16
  %v1294 = vrot.slane %v1292, 3
  %v1295 = vshll.u32 %v1257, 16
  %v1297 = vrot.slane %v1295, 4
  %v1298 = vor.u32 %v1294, %v1297
  %v1300 = vshrl.u32 %v1258, 16
  %v1302 = vrot.slane %v1300, 3
  %v1303 = vshll.u32 %v1258, 16
  %v1305 = vrot.slane %v1303, 4
  %v1306 = vor.u32 %v1302, %v1305
  %v1307 = vsel %vm273, %v1298, %v1306
  %v1309 = vshrl.u32 %v1270, 16
  %v1311 = vrot.slane %v1309, 3
  %v1312 = vshll.u32 %v1270, 16
  %v1314 = vrot.slane %v1312, 4
  %v1315 = vor.u32 %v1311, %v1314
  %v1316 = vsel %vm273, %v1315, %v1315
  %v1318 = vshrl.u32 %v1285, 16
  %v1320 = vrot.slane %v1318, 3
  %v1321 = vshll.u32 %v1285, 16
  %v1323 = vrot.slane %v1321, 4
  %v1324 = vor.u32 %v1320, %v1323
  %v1326 = vshrl.u32 %v1287, 16
  %v1328 = vrot.slane %v1326, 3
  %v1329 = vshll.u32 %v1287, 16
  %v1331 = vrot.slane %v1329, 4
  %v1332 = vor.u32 %v1328, %v1331
  %v1333 = vsel %vm273, %v1324, %v1332
  %v1335 = vshrl.u32 %v1259, 16
  %v1337 = vrot.slane %v1335, 3
  %v1338 = vshll.u32 %v1259, 16
  %v1340 = vrot.slane %v1338, 4
  %v1341 = vor.u32 %v1337, %v1340
  %v1343 = vshrl.u32 %v1260, 16
  %v1345 = vrot.slane %v1343, 3
  %v1346 = vshll.u32 %v1260, 16
  %v1348 = vrot.slane %v1346, 4
  %v1349 = vor.u32 %v1345, %v1348
  %v1350 = vsel %vm273, %v1341, %v1349
  %v1352 = vshrl.u32 %v1278, 16
  %v1354 = vrot.slane %v1352, 3
  %v1355 = vshll.u32 %v1278, 16
  %v1357 = vrot.slane %v1355, 4
  %v1358 = vor.u32 %v1354, %v1357
  %v1359 = vsel %vm273, %v1358, %v1358
  %v1361 = vshrl.u32 %v1288, 16
  %v1363 = vrot.slane %v1361, 3
  %v1364 = vshll.u32 %v1288, 16
  %v1366 = vrot.slane %v1364, 4
  %v1367 = vor.u32 %v1363, %v1366
  %v1369 = vshrl.u32 %v1290, 16
  %v1371 = vrot.slane %v1369, 3
  %v1372 = vshll.u32 %v1290, 16
  %v1374 = vrot.slane %v1372, 4
  %v1375 = vor.u32 %v1371, %v1374
  %v1376 = vsel %vm273, %v1367, %v1375
  %v1431 = vunpack.c.l.b16 %v150
  %v1432 = vunpack.c.l.b16 %v151
  %v1433 = vunpack.c.l.b16 %v152
  %v1434 = vunpack.c.l.b16 %v153
  %v1435 = vunpack.c.l.b16 %v154
  %v1436 = vunpack.c.l.b16 %v155
  %v1437 = vunpack.c.l.b16 %v156
  %v1438 = vunpack.c.l.b16 %v157
  %v1439 = vunpack.c.l.b16 %v158
  %v1440 = vunpack.c.l.b16 %v159
  %v1441 = vunpack.c.l.b16 %v160
  %v1442 = vunpack.c.l.b16 %v161
  %v1443 = vunpack.c.l.b16 %v162
  %v1444 = vunpack.c.l.b16 %v163
  %v1445 = vunpack.c.l.b16 %v164
  %v1446 = vunpack.c.l.b16 %v165
  %v1447 = vunpack.c.l.b16 %v166
  %v1448 = vunpack.c.l.b16 %v167
  %v1449 = vunpack.c.l.b16 %v168
  %v1450 = vunpack.c.l.b16 %v169
  %v1451 = vunpack.c.l.b16 %v170
  %v1452 = vunpack.c.l.b16 %v171
  %v1453 = vunpack.c.l.b16 %v172
  %v1454 = vunpack.c.l.b16 %v173
  %v1455 = vunpack.c.l.b16 %v174
  %v1456 = vunpack.c.l.b16 %v175
  %v1457 = vunpack.c.l.b16 %v176
  %v1458 = vunpack.c.l.b16 %v177
  %v1459 = vunpack.c.l.b16 %v178
  %v1460 = vunpack.c.l.b16 %v179
  %v1461 = vunpack.c.l.b16 %v180
  %v1462 = vunpack.c.l.b16 %v181
  %v1463 = vunpack.c.l.b16 %v182
  %v1464 = vunpack.c.l.b16 %v183
  %v1465 = vunpack.c.l.b16 %v184
  %v1466 = vunpack.c.l.b16 %v185
  %v1467 = vunpack.c.l.b16 %v186
  %v1468 = vunpack.c.l.b16 %v187
  %v1469 = vunpack.c.l.b16 %v188
  %v1470 = vunpack.c.l.b16 %v189
  %v1471 = vunpack.c.l.b16 %v190
  %v1472 = vunpack.c.l.b16 %v191
  %v1473 = vunpack.c.l.b16 %v192
  %v1474 = vunpack.c.l.b16 %v193
  %v1475 = vunpack.c.l.b16 %v194
  %v1476 = vunpack.c.l.b16 %v195
  %v1477 = vunpack.c.l.b16 %v196
  %v1478 = vunpack.c.l.b16 %v197
  %v1479 = vpack.c.b16 %v1432, %v1431
  %v1480 = vpack.c.b16 %v1434, %v1433
  %v1481 = vpack.c.b16 %v1436, %v1435
  %v1482 = vpack.c.b16 %v1438, %v1437
  %v1483 = vpack.c.b16 %v1440, %v1439
  %v1484 = vpack.c.b16 %v1442, %v1441
  %v1485 = vpack.c.b16 %v1444, %v1443
  %v1486 = vpack.c.b16 %v1446, %v1445
  %v1487 = vpack.c.b16 %v1448, %v1447
  %v1488 = vpack.c.b16 %v1450, %v1449
  %v1489 = vpack.c.b16 %v1452, %v1451
  %v1490 = vpack.c.b16 %v1454, %v1453
  %v1491 = vpack.c.b16 %v1456, %v1455
  %v1492 = vpack.c.b16 %v1458, %v1457
  %v1493 = vpack.c.b16 %v1460, %v1459
  %v1494 = vpack.c.b16 %v1462, %v1461
  %v1495 = vpack.c.b16 %v1464, %v1463
  %v1496 = vpack.c.b16 %v1466, %v1465
  %v1497 = vpack.c.b16 %v1468, %v1467
  %v1498 = vpack.c.b16 %v1470, %v1469
  %v1499 = vpack.c.b16 %v1472, %v1471
  %v1500 = vpack.c.b16 %v1474, %v1473
  %v1501 = vpack.c.b16 %v1476, %v1475
  %v1502 = vpack.c.b16 %v1478, %v1477
  %1527 = vmatprep.subr.bf16.mxu0 0
  %1528 = vmatpush1.bf16.msra.mxu0 %v1486
  %1529 = vmatprep.subr.bf16.mxu0 0
  %1530 = vmatpush1.bf16.msra.mxu0 %v1485
  %1531 = vmatprep.subr.bf16.mxu0 0
  %1532 = vmatpush1.bf16.msra.mxu0 %v1484
  %1533 = vmatprep.subr.bf16.mxu0 0
  %1534 = vmatpush1.bf16.msra.mxu0 %v1483
  %1535 = vmatprep.subr.bf16.mxu0 0
  %1536 = vmatpush1.bf16.msra.mxu0 %v1482
  %1537 = vmatprep.subr.bf16.mxu0 0
  %1538 = vmatpush1.bf16.msra.mxu0 %v1481
  %1539 = vmatprep.subr.bf16.mxu0 0
  %1540 = vmatpush1.bf16.msra.mxu0 %v1480
  %1541 = vmatprep.subr.bf16.mxu0 0
  %1542 = vmatpush1.bf16.msra.mxu0 %v1479
  %1543 = vmatprep.subr.bf16.mxu0 0
  %1544 = vmatpush2.bf16.msra.mxu0 %v1494
  %1545 = vmatprep.subr.bf16.mxu0 0
  %1546 = vmatpush2.bf16.msra.mxu0 %v1493
  %1547 = vmatprep.subr.bf16.mxu0 0
  %1548 = vmatpush2.bf16.msra.mxu0 %v1492
  %1549 = vmatprep.subr.bf16.mxu0 0
  %1550 = vmatpush2.bf16.msra.mxu0 %v1491
  %1551 = vmatprep.subr.bf16.mxu0 0
  %1552 = vmatpush2.bf16.msra.mxu0 %v1490
  %1553 = vmatprep.subr.bf16.mxu0 0
  %1554 = vmatpush2.bf16.msra.mxu0 %v1489
  %1555 = vmatprep.subr.bf16.mxu0 0
  %1556 = vmatpush2.bf16.msra.mxu0 %v1488
  %1557 = vmatprep.subr.bf16.mxu0 0
  %1558 = vmatpush2.bf16.msra.mxu0 %v1487
  %1559 = vmatprep.mubr.bf16.mxu0 %v1316
  %1560 = vmatmul.mubr.bf16.gmra.mxu0 %v1307
  %v1561 = vpop.f32.mrf.mxu0
  %v1562 = vadd.f32 0.0, %v1561
  %v1563 = vpop.f32.mrf.mxu0
  %v1564 = vpop.f32.mrf.mxu0
  %v1565 = vadd.f32 0.0, %v1564
  %v1566 = vpop.f32.mrf.mxu0
  %1567 = vmatprep.mubr.bf16.mxu0 %v1359
  %1568 = vmatmul.mubr.bf16.gmra.mxu0 %v1350
  %v1569 = vpop.f32.mrf.mxu0
  %v1570 = vadd.f32 0.0, %v1569
  %v1571 = vpop.f32.mrf.mxu0
  %v1572 = vpop.f32.mrf.mxu0
  %v1573 = vadd.f32 0.0, %v1572
  %v1574 = vpop.f32.mrf.mxu0
  %1575 = vdwg.mxu0
  %1576 = vmatprep.subr.bf16.mxu0 0
  %1577 = vmatpush1.bf16.msra.mxu0 %v1502
  %1578 = vmatprep.subr.bf16.mxu0 0
  %1579 = vmatpush1.bf16.msra.mxu0 %v1501
  %1580 = vmatprep.subr.bf16.mxu0 0
  %1581 = vmatpush1.bf16.msra.mxu0 %v1500
  %1582 = vmatprep.subr.bf16.mxu0 0
  %1583 = vmatpush1.bf16.msra.mxu0 %v1499
  %1584 = vmatprep.subr.bf16.mxu0 0
  %1585 = vmatpush1.bf16.msra.mxu0 %v1498
  %1586 = vmatprep.subr.bf16.mxu0 0
  %1587 = vmatpush1.bf16.msra.mxu0 %v1497
  %1588 = vmatprep.subr.bf16.mxu0 0
  %1589 = vmatpush1.bf16.msra.mxu0 %v1496
  %1590 = vmatprep.subr.bf16.mxu0 0
  %1591 = vmatpush1.bf16.msra.mxu0 %v1495
  %1592 = vmatprep.subr.bf16.mxu0 0
  %1593 = vmatpush2.bf16.msra.mxu0 0
  %1594 = vmatprep.subr.bf16.mxu0 0
  %1595 = vmatpush2.bf16.msra.mxu0 0
  %1596 = vmatprep.subr.bf16.mxu0 0
  %1597 = vmatpush2.bf16.msra.mxu0 0
  %1598 = vmatprep.subr.bf16.mxu0 0
  %1599 = vmatpush2.bf16.msra.mxu0 0
  %1600 = vmatprep.subr.bf16.mxu0 0
  %1601 = vmatpush2.bf16.msra.mxu0 0
  %1602 = vmatprep.subr.bf16.mxu0 0
  %1603 = vmatpush2.bf16.msra.mxu0 0
  %1604 = vmatprep.subr.bf16.mxu0 0
  %1605 = vmatpush2.bf16.msra.mxu0 0
  %1606 = vmatprep.subr.bf16.mxu0 0
  %1607 = vmatpush2.bf16.msra.mxu0 0
  %1608 = vmatprep.mubr.bf16.mxu0 0
  %1609 = vmatmul.mubr.bf16.gmra.mxu0 %v1333
  %v1610 = vpop.f32.mrf.mxu0
  %v1611 = vadd.f32 %v1562, %v1610
  %v1612 = vpop.f32.mrf.mxu0
  %v1613 = vpop.f32.mrf.mxu0
  %v1614 = vadd.f32 %v1565, %v1613
  %v1615 = vpop.f32.mrf.mxu0
  %1616 = vmatprep.mubr.bf16.mxu0 0
  %1617 = vmatmul.mubr.bf16.gmra.mxu0 %v1376
  %v1618 = vpop.f32.mrf.mxu0
  %v1619 = vadd.f32 %v1570, %v1618
  %v1620 = vpop.f32.mrf.mxu0
  %v1621 = vpop.f32.mrf.mxu0
  %v1622 = vadd.f32 %v1573, %v1621
  %v1623 = vpop.f32.mrf.mxu0
  %1624 = vdwg.mxu0
  %v1625 = vadd.f32 %v1611, %v1614
  %v1626 = vadd.f32 %v1625, %v1619
  %v1627 = vadd.f32 %v1626, %v1622
  %v1628 = vrot.slane %v1627, 4
  %v1629 = vadd.f32 %v1627, %v1628
  %v1630 = vrot.slane %v1629, 2
  %v1631 = vadd.f32 %v1629, %v1630
  %v1632 = vrot.slane %v1631, 1
  %v1633 = vadd.f32 %v1631, %v1632
  %v1634 = vmul.f32 %v1611, %v1611
  %v1635 = vmul.f32 %v1614, %v1614
  %v1636 = vmul.f32 %v1619, %v1619
  %v1637 = vmul.f32 %v1622, %v1622
  %v1638 = vadd.f32 %v1634, %v1635
  %v1639 = vadd.f32 %v1638, %v1636
  %v1640 = vadd.f32 %v1639, %v1637
  %v1641 = vrot.slane %v1640, 4
  %v1642 = vadd.f32 %v1640, %v1641
  %v1643 = vrot.slane %v1642, 2
  %v1644 = vadd.f32 %v1642, %v1643
  %v1645 = vrot.slane %v1644, 1
  %v1646 = vadd.f32 %v1644, %v1645
  %v1647 = vmul.f32 %v1633, 0.03125
  %v1648 = vmul.f32 %v1646, 0.03125
  %v1649 = vmul.f32 %v1647, %v1647
  %v1650 = vsub.f32 %v1648, %v1649
  %v1651 = vmax.f32 %v1650, 0.0
  %v1652 = vadd.f32 %v1651, 1e-05
  %v1653 = vrsqrt.pop %v1652
  %v1654 = vmul.f32 %v1647, %v1653
  %v1655 = vsub.f32 0.001, %v1654
  %v1656 = vadd.f32 %v709, %v712
  %v1657 = vadd.f32 %v1656, %v717
  %v1658 = vadd.f32 %v1657, %v720
  %v1659 = vrot.slane %v1658, 4
  %v1660 = vadd.f32 %v1658, %v1659
  %v1661 = vrot.slane %v1660, 2
  %v1662 = vadd.f32 %v1660, %v1661
  %v1663 = vrot.slane %v1662, 1
  %v1664 = vadd.f32 %v1662, %v1663
  %v1665 = vmul.f32 %v709, %v709
  %v1666 = vmul.f32 %v712, %v712
  %v1667 = vmul.f32 %v717, %v717
  %v1668 = vmul.f32 %v720, %v720
  %v1669 = vadd.f32 %v1665, %v1666
  %v1670 = vadd.f32 %v1669, %v1667
  %v1671 = vadd.f32 %v1670, %v1668
  %v1672 = vrot.slane %v1671, 4
  %v1673 = vadd.f32 %v1671, %v1672
  %v1674 = vrot.slane %v1673, 2
  %v1675 = vadd.f32 %v1673, %v1674
  %v1676 = vrot.slane %v1675, 1
  %v1677 = vadd.f32 %v1675, %v1676
  %v1678 = vmul.f32 %v1664, 0.03125
  %v1679 = vmul.f32 %v1677, 0.03125
  %v1680 = vmul.f32 %v1678, %v1678
  %v1681 = vsub.f32 %v1679, %v1680
  %v1682 = vmax.f32 %v1681, 0.0
  %v1683 = vadd.f32 %v1682, 1e-05
  %v1684 = vrsqrt.pop %v1683
  %v1685 = vmul.f32 %v1678, %v1684
  %v1686 = vsub.f32 0.001, %v1685
  %v1687 = vmul.f32 %v1611, %v1653
  %v1688 = vmul.f32 %v1614, %v1653
  %v1689 = vmul.f32 %v1619, %v1653
  %v1690 = vmul.f32 %v1622, %v1653
  %v1691 = vmul.f32 %v709, %v1684
  %v1692 = vmul.f32 %v712, %v1684
  %v1693 = vmul.f32 %v717, %v1684
  %v1694 = vmul.f32 %v720, %v1684
  %v1695 = vadd.f32 %v1687, %v1691
  %v1696 = vadd.f32 %v1688, %v1692
  %v1697 = vadd.f32 %v1689, %v1693
  %v1698 = vadd.f32 %v1690, %v1694
  %v1699 = vadd.f32 %v1655, %v1686
  %v1700 = vadd.f32 %v1695, %v1699
  %v1701 = vadd.f32 %v1696, %v1699
  %v1702 = vadd.f32 %v1697, %v1699
  %v1703 = vadd.f32 %v1698, %v1699
  %v1704 = vmax.f32 %v1700, 0.0
  %v1705 = vmax.f32 %v1701, 0.0
  %v1706 = vmax.f32 %v1702, 0.0
  %v1707 = vmax.f32 %v1703, 0.0
  %v1708 = vld [vmem:[%s5] sm:$0xf]
  %v1709 = vld [vmem:[%s5 + $0x4] sm:$0xf]
  %v1710 = vld [vmem:[%s5 + $0x8] sm:$0xf]
  %v1711 = vld [vmem:[%s5 + $0xc] sm:$0xf]
  %v1712 = vld [vmem:[%s5 + $0x10] sm:$0xf]
  %v1713 = vld [vmem:[%s5 + $0x14] sm:$0xf]
  %v1714 = vld [vmem:[%s5 + $0x18] sm:$0xf]
  %v1715 = vld [vmem:[%s5 + $0x1c] sm:$0xf]
  %v1716 = vld [vmem:[%s5 + $0x20] sm:$0xf]
  %v1717 = vld [vmem:[%s5 + $0x24] sm:$0xf]
  %v1718 = vld [vmem:[%s5 + $0x28] sm:$0xf]
  %v1719 = vld [vmem:[%s5 + $0x2c] sm:$0xf]
  %v1720 = vld [vmem:[%s5 + $0x30] sm:$0xf]
  %v1721 = vld [vmem:[%s5 + $0x34] sm:$0xf]
  %v1722 = vld [vmem:[%s5 + $0x38] sm:$0xf]
  %v1723 = vld [vmem:[%s5 + $0x3c] sm:$0xf]
  %v1724 = vld [vmem:[%s5 + $0x40] sm:$0xf]
  %v1725 = vld [vmem:[%s5 + $0x44] sm:$0xf]
  %v1726 = vld [vmem:[%s5 + $0x48] sm:$0xf]
  %v1727 = vld [vmem:[%s5 + $0x4c] sm:$0xf]
  %v1728 = vld [vmem:[%s5 + $0x50] sm:$0xf]
  %v1729 = vld [vmem:[%s5 + $0x54] sm:$0xf]
  %v1730 = vld [vmem:[%s5 + $0x58] sm:$0xf]
  %v1731 = vld [vmem:[%s5 + $0x5c] sm:$0xf]
  %v1732 = vld [vmem:[%s5 + $0x60] sm:$0xf]
  %v1733 = vld [vmem:[%s5 + $0x64] sm:$0xf]
  %v1734 = vld [vmem:[%s5 + $0x68] sm:$0xf]
  %v1735 = vld [vmem:[%s5 + $0x6c] sm:$0xf]
  %v1736 = vld [vmem:[%s5 + $0x70] sm:$0xf]
  %v1737 = vld [vmem:[%s5 + $0x74] sm:$0xf]
  %v1738 = vld [vmem:[%s5 + $0x78] sm:$0xf]
  %v1739 = vld [vmem:[%s5 + $0x7c] sm:$0xf]
  %v1740 = vld [vmem:[%s5 + $0x80] sm:$0xf]
  %v1741 = vld [vmem:[%s5 + $0x84] sm:$0xf]
  %v1742 = vld [vmem:[%s5 + $0x88] sm:$0xf]
  %v1743 = vld [vmem:[%s5 + $0x8c] sm:$0xf]
  %v1744 = vld [vmem:[%s5 + $0x90] sm:$0xf]
  %v1745 = vld [vmem:[%s5 + $0x94] sm:$0xf]
  %v1746 = vld [vmem:[%s5 + $0x98] sm:$0xf]
  %v1747 = vld [vmem:[%s5 + $0x9c] sm:$0xf]
  %v1748 = vld [vmem:[%s5 + $0xa0] sm:$0xf]
  %v1749 = vld [vmem:[%s5 + $0xa4] sm:$0xf]
  %v1750 = vld [vmem:[%s5 + $0xa8] sm:$0xf]
  %v1751 = vld [vmem:[%s5 + $0xac] sm:$0xf]
  %v1752 = vld [vmem:[%s5 + $0xb0] sm:$0xf]
  %v1753 = vld [vmem:[%s5 + $0xb4] sm:$0xf]
  %v1754 = vld [vmem:[%s5 + $0xb8] sm:$0xf]
  %v1755 = vld [vmem:[%s5 + $0xbc] sm:$0xf]
  %v1756 = vld [vmem:[%s6] sm:$0xf]
  %v1757 = vld [vmem:[%s6 + $0x4] sm:$0xf]
  %v1758 = vld [vmem:[%s6 + $0x8] sm:$0xf]
  %v1759 = vld [vmem:[%s6 + $0xc] sm:$0xf]
  %v1760 = vld [vmem:[%s6 + $0x10] sm:$0xf]
  %v1761 = vld [vmem:[%s6 + $0x14] sm:$0xf]
  %v1762 = vld [vmem:[%s6 + $0x18] sm:$0xf]
  %v1763 = vld [vmem:[%s6 + $0x1c] sm:$0xf]
  %v1764 = vld [vmem:[%s6 + $0x20] sm:$0xf]
  %v1765 = vld [vmem:[%s6 + $0x24] sm:$0xf]
  %v1766 = vld [vmem:[%s6 + $0x28] sm:$0xf]
  %v1767 = vld [vmem:[%s6 + $0x2c] sm:$0xf]
  %v1768 = vld [vmem:[%s6 + $0x30] sm:$0xf]
  %v1769 = vld [vmem:[%s6 + $0x34] sm:$0xf]
  %v1770 = vld [vmem:[%s6 + $0x38] sm:$0xf]
  %v1771 = vld [vmem:[%s6 + $0x3c] sm:$0xf]
  %v1772 = vld [vmem:[%s6 + $0x40] sm:$0xf]
  %v1773 = vld [vmem:[%s6 + $0x44] sm:$0xf]
  %v1774 = vld [vmem:[%s6 + $0x48] sm:$0xf]
  %v1775 = vld [vmem:[%s6 + $0x4c] sm:$0xf]
  %v1776 = vld [vmem:[%s6 + $0x50] sm:$0xf]
  %v1777 = vld [vmem:[%s6 + $0x54] sm:$0xf]
  %v1778 = vld [vmem:[%s6 + $0x58] sm:$0xf]
  %v1779 = vld [vmem:[%s6 + $0x5c] sm:$0xf]
  %v1780 = vld [vmem:[%s6 + $0x60] sm:$0xf]
  %v1781 = vld [vmem:[%s6 + $0x64] sm:$0xf]
  %v1782 = vld [vmem:[%s6 + $0x68] sm:$0xf]
  %v1783 = vld [vmem:[%s6 + $0x6c] sm:$0xf]
  %v1784 = vld [vmem:[%s6 + $0x70] sm:$0xf]
  %v1785 = vld [vmem:[%s6 + $0x74] sm:$0xf]
  %v1786 = vld [vmem:[%s6 + $0x78] sm:$0xf]
  %v1787 = vld [vmem:[%s6 + $0x7c] sm:$0xf]
  %v1788 = vld [vmem:[%s6 + $0x80] sm:$0xf]
  %v1789 = vld [vmem:[%s6 + $0x84] sm:$0xf]
  %v1790 = vld [vmem:[%s6 + $0x88] sm:$0xf]
  %v1791 = vld [vmem:[%s6 + $0x8c] sm:$0xf]
  %v1792 = vld [vmem:[%s6 + $0x90] sm:$0xf]
  %v1793 = vld [vmem:[%s6 + $0x94] sm:$0xf]
  %v1794 = vld [vmem:[%s6 + $0x98] sm:$0xf]
  %v1795 = vld [vmem:[%s6 + $0x9c] sm:$0xf]
  %v1796 = vld [vmem:[%s6 + $0xa0] sm:$0xf]
  %v1797 = vld [vmem:[%s6 + $0xa4] sm:$0xf]
  %v1798 = vld [vmem:[%s6 + $0xa8] sm:$0xf]
  %v1799 = vld [vmem:[%s6 + $0xac] sm:$0xf]
  %v1800 = vld [vmem:[%s6 + $0xb0] sm:$0xf]
  %v1801 = vld [vmem:[%s6 + $0xb4] sm:$0xf]
  %v1802 = vld [vmem:[%s6 + $0xb8] sm:$0xf]
  %v1803 = vld [vmem:[%s6 + $0xbc] sm:$0xf]
  %v1804 = vld [vmem:[%s7] sm:$0xf]
  %v1805 = vld [vmem:[%s7 + $0x4] sm:$0xf]
  %v1806 = vld [vmem:[%s7 + $0x8] sm:$0xf]
  %v1807 = vld [vmem:[%s7 + $0xc] sm:$0xf]
  %v1808 = vld [vmem:[%s7 + $0x10] sm:$0xf]
  %v1809 = vld [vmem:[%s7 + $0x14] sm:$0xf]
  %v1810 = vld [vmem:[%s7 + $0x18] sm:$0xf]
  %v1811 = vld [vmem:[%s7 + $0x1c] sm:$0xf]
  %v1812 = vld [vmem:[%s7 + $0x20] sm:$0xf]
  %v1813 = vld [vmem:[%s7 + $0x24] sm:$0xf]
  %v1814 = vld [vmem:[%s7 + $0x28] sm:$0xf]
  %v1815 = vld [vmem:[%s7 + $0x2c] sm:$0xf]
  %v1816 = vld [vmem:[%s7 + $0x30] sm:$0xf]
  %v1817 = vld [vmem:[%s7 + $0x34] sm:$0xf]
  %v1818 = vld [vmem:[%s7 + $0x38] sm:$0xf]
  %v1819 = vld [vmem:[%s7 + $0x3c] sm:$0xf]
  %v1820 = vld [vmem:[%s7 + $0x40] sm:$0xf]
  %v1821 = vld [vmem:[%s7 + $0x44] sm:$0xf]
  %v1822 = vld [vmem:[%s7 + $0x48] sm:$0xf]
  %v1823 = vld [vmem:[%s7 + $0x4c] sm:$0xf]
  %v1824 = vld [vmem:[%s7 + $0x50] sm:$0xf]
  %v1825 = vld [vmem:[%s7 + $0x54] sm:$0xf]
  %v1826 = vld [vmem:[%s7 + $0x58] sm:$0xf]
  %v1827 = vld [vmem:[%s7 + $0x5c] sm:$0xf]
  %v1828 = vld [vmem:[%s7 + $0x60] sm:$0xf]
  %v1829 = vld [vmem:[%s7 + $0x64] sm:$0xf]
  %v1830 = vld [vmem:[%s7 + $0x68] sm:$0xf]
  %v1831 = vld [vmem:[%s7 + $0x6c] sm:$0xf]
  %v1832 = vld [vmem:[%s7 + $0x70] sm:$0xf]
  %v1833 = vld [vmem:[%s7 + $0x74] sm:$0xf]
  %v1834 = vld [vmem:[%s7 + $0x78] sm:$0xf]
  %v1835 = vld [vmem:[%s7 + $0x7c] sm:$0xf]
  %v1836 = vld [vmem:[%s7 + $0x80] sm:$0xf]
  %v1837 = vld [vmem:[%s7 + $0x84] sm:$0xf]
  %v1838 = vld [vmem:[%s7 + $0x88] sm:$0xf]
  %v1839 = vld [vmem:[%s7 + $0x8c] sm:$0xf]
  %v1840 = vld [vmem:[%s7 + $0x90] sm:$0xf]
  %v1841 = vld [vmem:[%s7 + $0x94] sm:$0xf]
  %v1842 = vld [vmem:[%s7 + $0x98] sm:$0xf]
  %v1843 = vld [vmem:[%s7 + $0x9c] sm:$0xf]
  %v1844 = vld [vmem:[%s7 + $0xa0] sm:$0xf]
  %v1845 = vld [vmem:[%s7 + $0xa4] sm:$0xf]
  %v1846 = vld [vmem:[%s7 + $0xa8] sm:$0xf]
  %v1847 = vld [vmem:[%s7 + $0xac] sm:$0xf]
  %v1848 = vld [vmem:[%s7 + $0xb0] sm:$0xf]
  %v1849 = vld [vmem:[%s7 + $0xb4] sm:$0xf]
  %v1850 = vld [vmem:[%s7 + $0xb8] sm:$0xf]
  %v1851 = vld [vmem:[%s7 + $0xbc] sm:$0xf]
  %v1852 = vpack.c.bf16 %v1705, %v1704
  %v1853 = vpack.c.bf16 %v1707, %v1706
  %v1856 = vunpack.c.l.b16 %v1852
  %v1857 = vunpack.c.h.b16 %v1852
  %v1858 = vunpack.c.l.b16 %v1853
  %v1859 = vunpack.c.h.b16 %v1853
  %v1860 = vpack.c.b16 %v1856, %v1856
  %v1861 = vpack.c.b16 %v1857, %v1857
  %v1862 = vpack.c.b16 %v1858, %v1858
  %v1863 = vpack.c.b16 %v1859, %v1859
  %1868 = vst [vmem:[#allocation2 + $0x8] sm:$0xf] %v1860
  %1869 = vst [vmem:[#allocation2 + $0xc] sm:$0xf] %v1861
  %1870 = vst [vmem:[#allocation2 + $0x20] sm:$0xf] %v1862
  %1871 = vst [vmem:[#allocation2 + $0x24] sm:$0xf] %v1863
  %v1872 = vld [vmem:[#allocation2 + $0x4] sm:$0x8]
  %v1873 = vld [vmem:[#allocation2 + $0x8] sm:$0xf]
  %v1874 = vld [vmem:[#allocation2 + $0xc] sm:$0xf]
  %v1875 = vld [vmem:[#allocation2 + $0x1c] sm:$0x8]
  %v1876 = vld [vmem:[#allocation2 + $0x20] sm:$0xf]
  %v1877 = vld [vmem:[#allocation2 + $0x24] sm:$0xf]
  %v1878 = vld [vmem:[#allocation2 + $0x10] sm:$0x1]
  %v1879 = vld [vmem:[#allocation2 + $0x28] sm:$0x1]
  %v1886 = vunpack.c.l.b16 %v1872
  %v1887 = vunpack.c.l.b16 %v1873
  %v1888 = vunpack.c.l.b16 %v1874
  %v1889 = vunpack.c.l.b16 %v1875
  %v1890 = vunpack.c.l.b16 %v1876
  %v1891 = vunpack.c.l.b16 %v1877
  %v1892 = vpack.c.b16 %v1887, %v1886
  %v1893 = vpack.c.b16 %v1888, %v1888
  %v1894 = vpack.c.b16 %v1890, %v1889
  %v1895 = vpack.c.b16 %v1891, %v1891
  %v1896 = vpack.c.b16 %v1888, %v1887
  %v1897 = vpack.c.b16 %v1891, %v1890
  %v1899 = vshrl.u32 %v1896, 16
  %v1901 = vrot.slane %v1899, 4
  %v1902 = vshll.u32 %v1896, 16
  %v1904 = vrot.slane %v1902, 5
  %v1905 = vor.u32 %v1901, %v1904
  %v1907 = vshrl.u32 %v1897, 16
  %v1909 = vrot.slane %v1907, 4
  %v1910 = vshll.u32 %v1897, 16
  %v1912 = vrot.slane %v1910, 5
  %v1913 = vor.u32 %v1909, %v1912
  %v1916 = vunpack.c.l.b16 %v1878
  %v1917 = vunpack.c.l.b16 %v1879
  %v1918 = vpack.c.b16 %v1916, %v1916
  %v1919 = vpack.c.b16 %v1917, %v1917
  %v1920 = vrot.slane %v1896, 5
  %v1921 = vrot.slane %v1918, 5
  %v1922 = vsel %vm266, %v1920, %v1921
  %v1923 = vrot.slane %v1897, 5
  %v1924 = vrot.slane %v1919, 5
  %v1925 = vsel %vm266, %v1923, %v1924
  %v1927 = vshrl.u32 %v1892, 16
  %v1929 = vrot.slane %v1927, 3
  %v1930 = vshll.u32 %v1892, 16
  %v1932 = vrot.slane %v1930, 4
  %v1933 = vor.u32 %v1929, %v1932
  %v1935 = vshrl.u32 %v1893, 16
  %v1937 = vrot.slane %v1935, 3
  %v1938 = vshll.u32 %v1893, 16
  %v1940 = vrot.slane %v1938, 4
  %v1941 = vor.u32 %v1937, %v1940
  %v1942 = vsel %vm273, %v1933, %v1941
  %v1944 = vshrl.u32 %v1905, 16
  %v1946 = vrot.slane %v1944, 3
  %v1947 = vshll.u32 %v1905, 16
  %v1949 = vrot.slane %v1947, 4
  %v1950 = vor.u32 %v1946, %v1949
  %v1951 = vsel %vm273, %v1950, %v1950
  %v1953 = vshrl.u32 %v1920, 16
  %v1955 = vrot.slane %v1953, 3
  %v1956 = vshll.u32 %v1920, 16
  %v1958 = vrot.slane %v1956, 4
  %v1959 = vor.u32 %v1955, %v1958
  %v1961 = vshrl.u32 %v1922, 16
  %v1963 = vrot.slane %v1961, 3
  %v1964 = vshll.u32 %v1922, 16
  %v1966 = vrot.slane %v1964, 4
  %v1967 = vor.u32 %v1963, %v1966
  %v1968 = vsel %vm273, %v1959, %v1967
  %v1970 = vshrl.u32 %v1894, 16
  %v1972 = vrot.slane %v1970, 3
  %v1973 = vshll.u32 %v1894, 16
  %v1975 = vrot.slane %v1973, 4
  %v1976 = vor.u32 %v1972, %v1975
  %v1978 = vshrl.u32 %v1895, 16
  %v1980 = vrot.slane %v1978, 3
  %v1981 = vshll.u32 %v1895, 16
  %v1983 = vrot.slane %v1981, 4
  %v1984 = vor.u32 %v1980, %v1983
  %v1985 = vsel %vm273, %v1976, %v1984
  %v1987 = vshrl.u32 %v1913, 16
  %v1989 = vrot.slane %v1987, 3
  %v1990 = vshll.u32 %v1913, 16
  %v1992 = vrot.slane %v1990, 4
  %v1993 = vor.u32 %v1989, %v1992
  %v1994 = vsel %vm273, %v1993, %v1993
  %v1996 = vshrl.u32 %v1923, 16
  %v1998 = vrot.slane %v1996, 3
  %v1999 = vshll.u32 %v1923, 16
  %v2001 = vrot.slane %v1999, 4
  %v2002 = vor.u32 %v1998, %v2001
  %v2004 = vshrl.u32 %v1925, 16
  %v2006 = vrot.slane %v2004, 3
  %v2007 = vshll.u32 %v1925, 16
  %v2009 = vrot.slane %v2007, 4
  %v2010 = vor.u32 %v2006, %v2009
  %v2011 = vsel %vm273, %v2002, %v2010
  %v2066 = vunpack.c.l.b16 %v1708
  %v2067 = vunpack.c.l.b16 %v1709
  %v2068 = vunpack.c.l.b16 %v1710
  %v2069 = vunpack.c.l.b16 %v1711
  %v2070 = vunpack.c.l.b16 %v1712
  %v2071 = vunpack.c.l.b16 %v1713
  %v2072 = vunpack.c.l.b16 %v1714
  %v2073 = vunpack.c.l.b16 %v1715
  %v2074 = vunpack.c.l.b16 %v1716
  %v2075 = vunpack.c.l.b16 %v1717
  %v2076 = vunpack.c.l.b16 %v1718
  %v2077 = vunpack.c.l.b16 %v1719
  %v2078 = vunpack.c.l.b16 %v1720
  %v2079 = vunpack.c.l.b16 %v1721
  %v2080 = vunpack.c.l.b16 %v1722
  %v2081 = vunpack.c.l.b16 %v1723
  %v2082 = vunpack.c.l.b16 %v1724
  %v2083 = vunpack.c.l.b16 %v1725
  %v2084 = vunpack.c.l.b16 %v1726
  %v2085 = vunpack.c.l.b16 %v1727
  %v2086 = vunpack.c.l.b16 %v1728
  %v2087 = vunpack.c.l.b16 %v1729
  %v2088 = vunpack.c.l.b16 %v1730
  %v2089 = vunpack.c.l.b16 %v1731
  %v2090 = vunpack.c.l.b16 %v1732
  %v2091 = vunpack.c.l.b16 %v1733
  %v2092 = vunpack.c.l.b16 %v1734
  %v2093 = vunpack.c.l.b16 %v1735
  %v2094 = vunpack.c.l.b16 %v1736
  %v2095 = vunpack.c.l.b16 %v1737
  %v2096 = vunpack.c.l.b16 %v1738
  %v2097 = vunpack.c.l.b16 %v1739
  %v2098 = vunpack.c.l.b16 %v1740
  %v2099 = vunpack.c.l.b16 %v1741
  %v2100 = vunpack.c.l.b16 %v1742
  %v2101 = vunpack.c.l.b16 %v1743
  %v2102 = vunpack.c.l.b16 %v1744
  %v2103 = vunpack.c.l.b16 %v1745
  %v2104 = vunpack.c.l.b16 %v1746
  %v2105 = vunpack.c.l.b16 %v1747
  %v2106 = vunpack.c.l.b16 %v1748
  %v2107 = vunpack.c.l.b16 %v1749
  %v2108 = vunpack.c.l.b16 %v1750
  %v2109 = vunpack.c.l.b16 %v1751
  %v2110 = vunpack.c.l.b16 %v1752
  %v2111 = vunpack.c.l.b16 %v1753
  %v2112 = vunpack.c.l.b16 %v1754
  %v2113 = vunpack.c.l.b16 %v1755
  %v2114 = vpack.c.b16 %v2067, %v2066
  %v2115 = vpack.c.b16 %v2069, %v2068
  %v2116 = vpack.c.b16 %v2071, %v2070
  %v2117 = vpack.c.b16 %v2073, %v2072
  %v2118 = vpack.c.b16 %v2075, %v2074
  %v2119 = vpack.c.b16 %v2077, %v2076
  %v2120 = vpack.c.b16 %v2079, %v2078
  %v2121 = vpack.c.b16 %v2081, %v2080
  %v2122 = vpack.c.b16 %v2083, %v2082
  %v2123 = vpack.c.b16 %v2085, %v2084
  %v2124 = vpack.c.b16 %v2087, %v2086
  %v2125 = vpack.c.b16 %v2089, %v2088
  %v2126 = vpack.c.b16 %v2091, %v2090
  %v2127 = vpack.c.b16 %v2093, %v2092
  %v2128 = vpack.c.b16 %v2095, %v2094
  %v2129 = vpack.c.b16 %v2097, %v2096
  %v2130 = vpack.c.b16 %v2099, %v2098
  %v2131 = vpack.c.b16 %v2101, %v2100
  %v2132 = vpack.c.b16 %v2103, %v2102
  %v2133 = vpack.c.b16 %v2105, %v2104
  %v2134 = vpack.c.b16 %v2107, %v2106
  %v2135 = vpack.c.b16 %v2109, %v2108
  %v2136 = vpack.c.b16 %v2111, %v2110
  %v2137 = vpack.c.b16 %v2113, %v2112
  %2162 = vmatprep.subr.bf16.mxu0 0
  %2163 = vmatpush1.bf16.msra.mxu0 %v2121
  %2164 = vmatprep.subr.bf16.mxu0 0
  %2165 = vmatpush1.bf16.msra.mxu0 %v2120
  %2166 = vmatprep.subr.bf16.mxu0 0
  %2167 = vmatpush1.bf16.msra.mxu0 %v2119
  %2168 = vmatprep.subr.bf16.mxu0 0
  %2169 = vmatpush1.bf16.msra.mxu0 %v2118
  %2170 = vmatprep.subr.bf16.mxu0 0
  %2171 = vmatpush1.bf16.msra.mxu0 %v2117
  %2172 = vmatprep.subr.bf16.mxu0 0
  %2173 = vmatpush1.bf16.msra.mxu0 %v2116
  %2174 = vmatprep.subr.bf16.mxu0 0
  %2175 = vmatpush1.bf16.msra.mxu0 %v2115
  %2176 = vmatprep.subr.bf16.mxu0 0
  %2177 = vmatpush1.bf16.msra.mxu0 %v2114
  %2178 = vmatprep.subr.bf16.mxu0 0
  %2179 = vmatpush2.bf16.msra.mxu0 %v2129
  %2180 = vmatprep.subr.bf16.mxu0 0
  %2181 = vmatpush2.bf16.msra.mxu0 %v2128
  %2182 = vmatprep.subr.bf16.mxu0 0
  %2183 = vmatpush2.bf16.msra.mxu0 %v2127
  %2184 = vmatprep.subr.bf16.mxu0 0
  %2185 = vmatpush2.bf16.msra.mxu0 %v2126
  %2186 = vmatprep.subr.bf16.mxu0 0
  %2187 = vmatpush2.bf16.msra.mxu0 %v2125
  %2188 = vmatprep.subr.bf16.mxu0 0
  %2189 = vmatpush2.bf16.msra.mxu0 %v2124
  %2190 = vmatprep.subr.bf16.mxu0 0
  %2191 = vmatpush2.bf16.msra.mxu0 %v2123
  %2192 = vmatprep.subr.bf16.mxu0 0
  %2193 = vmatpush2.bf16.msra.mxu0 %v2122
  %2194 = vmatprep.mubr.bf16.mxu0 %v1951
  %2195 = vmatmul.mubr.bf16.gmra.mxu0 %v1942
  %v2196 = vpop.f32.mrf.mxu0
  %v2197 = vadd.f32 0.0, %v2196
  %v2198 = vpop.f32.mrf.mxu0
  %v2199 = vpop.f32.mrf.mxu0
  %v2200 = vadd.f32 0.0, %v2199
  %v2201 = vpop.f32.mrf.mxu0
  %2202 = vmatprep.mubr.bf16.mxu0 %v1994
  %2203 = vmatmul.mubr.bf16.gmra.mxu0 %v1985
  %v2204 = vpop.f32.mrf.mxu0
  %v2205 = vadd.f32 0.0, %v2204
  %v2206 = vpop.f32.mrf.mxu0
  %v2207 = vpop.f32.mrf.mxu0
  %v2208 = vadd.f32 0.0, %v2207
  %v2209 = vpop.f32.mrf.mxu0
  %2210 = vdwg.mxu0
  %2211 = vmatprep.subr.bf16.mxu0 0
  %2212 = vmatpush1.bf16.msra.mxu0 %v2137
  %2213 = vmatprep.subr.bf16.mxu0 0
  %2214 = vmatpush1.bf16.msra.mxu0 %v2136
  %2215 = vmatprep.subr.bf16.mxu0 0
  %2216 = vmatpush1.bf16.msra.mxu0 %v2135
  %2217 = vmatprep.subr.bf16.mxu0 0
  %2218 = vmatpush1.bf16.msra.mxu0 %v2134
  %2219 = vmatprep.subr.bf16.mxu0 0
  %2220 = vmatpush1.bf16.msra.mxu0 %v2133
  %2221 = vmatprep.subr.bf16.mxu0 0
  %2222 = vmatpush1.bf16.msra.mxu0 %v2132
  %2223 = vmatprep.subr.bf16.mxu0 0
  %2224 = vmatpush1.bf16.msra.mxu0 %v2131
  %2225 = vmatprep.subr.bf16.mxu0 0
  %2226 = vmatpush1.bf16.msra.mxu0 %v2130
  %2227 = vmatprep.subr.bf16.mxu0 0
  %2228 = vmatpush2.bf16.msra.mxu0 0
  %2229 = vmatprep.subr.bf16.mxu0 0
  %2230 = vmatpush2.bf16.msra.mxu0 0
  %2231 = vmatprep.subr.bf16.mxu0 0
  %2232 = vmatpush2.bf16.msra.mxu0 0
  %2233 = vmatprep.subr.bf16.mxu0 0
  %2234 = vmatpush2.bf16.msra.mxu0 0
  %2235 = vmatprep.subr.bf16.mxu0 0
  %2236 = vmatpush2.bf16.msra.mxu0 0
  %2237 = vmatprep.subr.bf16.mxu0 0
  %2238 = vmatpush2.bf16.msra.mxu0 0
  %2239 = vmatprep.subr.bf16.mxu0 0
  %2240 = vmatpush2.bf16.msra.mxu0 0
  %2241 = vmatprep.subr.bf16.mxu0 0
  %2242 = vmatpush2.bf16.msra.mxu0 0
  %2243 = vmatprep.mubr.bf16.mxu0 0
  %2244 = vmatmul.mubr.bf16.gmra.mxu0 %v1968
  %v2245 = vpop.f32.mrf.mxu0
  %v2246 = vadd.f32 %v2197, %v2245
  %v2247 = vpop.f32.mrf.mxu0
  %v2248 = vpop.f32.mrf.mxu0
  %v2249 = vadd.f32 %v2200, %v2248
  %v2250 = vpop.f32.mrf.mxu0
  %2251 = vmatprep.mubr.bf16.mxu0 0
  %2252 = vmatmul.mubr.bf16.gmra.mxu0 %v2011
  %v2253 = vpop.f32.mrf.mxu0
  %v2254 = vadd.f32 %v2205, %v2253
  %v2255 = vpop.f32.mrf.mxu0
  %v2256 = vpop.f32.mrf.mxu0
  %v2257 = vadd.f32 %v2208, %v2256
  %v2258 = vpop.f32.mrf.mxu0
  %2259 = vdwg.mxu0
  %v2260 = vadd.f32 %v2246, %v2249
  %v2261 = vadd.f32 %v2260, %v2254
  %v2262 = vadd.f32 %v2261, %v2257
  %v2263 = vrot.slane %v2262, 4
  %v2264 = vadd.f32 %v2262, %v2263
  %v2265 = vrot.slane %v2264, 2
  %v2266 = vadd.f32 %v2264, %v2265
  %v2267 = vrot.slane %v2266, 1
  %v2268 = vadd.f32 %v2266, %v2267
  %v2269 = vmul.f32 %v2246, %v2246
  %v2270 = vmul.f32 %v2249, %v2249
  %v2271 = vmul.f32 %v2254, %v2254
  %v2272 = vmul.f32 %v2257, %v2257
  %v2273 = vadd.f32 %v2269, %v2270
  %v2274 = vadd.f32 %v2273, %v2271
  %v2275 = vadd.f32 %v2274, %v2272
  %v2276 = vrot.slane %v2275, 4
  %v2277 = vadd.f32 %v2275, %v2276
  %v2278 = vrot.slane %v2277, 2
  %v2279 = vadd.f32 %v2277, %v2278
  %v2280 = vrot.slane %v2279, 1
  %v2281 = vadd.f32 %v2279, %v2280
  %v2282 = vmul.f32 %v2268, 0.03125
  %v2283 = vmul.f32 %v2281, 0.03125
  %v2284 = vmul.f32 %v2282, %v2282
  %v2285 = vsub.f32 %v2283, %v2284
  %v2286 = vmax.f32 %v2285, 0.0
  %v2287 = vadd.f32 %v2286, 1e-05
  %v2288 = vrsqrt.pop %v2287
  %v2289 = vmul.f32 %v2282, %v2288
  %v2290 = vsub.f32 0.001, %v2289
  %v2291 = vmul.f32 %v2246, %v2288
  %v2292 = vmul.f32 %v2249, %v2288
  %v2293 = vmul.f32 %v2254, %v2288
  %v2294 = vmul.f32 %v2257, %v2288
  %v2295 = vadd.f32 %v2291, %v2290
  %v2296 = vadd.f32 %v2292, %v2290
  %v2297 = vadd.f32 %v2293, %v2290
  %v2298 = vadd.f32 %v2294, %v2290
  %v2299 = vmax.f32 %v2295, 0.0
  %v2300 = vmax.f32 %v2296, 0.0
  %v2301 = vmax.f32 %v2297, 0.0
  %v2302 = vmax.f32 %v2298, 0.0
  %v2303 = vpack.c.bf16 %v2300, %v2299
  %v2304 = vpack.c.bf16 %v2302, %v2301
  %v2307 = vunpack.c.l.b16 %v2303
  %v2308 = vunpack.c.h.b16 %v2303
  %v2309 = vunpack.c.l.b16 %v2304
  %v2310 = vunpack.c.h.b16 %v2304
  %v2311 = vpack.c.b16 %v2307, %v2307
  %v2312 = vpack.c.b16 %v2308, %v2308
  %v2313 = vpack.c.b16 %v2309, %v2309
  %v2314 = vpack.c.b16 %v2310, %v2310
  %2319 = vst [vmem:[#allocation2 + $0x8] sm:$0xf] %v2311
  %2320 = vst [vmem:[#allocation2 + $0xc] sm:$0xf] %v2312
  %2321 = vst [vmem:[#allocation2 + $0x20] sm:$0xf] %v2313
  %2322 = vst [vmem:[#allocation2 + $0x24] sm:$0xf] %v2314
  %v2323 = vld [vmem:[#allocation2 + $0x4] sm:$0x8]
  %v2324 = vld [vmem:[#allocation2 + $0x8] sm:$0xf]
  %v2325 = vld [vmem:[#allocation2 + $0xc] sm:$0xf]
  %v2326 = vld [vmem:[#allocation2 + $0x1c] sm:$0x8]
  %v2327 = vld [vmem:[#allocation2 + $0x20] sm:$0xf]
  %v2328 = vld [vmem:[#allocation2 + $0x24] sm:$0xf]
  %v2329 = vld [vmem:[#allocation2 + $0x10] sm:$0x1]
  %v2330 = vld [vmem:[#allocation2 + $0x28] sm:$0x1]
  %v2337 = vunpack.c.l.b16 %v2323
  %v2338 = vunpack.c.l.b16 %v2324
  %v2339 = vunpack.c.l.b16 %v2325
  %v2340 = vunpack.c.l.b16 %v2326
  %v2341 = vunpack.c.l.b16 %v2327
  %v2342 = vunpack.c.l.b16 %v2328
  %v2343 = vpack.c.b16 %v2338, %v2337
  %v2344 = vpack.c.b16 %v2339, %v2339
  %v2345 = vpack.c.b16 %v2341, %v2340
  %v2346 = vpack.c.b16 %v2342, %v2342
  %v2347 = vpack.c.b16 %v2339, %v2338
  %v2348 = vpack.c.b16 %v2342, %v2341
  %v2350 = vshrl.u32 %v2347, 16
  %v2352 = vrot.slane %v2350, 4
  %v2353 = vshll.u32 %v2347, 16
  %v2355 = vrot.slane %v2353, 5
  %v2356 = vor.u32 %v2352, %v2355
  %v2358 = vshrl.u32 %v2348, 16
  %v2360 = vrot.slane %v2358, 4
  %v2361 = vshll.u32 %v2348, 16
  %v2363 = vrot.slane %v2361, 5
  %v2364 = vor.u32 %v2360, %v2363
  %v2367 = vunpack.c.l.b16 %v2329
  %v2368 = vunpack.c.l.b16 %v2330
  %v2369 = vpack.c.b16 %v2367, %v2367
  %v2370 = vpack.c.b16 %v2368, %v2368
  %v2371 = vrot.slane %v2347, 5
  %v2372 = vrot.slane %v2369, 5
  %v2373 = vsel %vm266, %v2371, %v2372
  %v2374 = vrot.slane %v2348, 5
  %v2375 = vrot.slane %v2370, 5
  %v2376 = vsel %vm266, %v2374, %v2375
  %v2378 = vshrl.u32 %v2343, 16
  %v2380 = vrot.slane %v2378, 3
  %v2381 = vshll.u32 %v2343, 16
  %v2383 = vrot.slane %v2381, 4
  %v2384 = vor.u32 %v2380, %v2383
  %v2386 = vshrl.u32 %v2344, 16
  %v2388 = vrot.slane %v2386, 3
  %v2389 = vshll.u32 %v2344, 16
  %v2391 = vrot.slane %v2389, 4
  %v2392 = vor.u32 %v2388, %v2391
  %v2393 = vsel %vm273, %v2384, %v2392
  %v2395 = vshrl.u32 %v2356, 16
  %v2397 = vrot.slane %v2395, 3
  %v2398 = vshll.u32 %v2356, 16
  %v2400 = vrot.slane %v2398, 4
  %v2401 = vor.u32 %v2397, %v2400
  %v2402 = vsel %vm273, %v2401, %v2401
  %v2404 = vshrl.u32 %v2371, 16
  %v2406 = vrot.slane %v2404, 3
  %v2407 = vshll.u32 %v2371, 16
  %v2409 = vrot.slane %v2407, 4
  %v2410 = vor.u32 %v2406, %v2409
  %v2412 = vshrl.u32 %v2373, 16
  %v2414 = vrot.slane %v2412, 3
  %v2415 = vshll.u32 %v2373, 16
  %v2417 = vrot.slane %v2415, 4
  %v2418 = vor.u32 %v2414, %v2417
  %v2419 = vsel %vm273, %v2410, %v2418
  %v2421 = vshrl.u32 %v2345, 16
  %v2423 = vrot.slane %v2421, 3
  %v2424 = vshll.u32 %v2345, 16
  %v2426 = vrot.slane %v2424, 4
  %v2427 = vor.u32 %v2423, %v2426
  %v2429 = vshrl.u32 %v2346, 16
  %v2431 = vrot.slane %v2429, 3
  %v2432 = vshll.u32 %v2346, 16
  %v2434 = vrot.slane %v2432, 4
  %v2435 = vor.u32 %v2431, %v2434
  %v2436 = vsel %vm273, %v2427, %v2435
  %v2438 = vshrl.u32 %v2364, 16
  %v2440 = vrot.slane %v2438, 3
  %v2441 = vshll.u32 %v2364, 16
  %v2443 = vrot.slane %v2441, 4
  %v2444 = vor.u32 %v2440, %v2443
  %v2445 = vsel %vm273, %v2444, %v2444
  %v2447 = vshrl.u32 %v2374, 16
  %v2449 = vrot.slane %v2447, 3
  %v2450 = vshll.u32 %v2374, 16
  %v2452 = vrot.slane %v2450, 4
  %v2453 = vor.u32 %v2449, %v2452
  %v2455 = vshrl.u32 %v2376, 16
  %v2457 = vrot.slane %v2455, 3
  %v2458 = vshll.u32 %v2376, 16
  %v2460 = vrot.slane %v2458, 4
  %v2461 = vor.u32 %v2457, %v2460
  %v2462 = vsel %vm273, %v2453, %v2461
  %v2517 = vunpack.c.l.b16 %v1756
  %v2518 = vunpack.c.l.b16 %v1757
  %v2519 = vunpack.c.l.b16 %v1758
  %v2520 = vunpack.c.l.b16 %v1759
  %v2521 = vunpack.c.l.b16 %v1760
  %v2522 = vunpack.c.l.b16 %v1761
  %v2523 = vunpack.c.l.b16 %v1762
  %v2524 = vunpack.c.l.b16 %v1763
  %v2525 = vunpack.c.l.b16 %v1764
  %v2526 = vunpack.c.l.b16 %v1765
  %v2527 = vunpack.c.l.b16 %v1766
  %v2528 = vunpack.c.l.b16 %v1767
  %v2529 = vunpack.c.l.b16 %v1768
  %v2530 = vunpack.c.l.b16 %v1769
  %v2531 = vunpack.c.l.b16 %v1770
  %v2532 = vunpack.c.l.b16 %v1771
  %v2533 = vunpack.c.l.b16 %v1772
  %v2534 = vunpack.c.l.b16 %v1773
  %v2535 = vunpack.c.l.b16 %v1774
  %v2536 = vunpack.c.l.b16 %v1775
  %v2537 = vunpack.c.l.b16 %v1776
  %v2538 = vunpack.c.l.b16 %v1777
  %v2539 = vunpack.c.l.b16 %v1778
  %v2540 = vunpack.c.l.b16 %v1779
  %v2541 = vunpack.c.l.b16 %v1780
  %v2542 = vunpack.c.l.b16 %v1781
  %v2543 = vunpack.c.l.b16 %v1782
  %v2544 = vunpack.c.l.b16 %v1783
  %v2545 = vunpack.c.l.b16 %v1784
  %v2546 = vunpack.c.l.b16 %v1785
  %v2547 = vunpack.c.l.b16 %v1786
  %v2548 = vunpack.c.l.b16 %v1787
  %v2549 = vunpack.c.l.b16 %v1788
  %v2550 = vunpack.c.l.b16 %v1789
  %v2551 = vunpack.c.l.b16 %v1790
  %v2552 = vunpack.c.l.b16 %v1791
  %v2553 = vunpack.c.l.b16 %v1792
  %v2554 = vunpack.c.l.b16 %v1793
  %v2555 = vunpack.c.l.b16 %v1794
  %v2556 = vunpack.c.l.b16 %v1795
  %v2557 = vunpack.c.l.b16 %v1796
  %v2558 = vunpack.c.l.b16 %v1797
  %v2559 = vunpack.c.l.b16 %v1798
  %v2560 = vunpack.c.l.b16 %v1799
  %v2561 = vunpack.c.l.b16 %v1800
  %v2562 = vunpack.c.l.b16 %v1801
  %v2563 = vunpack.c.l.b16 %v1802
  %v2564 = vunpack.c.l.b16 %v1803
  %v2565 = vpack.c.b16 %v2518, %v2517
  %v2566 = vpack.c.b16 %v2520, %v2519
  %v2567 = vpack.c.b16 %v2522, %v2521
  %v2568 = vpack.c.b16 %v2524, %v2523
  %v2569 = vpack.c.b16 %v2526, %v2525
  %v2570 = vpack.c.b16 %v2528, %v2527
  %v2571 = vpack.c.b16 %v2530, %v2529
  %v2572 = vpack.c.b16 %v2532, %v2531
  %v2573 = vpack.c.b16 %v2534, %v2533
  %v2574 = vpack.c.b16 %v2536, %v2535
  %v2575 = vpack.c.b16 %v2538, %v2537
  %v2576 = vpack.c.b16 %v2540, %v2539
  %v2577 = vpack.c.b16 %v2542, %v2541
  %v2578 = vpack.c.b16 %v2544, %v2543
  %v2579 = vpack.c.b16 %v2546, %v2545
  %v2580 = vpack.c.b16 %v2548, %v2547
  %v2581 = vpack.c.b16 %v2550, %v2549
  %v2582 = vpack.c.b16 %v2552, %v2551
  %v2583 = vpack.c.b16 %v2554, %v2553
  %v2584 = vpack.c.b16 %v2556, %v2555
  %v2585 = vpack.c.b16 %v2558, %v2557
  %v2586 = vpack.c.b16 %v2560, %v2559
  %v2587 = vpack.c.b16 %v2562, %v2561
  %v2588 = vpack.c.b16 %v2564, %v2563
  %2613 = vmatprep.subr.bf16.mxu0 0
  %2614 = vmatpush1.bf16.msra.mxu0 %v2572
  %2615 = vmatprep.subr.bf16.mxu0 0
  %2616 = vmatpush1.bf16.msra.mxu0 %v2571
  %2617 = vmatprep.subr.bf16.mxu0 0
  %2618 = vmatpush1.bf16.msra.mxu0 %v2570
  %2619 = vmatprep.subr.bf16.mxu0 0
  %2620 = vmatpush1.bf16.msra.mxu0 %v2569
  %2621 = vmatprep.subr.bf16.mxu0 0
  %2622 = vmatpush1.bf16.msra.mxu0 %v2568
  %2623 = vmatprep.subr.bf16.mxu0 0
  %2624 = vmatpush1.bf16.msra.mxu0 %v2567
  %2625 = vmatprep.subr.bf16.mxu0 0
  %2626 = vmatpush1.bf16.msra.mxu0 %v2566
  %2627 = vmatprep.subr.bf16.mxu0 0
  %2628 = vmatpush1.bf16.msra.mxu0 %v2565
  %2629 = vmatprep.subr.bf16.mxu0 0
  %2630 = vmatpush2.bf16.msra.mxu0 %v2580
  %2631 = vmatprep.subr.bf16.mxu0 0
  %2632 = vmatpush2.bf16.msra.mxu0 %v2579
  %2633 = vmatprep.subr.bf16.mxu0 0
  %2634 = vmatpush2.bf16.msra.mxu0 %v2578
  %2635 = vmatprep.subr.bf16.mxu0 0
  %2636 = vmatpush2.bf16.msra.mxu0 %v2577
  %2637 = vmatprep.subr.bf16.mxu0 0
  %2638 = vmatpush2.bf16.msra.mxu0 %v2576
  %2639 = vmatprep.subr.bf16.mxu0 0
  %2640 = vmatpush2.bf16.msra.mxu0 %v2575
  %2641 = vmatprep.subr.bf16.mxu0 0
  %2642 = vmatpush2.bf16.msra.mxu0 %v2574
  %2643 = vmatprep.subr.bf16.mxu0 0
  %2644 = vmatpush2.bf16.msra.mxu0 %v2573
  %2645 = vmatprep.mubr.bf16.mxu0 %v2402
  %2646 = vmatmul.mubr.bf16.gmra.mxu0 %v2393
  %v2647 = vpop.f32.mrf.mxu0
  %v2648 = vadd.f32 0.0, %v2647
  %v2649 = vpop.f32.mrf.mxu0
  %v2650 = vpop.f32.mrf.mxu0
  %v2651 = vadd.f32 0.0, %v2650
  %v2652 = vpop.f32.mrf.mxu0
  %2653 = vmatprep.mubr.bf16.mxu0 %v2445
  %2654 = vmatmul.mubr.bf16.gmra.mxu0 %v2436
  %v2655 = vpop.f32.mrf.mxu0
  %v2656 = vadd.f32 0.0, %v2655
  %v2657 = vpop.f32.mrf.mxu0
  %v2658 = vpop.f32.mrf.mxu0
  %v2659 = vadd.f32 0.0, %v2658
  %v2660 = vpop.f32.mrf.mxu0
  %2661 = vdwg.mxu0
  %2662 = vmatprep.subr.bf16.mxu0 0
  %2663 = vmatpush1.bf16.msra.mxu0 %v2588
  %2664 = vmatprep.subr.bf16.mxu0 0
  %2665 = vmatpush1.bf16.msra.mxu0 %v2587
  %2666 = vmatprep.subr.bf16.mxu0 0
  %2667 = vmatpush1.bf16.msra.mxu0 %v2586
  %2668 = vmatprep.subr.bf16.mxu0 0
  %2669 = vmatpush1.bf16.msra.mxu0 %v2585
  %2670 = vmatprep.subr.bf16.mxu0 0
  %2671 = vmatpush1.bf16.msra.mxu0 %v2584
  %2672 = vmatprep.subr.bf16.mxu0 0
  %2673 = vmatpush1.bf16.msra.mxu0 %v2583
  %2674 = vmatprep.subr.bf16.mxu0 0
  %2675 = vmatpush1.bf16.msra.mxu0 %v2582
  %2676 = vmatprep.subr.bf16.mxu0 0
  %2677 = vmatpush1.bf16.msra.mxu0 %v2581
  %2678 = vmatprep.subr.bf16.mxu0 0
  %2679 = vmatpush2.bf16.msra.mxu0 0
  %2680 = vmatprep.subr.bf16.mxu0 0
  %2681 = vmatpush2.bf16.msra.mxu0 0
  %2682 = vmatprep.subr.bf16.mxu0 0
  %2683 = vmatpush2.bf16.msra.mxu0 0
  %2684 = vmatprep.subr.bf16.mxu0 0
  %2685 = vmatpush2.bf16.msra.mxu0 0
  %2686 = vmatprep.subr.bf16.mxu0 0
  %2687 = vmatpush2.bf16.msra.mxu0 0
  %2688 = vmatprep.subr.bf16.mxu0 0
  %2689 = vmatpush2.bf16.msra.mxu0 0
  %2690 = vmatprep.subr.bf16.mxu0 0
  %2691 = vmatpush2.bf16.msra.mxu0 0
  %2692 = vmatprep.subr.bf16.mxu0 0
  %2693 = vmatpush2.bf16.msra.mxu0 0
  %2694 = vmatprep.mubr.bf16.mxu0 0
  %2695 = vmatmul.mubr.bf16.gmra.mxu0 %v2419
  %v2696 = vpop.f32.mrf.mxu0
  %v2697 = vadd.f32 %v2648, %v2696
  %v2698 = vpop.f32.mrf.mxu0
  %v2699 = vpop.f32.mrf.mxu0
  %v2700 = vadd.f32 %v2651, %v2699
  %v2701 = vpop.f32.mrf.mxu0
  %2702 = vmatprep.mubr.bf16.mxu0 0
  %2703 = vmatmul.mubr.bf16.gmra.mxu0 %v2462
  %v2704 = vpop.f32.mrf.mxu0
  %v2705 = vadd.f32 %v2656, %v2704
  %v2706 = vpop.f32.mrf.mxu0
  %v2707 = vpop.f32.mrf.mxu0
  %v2708 = vadd.f32 %v2659, %v2707
  %v2709 = vpop.f32.mrf.mxu0
  %2710 = vdwg.mxu0
  %v2711 = vadd.f32 %v2697, %v2700
  %v2712 = vadd.f32 %v2711, %v2705
  %v2713 = vadd.f32 %v2712, %v2708
  %v2714 = vrot.slane %v2713, 4
  %v2715 = vadd.f32 %v2713, %v2714
  %v2716 = vrot.slane %v2715, 2
  %v2717 = vadd.f32 %v2715, %v2716
  %v2718 = vrot.slane %v2717, 1
  %v2719 = vadd.f32 %v2717, %v2718
  %v2720 = vmul.f32 %v2697, %v2697
  %v2721 = vmul.f32 %v2700, %v2700
  %v2722 = vmul.f32 %v2705, %v2705
  %v2723 = vmul.f32 %v2708, %v2708
  %v2724 = vadd.f32 %v2720, %v2721
  %v2725 = vadd.f32 %v2724, %v2722
  %v2726 = vadd.f32 %v2725, %v2723
  %v2727 = vrot.slane %v2726, 4
  %v2728 = vadd.f32 %v2726, %v2727
  %v2729 = vrot.slane %v2728, 2
  %v2730 = vadd.f32 %v2728, %v2729
  %v2731 = vrot.slane %v2730, 1
  %v2732 = vadd.f32 %v2730, %v2731
  %v2733 = vmul.f32 %v2719, 0.03125
  %v2734 = vmul.f32 %v2732, 0.03125
  %v2735 = vmul.f32 %v2733, %v2733
  %v2736 = vsub.f32 %v2734, %v2735
  %v2737 = vmax.f32 %v2736, 0.0
  %v2738 = vadd.f32 %v2737, 1e-05
  %v2739 = vrsqrt.pop %v2738
  %v2740 = vmul.f32 %v2733, %v2739
  %v2741 = vsub.f32 0.001, %v2740
  %v2742 = vmul.f32 %v2697, %v2739
  %v2743 = vmul.f32 %v2700, %v2739
  %v2744 = vmul.f32 %v2705, %v2739
  %v2745 = vmul.f32 %v2708, %v2739
  %v2746 = vadd.f32 %v2742, %v2741
  %v2747 = vadd.f32 %v2743, %v2741
  %v2748 = vadd.f32 %v2744, %v2741
  %v2749 = vadd.f32 %v2745, %v2741
  %v2750 = vmax.f32 %v2746, 0.0
  %v2751 = vmax.f32 %v2747, 0.0
  %v2752 = vmax.f32 %v2748, 0.0
  %v2753 = vmax.f32 %v2749, 0.0
  %v2754 = vpack.c.bf16 %v2751, %v2750
  %v2755 = vpack.c.bf16 %v2753, %v2752
  %v2758 = vunpack.c.l.b16 %v2754
  %v2759 = vunpack.c.h.b16 %v2754
  %v2760 = vunpack.c.l.b16 %v2755
  %v2761 = vunpack.c.h.b16 %v2755
  %v2762 = vpack.c.b16 %v2758, %v2758
  %v2763 = vpack.c.b16 %v2759, %v2759
  %v2764 = vpack.c.b16 %v2760, %v2760
  %v2765 = vpack.c.b16 %v2761, %v2761
  %2770 = vst [vmem:[#allocation2 + $0x8] sm:$0xf] %v2762
  %2771 = vst [vmem:[#allocation2 + $0xc] sm:$0xf] %v2763
  %2772 = vst [vmem:[#allocation2 + $0x20] sm:$0xf] %v2764
  %2773 = vst [vmem:[#allocation2 + $0x24] sm:$0xf] %v2765
  %v2774 = vld [vmem:[#allocation2 + $0x4] sm:$0x8]
  %v2775 = vld [vmem:[#allocation2 + $0x8] sm:$0xf]
  %v2776 = vld [vmem:[#allocation2 + $0xc] sm:$0xf]
  %v2777 = vld [vmem:[#allocation2 + $0x1c] sm:$0x8]
  %v2778 = vld [vmem:[#allocation2 + $0x20] sm:$0xf]
  %v2779 = vld [vmem:[#allocation2 + $0x24] sm:$0xf]
  %v2780 = vld [vmem:[#allocation2 + $0x10] sm:$0x1]
  %v2781 = vld [vmem:[#allocation2 + $0x28] sm:$0x1]
  %v2788 = vunpack.c.l.b16 %v2774
  %v2789 = vunpack.c.l.b16 %v2775
  %v2790 = vunpack.c.l.b16 %v2776
  %v2791 = vunpack.c.l.b16 %v2777
  %v2792 = vunpack.c.l.b16 %v2778
  %v2793 = vunpack.c.l.b16 %v2779
  %v2794 = vpack.c.b16 %v2789, %v2788
  %v2795 = vpack.c.b16 %v2790, %v2790
  %v2796 = vpack.c.b16 %v2792, %v2791
  %v2797 = vpack.c.b16 %v2793, %v2793
  %v2798 = vpack.c.b16 %v2790, %v2789
  %v2799 = vpack.c.b16 %v2793, %v2792
  %v2801 = vshrl.u32 %v2798, 16
  %v2803 = vrot.slane %v2801, 4
  %v2804 = vshll.u32 %v2798, 16
  %v2806 = vrot.slane %v2804, 5
  %v2807 = vor.u32 %v2803, %v2806
  %v2809 = vshrl.u32 %v2799, 16
  %v2811 = vrot.slane %v2809, 4
  %v2812 = vshll.u32 %v2799, 16
  %v2814 = vrot.slane %v2812, 5
  %v2815 = vor.u32 %v2811, %v2814
  %v2818 = vunpack.c.l.b16 %v2780
  %v2819 = vunpack.c.l.b16 %v2781
  %v2820 = vpack.c.b16 %v2818, %v2818
  %v2821 = vpack.c.b16 %v2819, %v2819
  %v2822 = vrot.slane %v2798, 5
  %v2823 = vrot.slane %v2820, 5
  %v2824 = vsel %vm266, %v2822, %v2823
  %v2825 = vrot.slane %v2799, 5
  %v2826 = vrot.slane %v2821, 5
  %v2827 = vsel %vm266, %v2825, %v2826
  %v2829 = vshrl.u32 %v2794, 16
  %v2831 = vrot.slane %v2829, 3
  %v2832 = vshll.u32 %v2794, 16
  %v2834 = vrot.slane %v2832, 4
  %v2835 = vor.u32 %v2831, %v2834
  %v2837 = vshrl.u32 %v2795, 16
  %v2839 = vrot.slane %v2837, 3
  %v2840 = vshll.u32 %v2795, 16
  %v2842 = vrot.slane %v2840, 4
  %v2843 = vor.u32 %v2839, %v2842
  %v2844 = vsel %vm273, %v2835, %v2843
  %v2846 = vshrl.u32 %v2807, 16
  %v2848 = vrot.slane %v2846, 3
  %v2849 = vshll.u32 %v2807, 16
  %v2851 = vrot.slane %v2849, 4
  %v2852 = vor.u32 %v2848, %v2851
  %v2853 = vsel %vm273, %v2852, %v2852
  %v2855 = vshrl.u32 %v2822, 16
  %v2857 = vrot.slane %v2855, 3
  %v2858 = vshll.u32 %v2822, 16
  %v2860 = vrot.slane %v2858, 4
  %v2861 = vor.u32 %v2857, %v2860
  %v2863 = vshrl.u32 %v2824, 16
  %v2865 = vrot.slane %v2863, 3
  %v2866 = vshll.u32 %v2824, 16
  %v2868 = vrot.slane %v2866, 4
  %v2869 = vor.u32 %v2865, %v2868
  %v2870 = vsel %vm273, %v2861, %v2869
  %v2872 = vshrl.u32 %v2796, 16
  %v2874 = vrot.slane %v2872, 3
  %v2875 = vshll.u32 %v2796, 16
  %v2877 = vrot.slane %v2875, 4
  %v2878 = vor.u32 %v2874, %v2877
  %v2880 = vshrl.u32 %v2797, 16
  %v2882 = vrot.slane %v2880, 3
  %v2883 = vshll.u32 %v2797, 16
  %v2885 = vrot.slane %v2883, 4
  %v2886 = vor.u32 %v2882, %v2885
  %v2887 = vsel %vm273, %v2878, %v2886
  %v2889 = vshrl.u32 %v2815, 16
  %v2891 = vrot.slane %v2889, 3
  %v2892 = vshll.u32 %v2815, 16
  %v2894 = vrot.slane %v2892, 4
  %v2895 = vor.u32 %v2891, %v2894
  %v2896 = vsel %vm273, %v2895, %v2895
  %v2898 = vshrl.u32 %v2825, 16
  %v2900 = vrot.slane %v2898, 3
  %v2901 = vshll.u32 %v2825, 16
  %v2903 = vrot.slane %v2901, 4
  %v2904 = vor.u32 %v2900, %v2903
  %v2906 = vshrl.u32 %v2827, 16
  %v2908 = vrot.slane %v2906, 3
  %v2909 = vshll.u32 %v2827, 16
  %v2911 = vrot.slane %v2909, 4
  %v2912 = vor.u32 %v2908, %v2911
  %v2913 = vsel %vm273, %v2904, %v2912
  %v2968 = vunpack.c.l.b16 %v1804
  %v2969 = vunpack.c.l.b16 %v1805
  %v2970 = vunpack.c.l.b16 %v1806
  %v2971 = vunpack.c.l.b16 %v1807
  %v2972 = vunpack.c.l.b16 %v1808
  %v2973 = vunpack.c.l.b16 %v1809
  %v2974 = vunpack.c.l.b16 %v1810
  %v2975 = vunpack.c.l.b16 %v1811
  %v2976 = vunpack.c.l.b16 %v1812
  %v2977 = vunpack.c.l.b16 %v1813
  %v2978 = vunpack.c.l.b16 %v1814
  %v2979 = vunpack.c.l.b16 %v1815
  %v2980 = vunpack.c.l.b16 %v1816
  %v2981 = vunpack.c.l.b16 %v1817
  %v2982 = vunpack.c.l.b16 %v1818
  %v2983 = vunpack.c.l.b16 %v1819
  %v2984 = vunpack.c.l.b16 %v1820
  %v2985 = vunpack.c.l.b16 %v1821
  %v2986 = vunpack.c.l.b16 %v1822
  %v2987 = vunpack.c.l.b16 %v1823
  %v2988 = vunpack.c.l.b16 %v1824
  %v2989 = vunpack.c.l.b16 %v1825
  %v2990 = vunpack.c.l.b16 %v1826
  %v2991 = vunpack.c.l.b16 %v1827
  %v2992 = vunpack.c.l.b16 %v1828
  %v2993 = vunpack.c.l.b16 %v1829
  %v2994 = vunpack.c.l.b16 %v1830
  %v2995 = vunpack.c.l.b16 %v1831
  %v2996 = vunpack.c.l.b16 %v1832
  %v2997 = vunpack.c.l.b16 %v1833
  %v2998 = vunpack.c.l.b16 %v1834
  %v2999 = vunpack.c.l.b16 %v1835
  %v3000 = vunpack.c.l.b16 %v1836
  %v3001 = vunpack.c.l.b16 %v1837
  %v3002 = vunpack.c.l.b16 %v1838
  %v3003 = vunpack.c.l.b16 %v1839
  %v3004 = vunpack.c.l.b16 %v1840
  %v3005 = vunpack.c.l.b16 %v1841
  %v3006 = vunpack.c.l.b16 %v1842
  %v3007 = vunpack.c.l.b16 %v1843
  %v3008 = vunpack.c.l.b16 %v1844
  %v3009 = vunpack.c.l.b16 %v1845
  %v3010 = vunpack.c.l.b16 %v1846
  %v3011 = vunpack.c.l.b16 %v1847
  %v3012 = vunpack.c.l.b16 %v1848
  %v3013 = vunpack.c.l.b16 %v1849
  %v3014 = vunpack.c.l.b16 %v1850
  %v3015 = vunpack.c.l.b16 %v1851
  %v3016 = vpack.c.b16 %v2969, %v2968
  %v3017 = vpack.c.b16 %v2971, %v2970
  %v3018 = vpack.c.b16 %v2973, %v2972
  %v3019 = vpack.c.b16 %v2975, %v2974
  %v3020 = vpack.c.b16 %v2977, %v2976
  %v3021 = vpack.c.b16 %v2979, %v2978
  %v3022 = vpack.c.b16 %v2981, %v2980
  %v3023 = vpack.c.b16 %v2983, %v2982
  %v3024 = vpack.c.b16 %v2985, %v2984
  %v3025 = vpack.c.b16 %v2987, %v2986
  %v3026 = vpack.c.b16 %v2989, %v2988
  %v3027 = vpack.c.b16 %v2991, %v2990
  %v3028 = vpack.c.b16 %v2993, %v2992
  %v3029 = vpack.c.b16 %v2995, %v2994
  %v3030 = vpack.c.b16 %v2997, %v2996
  %v3031 = vpack.c.b16 %v2999, %v2998
  %v3032 = vpack.c.b16 %v3001, %v3000
  %v3033 = vpack.c.b16 %v3003, %v3002
  %v3034 = vpack.c.b16 %v3005, %v3004
  %v3035 = vpack.c.b16 %v3007, %v3006
  %v3036 = vpack.c.b16 %v3009, %v3008
  %v3037 = vpack.c.b16 %v3011, %v3010
  %v3038 = vpack.c.b16 %v3013, %v3012
  %v3039 = vpack.c.b16 %v3015, %v3014
  %3064 = vmatprep.subr.bf16.mxu0 0
  %3065 = vmatpush1.bf16.msra.mxu0 %v3023
  %3066 = vmatprep.subr.bf16.mxu0 0
  %3067 = vmatpush1.bf16.msra.mxu0 %v3022
  %3068 = vmatprep.subr.bf16.mxu0 0
  %3069 = vmatpush1.bf16.msra.mxu0 %v3021
  %3070 = vmatprep.subr.bf16.mxu0 0
  %3071 = vmatpush1.bf16.msra.mxu0 %v3020
  %3072 = vmatprep.subr.bf16.mxu0 0
  %3073 = vmatpush1.bf16.msra.mxu0 %v3019
  %3074 = vmatprep.subr.bf16.mxu0 0
  %3075 = vmatpush1.bf16.msra.mxu0 %v3018
  %3076 = vmatprep.subr.bf16.mxu0 0
  %3077 = vmatpush1.bf16.msra.mxu0 %v3017
  %3078 = vmatprep.subr.bf16.mxu0 0
  %3079 = vmatpush1.bf16.msra.mxu0 %v3016
  %3080 = vmatprep.subr.bf16.mxu0 0
  %3081 = vmatpush2.bf16.msra.mxu0 %v3031
  %3082 = vmatprep.subr.bf16.mxu0 0
  %3083 = vmatpush2.bf16.msra.mxu0 %v3030
  %3084 = vmatprep.subr.bf16.mxu0 0
  %3085 = vmatpush2.bf16.msra.mxu0 %v3029
  %3086 = vmatprep.subr.bf16.mxu0 0
  %3087 = vmatpush2.bf16.msra.mxu0 %v3028
  %3088 = vmatprep.subr.bf16.mxu0 0
  %3089 = vmatpush2.bf16.msra.mxu0 %v3027
  %3090 = vmatprep.subr.bf16.mxu0 0
  %3091 = vmatpush2.bf16.msra.mxu0 %v3026
  %3092 = vmatprep.subr.bf16.mxu0 0
  %3093 = vmatpush2.bf16.msra.mxu0 %v3025
  %3094 = vmatprep.subr.bf16.mxu0 0
  %3095 = vmatpush2.bf16.msra.mxu0 %v3024
  %3096 = vmatprep.mubr.bf16.mxu0 %v2853
  %3097 = vmatmul.mubr.bf16.gmra.mxu0 %v2844
  %v3098 = vpop.f32.mrf.mxu0
  %v3099 = vadd.f32 0.0, %v3098
  %v3100 = vpop.f32.mrf.mxu0
  %v3101 = vpop.f32.mrf.mxu0
  %v3102 = vadd.f32 0.0, %v3101
  %v3103 = vpop.f32.mrf.mxu0
  %3104 = vmatprep.mubr.bf16.mxu0 %v2896
  %3105 = vmatmul.mubr.bf16.gmra.mxu0 %v2887
  %v3106 = vpop.f32.mrf.mxu0
  %v3107 = vadd.f32 0.0, %v3106
  %v3108 = vpop.f32.mrf.mxu0
  %v3109 = vpop.f32.mrf.mxu0
  %v3110 = vadd.f32 0.0, %v3109
  %v3111 = vpop.f32.mrf.mxu0
  %3112 = vdwg.mxu0
  %3113 = vmatprep.subr.bf16.mxu0 0
  %3114 = vmatpush1.bf16.msra.mxu0 %v3039
  %3115 = vmatprep.subr.bf16.mxu0 0
  %3116 = vmatpush1.bf16.msra.mxu0 %v3038
  %3117 = vmatprep.subr.bf16.mxu0 0
  %3118 = vmatpush1.bf16.msra.mxu0 %v3037
  %3119 = vmatprep.subr.bf16.mxu0 0
  %3120 = vmatpush1.bf16.msra.mxu0 %v3036
  %3121 = vmatprep.subr.bf16.mxu0 0
  %3122 = vmatpush1.bf16.msra.mxu0 %v3035
  %3123 = vmatprep.subr.bf16.mxu0 0
  %3124 = vmatpush1.bf16.msra.mxu0 %v3034
  %3125 = vmatprep.subr.bf16.mxu0 0
  %3126 = vmatpush1.bf16.msra.mxu0 %v3033
  %3127 = vmatprep.subr.bf16.mxu0 0
  %3128 = vmatpush1.bf16.msra.mxu0 %v3032
  %3129 = vmatprep.subr.bf16.mxu0 0
  %3130 = vmatpush2.bf16.msra.mxu0 0
  %3131 = vmatprep.subr.bf16.mxu0 0
  %3132 = vmatpush2.bf16.msra.mxu0 0
  %3133 = vmatprep.subr.bf16.mxu0 0
  %3134 = vmatpush2.bf16.msra.mxu0 0
  %3135 = vmatprep.subr.bf16.mxu0 0
  %3136 = vmatpush2.bf16.msra.mxu0 0
  %3137 = vmatprep.subr.bf16.mxu0 0
  %3138 = vmatpush2.bf16.msra.mxu0 0
  %3139 = vmatprep.subr.bf16.mxu0 0
  %3140 = vmatpush2.bf16.msra.mxu0 0
  %3141 = vmatprep.subr.bf16.mxu0 0
  %3142 = vmatpush2.bf16.msra.mxu0 0
  %3143 = vmatprep.subr.bf16.mxu0 0
  %3144 = vmatpush2.bf16.msra.mxu0 0
  %3145 = vmatprep.mubr.bf16.mxu0 0
  %3146 = vmatmul.mubr.bf16.gmra.mxu0 %v2870
  %v3147 = vpop.f32.mrf.mxu0
  %v3148 = vadd.f32 %v3099, %v3147
  %v3149 = vpop.f32.mrf.mxu0
  %v3150 = vpop.f32.mrf.mxu0
  %v3151 = vadd.f32 %v3102, %v3150
  %v3152 = vpop.f32.mrf.mxu0
  %3153 = vmatprep.mubr.bf16.mxu0 0
  %3154 = vmatmul.mubr.bf16.gmra.mxu0 %v2913
  %v3155 = vpop.f32.mrf.mxu0
  %v3156 = vadd.f32 %v3107, %v3155
  %v3157 = vpop.f32.mrf.mxu0
  %v3158 = vpop.f32.mrf.mxu0
  %v3159 = vadd.f32 %v3110, %v3158
  %v3160 = vpop.f32.mrf.mxu0
  %3161 = vdwg.mxu0
  %v3162 = vadd.f32 %v3148, %v3151
  %v3163 = vadd.f32 %v3162, %v3156
  %v3164 = vadd.f32 %v3163, %v3159
  %v3165 = vrot.slane %v3164, 4
  %v3166 = vadd.f32 %v3164, %v3165
  %v3167 = vrot.slane %v3166, 2
  %v3168 = vadd.f32 %v3166, %v3167
  %v3169 = vrot.slane %v3168, 1
  %v3170 = vadd.f32 %v3168, %v3169
  %v3171 = vmul.f32 %v3148, %v3148
  %v3172 = vmul.f32 %v3151, %v3151
  %v3173 = vmul.f32 %v3156, %v3156
  %v3174 = vmul.f32 %v3159, %v3159
  %v3175 = vadd.f32 %v3171, %v3172
  %v3176 = vadd.f32 %v3175, %v3173
  %v3177 = vadd.f32 %v3176, %v3174
  %v3178 = vrot.slane %v3177, 4
  %v3179 = vadd.f32 %v3177, %v3178
  %v3180 = vrot.slane %v3179, 2
  %v3181 = vadd.f32 %v3179, %v3180
  %v3182 = vrot.slane %v3181, 1
  %v3183 = vadd.f32 %v3181, %v3182
  %v3184 = vmul.f32 %v3170, 0.03125
  %v3185 = vmul.f32 %v3183, 0.03125
  %v3186 = vmul.f32 %v3184, %v3184
  %v3187 = vsub.f32 %v3185, %v3186
  %v3188 = vmax.f32 %v3187, 0.0
  %v3189 = vadd.f32 %v3188, 1e-05
  %v3190 = vrsqrt.pop %v3189
  %v3191 = vmul.f32 %v3184, %v3190
  %v3192 = vsub.f32 0.001, %v3191
  %v3193 = vadd.f32 %v1704, %v1705
  %v3194 = vadd.f32 %v3193, %v1706
  %v3195 = vadd.f32 %v3194, %v1707
  %v3196 = vrot.slane %v3195, 4
  %v3197 = vadd.f32 %v3195, %v3196
  %v3198 = vrot.slane %v3197, 2
  %v3199 = vadd.f32 %v3197, %v3198
  %v3200 = vrot.slane %v3199, 1
  %v3201 = vadd.f32 %v3199, %v3200
  %v3202 = vmul.f32 %v1704, %v1704
  %v3203 = vmul.f32 %v1705, %v1705
  %v3204 = vmul.f32 %v1706, %v1706
  %v3205 = vmul.f32 %v1707, %v1707
  %v3206 = vadd.f32 %v3202, %v3203
  %v3207 = vadd.f32 %v3206, %v3204
  %v3208 = vadd.f32 %v3207, %v3205
  %v3209 = vrot.slane %v3208, 4
  %v3210 = vadd.f32 %v3208, %v3209
  %v3211 = vrot.slane %v3210, 2
  %v3212 = vadd.f32 %v3210, %v3211
  %v3213 = vrot.slane %v3212, 1
  %v3214 = vadd.f32 %v3212, %v3213
  %v3215 = vmul.f32 %v3201, 0.03125
  %v3216 = vmul.f32 %v3214, 0.03125
  %v3217 = vmul.f32 %v3215, %v3215
  %v3218 = vsub.f32 %v3216, %v3217
  %v3219 = vmax.f32 %v3218, 0.0
  %v3220 = vadd.f32 %v3219, 1e-05
  %v3221 = vrsqrt.pop %v3220
  %v3222 = vmul.f32 %v3215, %v3221
  %v3223 = vsub.f32 0.001, %v3222
  %v3224 = vmul.f32 %v3148, %v3190
  %v3225 = vmul.f32 %v3151, %v3190
  %v3226 = vmul.f32 %v3156, %v3190
  %v3227 = vmul.f32 %v3159, %v3190
  %v3228 = vmul.f32 %v1704, %v3221
  %v3229 = vmul.f32 %v1705, %v3221
  %v3230 = vmul.f32 %v1706, %v3221
  %v3231 = vmul.f32 %v1707, %v3221
  %v3232 = vadd.f32 %v3224, %v3228
  %v3233 = vadd.f32 %v3225, %v3229
  %v3234 = vadd.f32 %v3226, %v3230
  %v3235 = vadd.f32 %v3227, %v3231
  %v3236 = vadd.f32 %v3192, %v3223
  %v3237 = vadd.f32 %v3232, %v3236
  %v3238 = vadd.f32 %v3233, %v3236
  %v3239 = vadd.f32 %v3234, %v3236
  %v3240 = vadd.f32 %v3235, %v3236
  %v3241 = vmax.f32 %v3237, 0.0
  %v3242 = vmax.f32 %v3238, 0.0
  %v3243 = vmax.f32 %v3239, 0.0
  %v3244 = vmax.f32 %v3240, 0.0
  %v3245 = vld [vmem:[%s8] sm:$0xf]
  %v3246 = vld [vmem:[%s8 + $0x4] sm:$0xf]
  %v3247 = vld [vmem:[%s8 + $0x8] sm:$0xf]
  %v3248 = vld [vmem:[%s8 + $0xc] sm:$0xf]
  %v3249 = vld [vmem:[%s8 + $0x10] sm:$0xf]
  %v3250 = vld [vmem:[%s8 + $0x14] sm:$0xf]
  %v3251 = vld [vmem:[%s8 + $0x18] sm:$0xf]
  %v3252 = vld [vmem:[%s8 + $0x1c] sm:$0xf]
  %v3253 = vld [vmem:[%s8 + $0x20] sm:$0xf]
  %v3254 = vld [vmem:[%s8 + $0x24] sm:$0xf]
  %v3255 = vld [vmem:[%s8 + $0x28] sm:$0xf]
  %v3256 = vld [vmem:[%s8 + $0x2c] sm:$0xf]
  %v3257 = vld [vmem:[%s8 + $0x30] sm:$0xf]
  %v3258 = vld [vmem:[%s8 + $0x34] sm:$0xf]
  %v3259 = vld [vmem:[%s8 + $0x38] sm:$0xf]
  %v3260 = vld [vmem:[%s8 + $0x3c] sm:$0xf]
  %v3261 = vld [vmem:[%s8 + $0x40] sm:$0xf]
  %v3262 = vld [vmem:[%s8 + $0x44] sm:$0xf]
  %v3263 = vld [vmem:[%s8 + $0x48] sm:$0xf]
  %v3264 = vld [vmem:[%s8 + $0x4c] sm:$0xf]
  %v3265 = vld [vmem:[%s8 + $0x50] sm:$0xf]
  %v3266 = vld [vmem:[%s8 + $0x54] sm:$0xf]
  %v3267 = vld [vmem:[%s8 + $0x58] sm:$0xf]
  %v3268 = vld [vmem:[%s8 + $0x5c] sm:$0xf]
  %v3269 = vld [vmem:[%s8 + $0x60] sm:$0xf]
  %v3270 = vld [vmem:[%s8 + $0x64] sm:$0xf]
  %v3271 = vld [vmem:[%s8 + $0x68] sm:$0xf]
  %v3272 = vld [vmem:[%s8 + $0x6c] sm:$0xf]
  %v3273 = vld [vmem:[%s8 + $0x70] sm:$0xf]
  %v3274 = vld [vmem:[%s8 + $0x74] sm:$0xf]
  %v3275 = vld [vmem:[%s8 + $0x78] sm:$0xf]
  %v3276 = vld [vmem:[%s8 + $0x7c] sm:$0xf]
  %v3277 = vld [vmem:[%s8 + $0x80] sm:$0xf]
  %v3278 = vld [vmem:[%s8 + $0x84] sm:$0xf]
  %v3279 = vld [vmem:[%s8 + $0x88] sm:$0xf]
  %v3280 = vld [vmem:[%s8 + $0x8c] sm:$0xf]
  %v3281 = vld [vmem:[%s8 + $0x90] sm:$0xf]
  %v3282 = vld [vmem:[%s8 + $0x94] sm:$0xf]
  %v3283 = vld [vmem:[%s8 + $0x98] sm:$0xf]
  %v3284 = vld [vmem:[%s8 + $0x9c] sm:$0xf]
  %v3285 = vld [vmem:[%s8 + $0xa0] sm:$0xf]
  %v3286 = vld [vmem:[%s8 + $0xa4] sm:$0xf]
  %v3287 = vld [vmem:[%s8 + $0xa8] sm:$0xf]
  %v3288 = vld [vmem:[%s8 + $0xac] sm:$0xf]
  %v3289 = vld [vmem:[%s8 + $0xb0] sm:$0xf]
  %v3290 = vld [vmem:[%s8 + $0xb4] sm:$0xf]
  %v3291 = vld [vmem:[%s8 + $0xb8] sm:$0xf]
  %v3292 = vld [vmem:[%s8 + $0xbc] sm:$0xf]
  %v3293 = vld [vmem:[%s9] sm:$0xf]
  %v3294 = vld [vmem:[%s9 + $0x4] sm:$0xf]
  %v3295 = vld [vmem:[%s9 + $0x8] sm:$0xf]
  %v3296 = vld [vmem:[%s9 + $0xc] sm:$0xf]
  %v3297 = vld [vmem:[%s9 + $0x10] sm:$0xf]
  %v3298 = vld [vmem:[%s9 + $0x14] sm:$0xf]
  %v3299 = vld [vmem:[%s9 + $0x18] sm:$0xf]
  %v3300 = vld [vmem:[%s9 + $0x1c] sm:$0xf]
  %v3301 = vld [vmem:[%s9 + $0x20] sm:$0xf]
  %v3302 = vld [vmem:[%s9 + $0x24] sm:$0xf]
  %v3303 = vld [vmem:[%s9 + $0x28] sm:$0xf]
  %v3304 = vld [vmem:[%s9 + $0x2c] sm:$0xf]
  %v3305 = vld [vmem:[%s9 + $0x30] sm:$0xf]
  %v3306 = vld [vmem:[%s9 + $0x34] sm:$0xf]
  %v3307 = vld [vmem:[%s9 + $0x38] sm:$0xf]
  %v3308 = vld [vmem:[%s9 + $0x3c] sm:$0xf]
  %v3309 = vld [vmem:[%s9 + $0x40] sm:$0xf]
  %v3310 = vld [vmem:[%s9 + $0x44] sm:$0xf]
  %v3311 = vld [vmem:[%s9 + $0x48] sm:$0xf]
  %v3312 = vld [vmem:[%s9 + $0x4c] sm:$0xf]
  %v3313 = vld [vmem:[%s9 + $0x50] sm:$0xf]
  %v3314 = vld [vmem:[%s9 + $0x54] sm:$0xf]
  %v3315 = vld [vmem:[%s9 + $0x58] sm:$0xf]
  %v3316 = vld [vmem:[%s9 + $0x5c] sm:$0xf]
  %v3317 = vld [vmem:[%s9 + $0x60] sm:$0xf]
  %v3318 = vld [vmem:[%s9 + $0x64] sm:$0xf]
  %v3319 = vld [vmem:[%s9 + $0x68] sm:$0xf]
  %v3320 = vld [vmem:[%s9 + $0x6c] sm:$0xf]
  %v3321 = vld [vmem:[%s9 + $0x70] sm:$0xf]
  %v3322 = vld [vmem:[%s9 + $0x74] sm:$0xf]
  %v3323 = vld [vmem:[%s9 + $0x78] sm:$0xf]
  %v3324 = vld [vmem:[%s9 + $0x7c] sm:$0xf]
  %v3325 = vld [vmem:[%s9 + $0x80] sm:$0xf]
  %v3326 = vld [vmem:[%s9 + $0x84] sm:$0xf]
  %v3327 = vld [vmem:[%s9 + $0x88] sm:$0xf]
  %v3328 = vld [vmem:[%s9 + $0x8c] sm:$0xf]
  %v3329 = vld [vmem:[%s9 + $0x90] sm:$0xf]
  %v3330 = vld [vmem:[%s9 + $0x94] sm:$0xf]
  %v3331 = vld [vmem:[%s9 + $0x98] sm:$0xf]
  %v3332 = vld [vmem:[%s9 + $0x9c] sm:$0xf]
  %v3333 = vld [vmem:[%s9 + $0xa0] sm:$0xf]
  %v3334 = vld [vmem:[%s9 + $0xa4] sm:$0xf]
  %v3335 = vld [vmem:[%s9 + $0xa8] sm:$0xf]
  %v3336 = vld [vmem:[%s9 + $0xac] sm:$0xf]
  %v3337 = vld [vmem:[%s9 + $0xb0] sm:$0xf]
  %v3338 = vld [vmem:[%s9 + $0xb4] sm:$0xf]
  %v3339 = vld [vmem:[%s9 + $0xb8] sm:$0xf]
  %v3340 = vld [vmem:[%s9 + $0xbc] sm:$0xf]
  %v3341 = vld [vmem:[%s10] sm:$0xf]
  %v3342 = vld [vmem:[%s10 + $0x4] sm:$0xf]
  %v3343 = vld [vmem:[%s10 + $0x8] sm:$0xf]
  %v3344 = vld [vmem:[%s10 + $0xc] sm:$0xf]
  %v3345 = vld [vmem:[%s10 + $0x10] sm:$0xf]
  %v3346 = vld [vmem:[%s10 + $0x14] sm:$0xf]
  %v3347 = vld [vmem:[%s10 + $0x18] sm:$0xf]
  %v3348 = vld [vmem:[%s10 + $0x1c] sm:$0xf]
  %v3349 = vld [vmem:[%s10 + $0x20] sm:$0xf]
  %v3350 = vld [vmem:[%s10 + $0x24] sm:$0xf]
  %v3351 = vld [vmem:[%s10 + $0x28] sm:$0xf]
  %v3352 = vld [vmem:[%s10 + $0x2c] sm:$0xf]
  %v3353 = vld [vmem:[%s10 + $0x30] sm:$0xf]
  %v3354 = vld [vmem:[%s10 + $0x34] sm:$0xf]
  %v3355 = vld [vmem:[%s10 + $0x38] sm:$0xf]
  %v3356 = vld [vmem:[%s10 + $0x3c] sm:$0xf]
  %v3357 = vld [vmem:[%s10 + $0x40] sm:$0xf]
  %v3358 = vld [vmem:[%s10 + $0x44] sm:$0xf]
  %v3359 = vld [vmem:[%s10 + $0x48] sm:$0xf]
  %v3360 = vld [vmem:[%s10 + $0x4c] sm:$0xf]
  %v3361 = vld [vmem:[%s10 + $0x50] sm:$0xf]
  %v3362 = vld [vmem:[%s10 + $0x54] sm:$0xf]
  %v3363 = vld [vmem:[%s10 + $0x58] sm:$0xf]
  %v3364 = vld [vmem:[%s10 + $0x5c] sm:$0xf]
  %v3365 = vld [vmem:[%s10 + $0x60] sm:$0xf]
  %v3366 = vld [vmem:[%s10 + $0x64] sm:$0xf]
  %v3367 = vld [vmem:[%s10 + $0x68] sm:$0xf]
  %v3368 = vld [vmem:[%s10 + $0x6c] sm:$0xf]
  %v3369 = vld [vmem:[%s10 + $0x70] sm:$0xf]
  %v3370 = vld [vmem:[%s10 + $0x74] sm:$0xf]
  %v3371 = vld [vmem:[%s10 + $0x78] sm:$0xf]
  %v3372 = vld [vmem:[%s10 + $0x7c] sm:$0xf]
  %v3373 = vld [vmem:[%s10 + $0x80] sm:$0xf]
  %v3374 = vld [vmem:[%s10 + $0x84] sm:$0xf]
  %v3375 = vld [vmem:[%s10 + $0x88] sm:$0xf]
  %v3376 = vld [vmem:[%s10 + $0x8c] sm:$0xf]
  %v3377 = vld [vmem:[%s10 + $0x90] sm:$0xf]
  %v3378 = vld [vmem:[%s10 + $0x94] sm:$0xf]
  %v3379 = vld [vmem:[%s10 + $0x98] sm:$0xf]
  %v3380 = vld [vmem:[%s10 + $0x9c] sm:$0xf]
  %v3381 = vld [vmem:[%s10 + $0xa0] sm:$0xf]
  %v3382 = vld [vmem:[%s10 + $0xa4] sm:$0xf]
  %v3383 = vld [vmem:[%s10 + $0xa8] sm:$0xf]
  %v3384 = vld [vmem:[%s10 + $0xac] sm:$0xf]
  %v3385 = vld [vmem:[%s10 + $0xb0] sm:$0xf]
  %v3386 = vld [vmem:[%s10 + $0xb4] sm:$0xf]
  %v3387 = vld [vmem:[%s10 + $0xb8] sm:$0xf]
  %v3388 = vld [vmem:[%s10 + $0xbc] sm:$0xf]
  %v3389 = vpack.c.bf16 %v3242, %v3241
  %v3390 = vpack.c.bf16 %v3244, %v3243
  %v3393 = vunpack.c.l.b16 %v3389
  %v3394 = vunpack.c.h.b16 %v3389
  %v3395 = vunpack.c.l.b16 %v3390
  %v3396 = vunpack.c.h.b16 %v3390
  %v3397 = vpack.c.b16 %v3393, %v3393
  %v3398 = vpack.c.b16 %v3394, %v3394
  %v3399 = vpack.c.b16 %v3395, %v3395
  %v3400 = vpack.c.b16 %v3396, %v3396
  %3405 = vst [vmem:[#allocation2 + $0x8] sm:$0xf] %v3397
  %3406 = vst [vmem:[#allocation2 + $0xc] sm:$0xf] %v3398
  %3407 = vst [vmem:[#allocation2 + $0x20] sm:$0xf] %v3399
  %3408 = vst [vmem:[#allocation2 + $0x24] sm:$0xf] %v3400
  %v3409 = vld [vmem:[#allocation2 + $0x4] sm:$0x8]
  %v3410 = vld [vmem:[#allocation2 + $0x8] sm:$0xf]
  %v3411 = vld [vmem:[#allocation2 + $0xc] sm:$0xf]
  %v3412 = vld [vmem:[#allocation2 + $0x1c] sm:$0x8]
  %v3413 = vld [vmem:[#allocation2 + $0x20] sm:$0xf]
  %v3414 = vld [vmem:[#allocation2 + $0x24] sm:$0xf]
  %v3415 = vld [vmem:[#allocation2 + $0x10] sm:$0x1]
  %v3416 = vld [vmem:[#allocation2 + $0x28] sm:$0x1]
  %v3423 = vunpack.c.l.b16 %v3409
  %v3424 = vunpack.c.l.b16 %v3410
  %v3425 = vunpack.c.l.b16 %v3411
  %v3426 = vunpack.c.l.b16 %v3412
  %v3427 = vunpack.c.l.b16 %v3413
  %v3428 = vunpack.c.l.b16 %v3414
  %v3429 = vpack.c.b16 %v3424, %v3423
  %v3430 = vpack.c.b16 %v3425, %v3425
  %v3431 = vpack.c.b16 %v3427, %v3426
  %v3432 = vpack.c.b16 %v3428, %v3428
  %v3433 = vpack.c.b16 %v3425, %v3424
  %v3434 = vpack.c.b16 %v3428, %v3427
  %v3436 = vshrl.u32 %v3433, 16
  %v3438 = vrot.slane %v3436, 4
  %v3439 = vshll.u32 %v3433, 16
  %v3441 = vrot.slane %v3439, 5
  %v3442 = vor.u32 %v3438, %v3441
  %v3444 = vshrl.u32 %v3434, 16
  %v3446 = vrot.slane %v3444, 4
  %v3447 = vshll.u32 %v3434, 16
  %v3449 = vrot.slane %v3447, 5
  %v3450 = vor.u32 %v3446, %v3449
  %v3453 = vunpack.c.l.b16 %v3415
  %v3454 = vunpack.c.l.b16 %v3416
  %v3455 = vpack.c.b16 %v3453, %v3453
  %v3456 = vpack.c.b16 %v3454, %v3454
  %v3457 = vrot.slane %v3433, 5
  %v3458 = vrot.slane %v3455, 5
  %v3459 = vsel %vm266, %v3457, %v3458
  %v3460 = vrot.slane %v3434, 5
  %v3461 = vrot.slane %v3456, 5
  %v3462 = vsel %vm266, %v3460, %v3461
  %v3464 = vshrl.u32 %v3429, 16
  %v3466 = vrot.slane %v3464, 3
  %v3467 = vshll.u32 %v3429, 16
  %v3469 = vrot.slane %v3467, 4
  %v3470 = vor.u32 %v3466, %v3469
  %v3472 = vshrl.u32 %v3430, 16
  %v3474 = vrot.slane %v3472, 3
  %v3475 = vshll.u32 %v3430, 16
  %v3477 = vrot.slane %v3475, 4
  %v3478 = vor.u32 %v3474, %v3477
  %v3479 = vsel %vm273, %v3470, %v3478
  %v3481 = vshrl.u32 %v3442, 16
  %v3483 = vrot.slane %v3481, 3
  %v3484 = vshll.u32 %v3442, 16
  %v3486 = vrot.slane %v3484, 4
  %v3487 = vor.u32 %v3483, %v3486
  %v3488 = vsel %vm273, %v3487, %v3487
  %v3490 = vshrl.u32 %v3457, 16
  %v3492 = vrot.slane %v3490, 3
  %v3493 = vshll.u32 %v3457, 16
  %v3495 = vrot.slane %v3493, 4
  %v3496 = vor.u32 %v3492, %v3495
  %v3498 = vshrl.u32 %v3459, 16
  %v3500 = vrot.slane %v3498, 3
  %v3501 = vshll.u32 %v3459, 16
  %v3503 = vrot.slane %v3501, 4
  %v3504 = vor.u32 %v3500, %v3503
  %v3505 = vsel %vm273, %v3496, %v3504
  %v3507 = vshrl.u32 %v3431, 16
  %v3509 = vrot.slane %v3507, 3
  %v3510 = vshll.u32 %v3431, 16
  %v3512 = vrot.slane %v3510, 4
  %v3513 = vor.u32 %v3509, %v3512
  %v3515 = vshrl.u32 %v3432, 16
  %v3517 = vrot.slane %v3515, 3
  %v3518 = vshll.u32 %v3432, 16
  %v3520 = vrot.slane %v3518, 4
  %v3521 = vor.u32 %v3517, %v3520
  %v3522 = vsel %vm273, %v3513, %v3521
  %v3524 = vshrl.u32 %v3450, 16
  %v3526 = vrot.slane %v3524, 3
  %v3527 = vshll.u32 %v3450, 16
  %v3529 = vrot.slane %v3527, 4
  %v3530 = vor.u32 %v3526, %v3529
  %v3531 = vsel %vm273, %v3530, %v3530
  %v3533 = vshrl.u32 %v3460, 16
  %v3535 = vrot.slane %v3533, 3
  %v3536 = vshll.u32 %v3460, 16
  %v3538 = vrot.slane %v3536, 4
  %v3539 = vor.u32 %v3535, %v3538
  %v3541 = vshrl.u32 %v3462, 16
  %v3543 = vrot.slane %v3541, 3
  %v3544 = vshll.u32 %v3462, 16
  %v3546 = vrot.slane %v3544, 4
  %v3547 = vor.u32 %v3543, %v3546
  %v3548 = vsel %vm273, %v3539, %v3547
  %v3603 = vunpack.c.l.b16 %v3245
  %v3604 = vunpack.c.l.b16 %v3246
  %v3605 = vunpack.c.l.b16 %v3247
  %v3606 = vunpack.c.l.b16 %v3248
  %v3607 = vunpack.c.l.b16 %v3249
  %v3608 = vunpack.c.l.b16 %v3250
  %v3609 = vunpack.c.l.b16 %v3251
  %v3610 = vunpack.c.l.b16 %v3252
  %v3611 = vunpack.c.l.b16 %v3253
  %v3612 = vunpack.c.l.b16 %v3254
  %v3613 = vunpack.c.l.b16 %v3255
  %v3614 = vunpack.c.l.b16 %v3256
  %v3615 = vunpack.c.l.b16 %v3257
  %v3616 = vunpack.c.l.b16 %v3258
  %v3617 = vunpack.c.l.b16 %v3259
  %v3618 = vunpack.c.l.b16 %v3260
  %v3619 = vunpack.c.l.b16 %v3261
  %v3620 = vunpack.c.l.b16 %v3262
  %v3621 = vunpack.c.l.b16 %v3263
  %v3622 = vunpack.c.l.b16 %v3264
  %v3623 = vunpack.c.l.b16 %v3265
  %v3624 = vunpack.c.l.b16 %v3266
  %v3625 = vunpack.c.l.b16 %v3267
  %v3626 = vunpack.c.l.b16 %v3268
  %v3627 = vunpack.c.l.b16 %v3269
  %v3628 = vunpack.c.l.b16 %v3270
  %v3629 = vunpack.c.l.b16 %v3271
  %v3630 = vunpack.c.l.b16 %v3272
  %v3631 = vunpack.c.l.b16 %v3273
  %v3632 = vunpack.c.l.b16 %v3274
  %v3633 = vunpack.c.l.b16 %v3275
  %v3634 = vunpack.c.l.b16 %v3276
  %v3635 = vunpack.c.l.b16 %v3277
  %v3636 = vunpack.c.l.b16 %v3278
  %v3637 = vunpack.c.l.b16 %v3279
  %v3638 = vunpack.c.l.b16 %v3280
  %v3639 = vunpack.c.l.b16 %v3281
  %v3640 = vunpack.c.l.b16 %v3282
  %v3641 = vunpack.c.l.b16 %v3283
  %v3642 = vunpack.c.l.b16 %v3284
  %v3643 = vunpack.c.l.b16 %v3285
  %v3644 = vunpack.c.l.b16 %v3286
  %v3645 = vunpack.c.l.b16 %v3287
  %v3646 = vunpack.c.l.b16 %v3288
  %v3647 = vunpack.c.l.b16 %v3289
  %v3648 = vunpack.c.l.b16 %v3290
  %v3649 = vunpack.c.l.b16 %v3291
  %v3650 = vunpack.c.l.b16 %v3292
  %v3651 = vpack.c.b16 %v3604, %v3603
  %v3652 = vpack.c.b16 %v3606, %v3605
  %v3653 = vpack.c.b16 %v3608, %v3607
  %v3654 = vpack.c.b16 %v3610, %v3609
  %v3655 = vpack.c.b16 %v3612, %v3611
  %v3656 = vpack.c.b16 %v3614, %v3613
  %v3657 = vpack.c.b16 %v3616, %v3615
  %v3658 = vpack.c.b16 %v3618, %v3617
  %v3659 = vpack.c.b16 %v3620, %v3619
  %v3660 = vpack.c.b16 %v3622, %v3621
  %v3661 = vpack.c.b16 %v3624, %v3623
  %v3662 = vpack.c.b16 %v3626, %v3625
  %v3663 = vpack.c.b16 %v3628, %v3627
  %v3664 = vpack.c.b16 %v3630, %v3629
  %v3665 = vpack.c.b16 %v3632, %v3631
  %v3666 = vpack.c.b16 %v3634, %v3633
  %v3667 = vpack.c.b16 %v3636, %v3635
  %v3668 = vpack.c.b16 %v3638, %v3637
  %v3669 = vpack.c.b16 %v3640, %v3639
  %v3670 = vpack.c.b16 %v3642, %v3641
  %v3671 = vpack.c.b16 %v3644, %v3643
  %v3672 = vpack.c.b16 %v3646, %v3645
  %v3673 = vpack.c.b16 %v3648, %v3647
  %v3674 = vpack.c.b16 %v3650, %v3649
  %3699 = vmatprep.subr.bf16.mxu0 0
  %3700 = vmatpush1.bf16.msra.mxu0 %v3658
  %3701 = vmatprep.subr.bf16.mxu0 0
  %3702 = vmatpush1.bf16.msra.mxu0 %v3657
  %3703 = vmatprep.subr.bf16.mxu0 0
  %3704 = vmatpush1.bf16.msra.mxu0 %v3656
  %3705 = vmatprep.subr.bf16.mxu0 0
  %3706 = vmatpush1.bf16.msra.mxu0 %v3655
  %3707 = vmatprep.subr.bf16.mxu0 0
  %3708 = vmatpush1.bf16.msra.mxu0 %v3654
  %3709 = vmatprep.subr.bf16.mxu0 0
  %3710 = vmatpush1.bf16.msra.mxu0 %v3653
  %3711 = vmatprep.subr.bf16.mxu0 0
  %3712 = vmatpush1.bf16.msra.mxu0 %v3652
  %3713 = vmatprep.subr.bf16.mxu0 0
  %3714 = vmatpush1.bf16.msra.mxu0 %v3651
  %3715 = vmatprep.subr.bf16.mxu0 0
  %3716 = vmatpush2.bf16.msra.mxu0 %v3666
  %3717 = vmatprep.subr.bf16.mxu0 0
  %3718 = vmatpush2.bf16.msra.mxu0 %v3665
  %3719 = vmatprep.subr.bf16.mxu0 0
  %3720 = vmatpush2.bf16.msra.mxu0 %v3664
  %3721 = vmatprep.subr.bf16.mxu0 0
  %3722 = vmatpush2.bf16.msra.mxu0 %v3663
  %3723 = vmatprep.subr.bf16.mxu0 0
  %3724 = vmatpush2.bf16.msra.mxu0 %v3662
  %3725 = vmatprep.subr.bf16.mxu0 0
  %3726 = vmatpush2.bf16.msra.mxu0 %v3661
  %3727 = vmatprep.subr.bf16.mxu0 0
  %3728 = vmatpush2.bf16.msra.mxu0 %v3660
  %3729 = vmatprep.subr.bf16.mxu0 0
  %3730 = vmatpush2.bf16.msra.mxu0 %v3659
  %3731 = vmatprep.mubr.bf16.mxu0 %v3488
  %3732 = vmatmul.mubr.bf16.gmra.mxu0 %v3479
  %v3733 = vpop.f32.mrf.mxu0
  %v3734 = vadd.f32 0.0, %v3733
  %v3735 = vpop.f32.mrf.mxu0
  %v3736 = vpop.f32.mrf.mxu0
  %v3737 = vadd.f32 0.0, %v3736
  %v3738 = vpop.f32.mrf.mxu0
  %3739 = vmatprep.mubr.bf16.mxu0 %v3531
  %3740 = vmatmul.mubr.bf16.gmra.mxu0 %v3522
  %v3741 = vpop.f32.mrf.mxu0
  %v3742 = vadd.f32 0.0, %v3741
  %v3743 = vpop.f32.mrf.mxu0
  %v3744 = vpop.f32.mrf.mxu0
  %v3745 = vadd.f32 0.0, %v3744
  %v3746 = vpop.f32.mrf.mxu0
  %3747 = vdwg.mxu0
  %3748 = vmatprep.subr.bf16.mxu0 0
  %3749 = vmatpush1.bf16.msra.mxu0 %v3674
  %3750 = vmatprep.subr.bf16.mxu0 0
  %3751 = vmatpush1.bf16.msra.mxu0 %v3673
  %3752 = vmatprep.subr.bf16.mxu0 0
  %3753 = vmatpush1.bf16.msra.mxu0 %v3672
  %3754 = vmatprep.subr.bf16.mxu0 0
  %3755 = vmatpush1.bf16.msra.mxu0 %v3671
  %3756 = vmatprep.subr.bf16.mxu0 0
  %3757 = vmatpush1.bf16.msra.mxu0 %v3670
  %3758 = vmatprep.subr.bf16.mxu0 0
  %3759 = vmatpush1.bf16.msra.mxu0 %v3669
  %3760 = vmatprep.subr.bf16.mxu0 0
  %3761 = vmatpush1.bf16.msra.mxu0 %v3668
  %3762 = vmatprep.subr.bf16.mxu0 0
  %3763 = vmatpush1.bf16.msra.mxu0 %v3667
  %3764 = vmatprep.subr.bf16.mxu0 0
  %3765 = vmatpush2.bf16.msra.mxu0 0
  %3766 = vmatprep.subr.bf16.mxu0 0
  %3767 = vmatpush2.bf16.msra.mxu0 0
  %3768 = vmatprep.subr.bf16.mxu0 0
  %3769 = vmatpush2.bf16.msra.mxu0 0
  %3770 = vmatprep.subr.bf16.mxu0 0
  %3771 = vmatpush2.bf16.msra.mxu0 0
  %3772 = vmatprep.subr.bf16.mxu0 0
  %3773 = vmatpush2.bf16.msra.mxu0 0
  %3774 = vmatprep.subr.bf16.mxu0 0
  %3775 = vmatpush2.bf16.msra.mxu0 0
  %3776 = vmatprep.subr.bf16.mxu0 0
  %3777 = vmatpush2.bf16.msra.mxu0 0
  %3778 = vmatprep.subr.bf16.mxu0 0
  %3779 = vmatpush2.bf16.msra.mxu0 0
  %3780 = vmatprep.mubr.bf16.mxu0 0
  %3781 = vmatmul.mubr.bf16.gmra.mxu0 %v3505
  %v3782 = vpop.f32.mrf.mxu0
  %v3783 = vadd.f32 %v3734, %v3782
  %v3784 = vpop.f32.mrf.mxu0
  %v3785 = vpop.f32.mrf.mxu0
  %v3786 = vadd.f32 %v3737, %v3785
  %v3787 = vpop.f32.mrf.mxu0
  %3788 = vmatprep.mubr.bf16.mxu0 0
  %3789 = vmatmul.mubr.bf16.gmra.mxu0 %v3548
  %v3790 = vpop.f32.mrf.mxu0
  %v3791 = vadd.f32 %v3742, %v3790
  %v3792 = vpop.f32.mrf.mxu0
  %v3793 = vpop.f32.mrf.mxu0
  %v3794 = vadd.f32 %v3745, %v3793
  %v3795 = vpop.f32.mrf.mxu0
  %3796 = vdwg.mxu0
  %v3797 = vld [vmem:[%s11] sm:$0xf]
  %v3798 = vld [vmem:[%s11 + $0x4] sm:$0xf]
  %v3799 = vld [vmem:[%s11 + $0x8] sm:$0xf]
  %v3800 = vld [vmem:[%s11 + $0xc] sm:$0xf]
  %v3801 = vld [vmem:[%s11 + $0x10] sm:$0xf]
  %v3802 = vld [vmem:[%s11 + $0x14] sm:$0xf]
  %v3803 = vld [vmem:[%s11 + $0x18] sm:$0xf]
  %v3804 = vld [vmem:[%s11 + $0x1c] sm:$0xf]
  %v3805 = vld [vmem:[%s11 + $0x20] sm:$0xf]
  %v3806 = vld [vmem:[%s11 + $0x24] sm:$0xf]
  %v3807 = vld [vmem:[%s11 + $0x28] sm:$0xf]
  %v3808 = vld [vmem:[%s11 + $0x2c] sm:$0xf]
  %v3809 = vld [vmem:[%s11 + $0x30] sm:$0xf]
  %v3810 = vld [vmem:[%s11 + $0x34] sm:$0xf]
  %v3811 = vld [vmem:[%s11 + $0x38] sm:$0xf]
  %v3812 = vld [vmem:[%s11 + $0x3c] sm:$0xf]
  %v3831 = vunpack.c.l.b16 %v3797
  %v3832 = vunpack.c.l.b16 %v3798
  %v3833 = vunpack.c.l.b16 %v3799
  %v3834 = vunpack.c.l.b16 %v3800
  %v3835 = vunpack.c.l.b16 %v3801
  %v3836 = vunpack.c.l.b16 %v3802
  %v3837 = vunpack.c.l.b16 %v3803
  %v3838 = vunpack.c.l.b16 %v3804
  %v3839 = vunpack.c.l.b16 %v3805
  %v3840 = vunpack.c.l.b16 %v3806
  %v3841 = vunpack.c.l.b16 %v3807
  %v3842 = vunpack.c.l.b16 %v3808
  %v3843 = vunpack.c.l.b16 %v3809
  %v3844 = vunpack.c.l.b16 %v3810
  %v3845 = vunpack.c.l.b16 %v3811
  %v3846 = vunpack.c.l.b16 %v3812
  %v3847 = vpack.c.b16 %v3832, %v3831
  %v3848 = vpack.c.b16 %v3834, %v3833
  %v3849 = vpack.c.b16 %v3836, %v3835
  %v3850 = vpack.c.b16 %v3838, %v3837
  %v3851 = vpack.c.b16 %v3840, %v3839
  %v3852 = vpack.c.b16 %v3842, %v3841
  %v3853 = vpack.c.b16 %v3844, %v3843
  %v3854 = vpack.c.b16 %v3846, %v3845
  %3863 = vmatprep.subr.bf16.mxu0 0
  %3864 = vmatpush1.bf16.msra.mxu0 %v3854
  %3865 = vmatprep.subr.bf16.mxu0 0
  %3866 = vmatpush1.bf16.msra.mxu0 %v3853
  %3867 = vmatprep.subr.bf16.mxu0 0
  %3868 = vmatpush1.bf16.msra.mxu0 %v3852
  %3869 = vmatprep.subr.bf16.mxu0 0
  %3870 = vmatpush1.bf16.msra.mxu0 %v3851
  %3871 = vmatprep.subr.bf16.mxu0 0
  %3872 = vmatpush1.bf16.msra.mxu0 %v3850
  %3873 = vmatprep.subr.bf16.mxu0 0
  %3874 = vmatpush1.bf16.msra.mxu0 %v3849
  %3875 = vmatprep.subr.bf16.mxu0 0
  %3876 = vmatpush1.bf16.msra.mxu0 %v3848
  %3877 = vmatprep.subr.bf16.mxu0 0
  %3878 = vmatpush1.bf16.msra.mxu0 %v3847
  %3879 = vmatprep.subr.bf16.mxu0 0
  %3880 = vmatpush2.bf16.msra.mxu0 0
  %3881 = vmatprep.subr.bf16.mxu0 0
  %3882 = vmatpush2.bf16.msra.mxu0 0
  %3883 = vmatprep.subr.bf16.mxu0 0
  %3884 = vmatpush2.bf16.msra.mxu0 0
  %3885 = vmatprep.subr.bf16.mxu0 0
  %3886 = vmatpush2.bf16.msra.mxu0 0
  %3887 = vmatprep.subr.bf16.mxu0 0
  %3888 = vmatpush2.bf16.msra.mxu0 0
  %3889 = vmatprep.subr.bf16.mxu0 0
  %3890 = vmatpush2.bf16.msra.mxu0 0
  %3891 = vmatprep.subr.bf16.mxu0 0
  %3892 = vmatpush2.bf16.msra.mxu0 0
  %3893 = vmatprep.subr.bf16.mxu0 0
  %3894 = vmatpush2.bf16.msra.mxu0 0
  %3895 = vmatprep.mubr.bf16.mxu0 0
  %3896 = vmatmul.mubr.bf16.gmra.mxu0 %v3433
  %v3897 = vpop.f32.mrf.mxu0
  %v3898 = vadd.f32 0.0, %v3897
  %v3899 = vpop.f32.mrf.mxu0
  %v3900 = vpop.f32.mrf.mxu0
  %v3901 = vadd.f32 0.0, %v3900
  %v3902 = vpop.f32.mrf.mxu0
  %3903 = vmatprep.mubr.bf16.mxu0 0
  %3904 = vmatmul.mubr.bf16.gmra.mxu0 %v3434
  %v3905 = vpop.f32.mrf.mxu0
  %v3906 = vadd.f32 0.0, %v3905
  %v3907 = vpop.f32.mrf.mxu0
  %v3908 = vpop.f32.mrf.mxu0
  %v3909 = vadd.f32 0.0, %v3908
  %v3910 = vpop.f32.mrf.mxu0
  %3911 = vdwg.mxu0
  %v3912 = vadd.f32 %v3783, %v3786
  %v3913 = vadd.f32 %v3912, %v3791
  %v3914 = vadd.f32 %v3913, %v3794
  %v3915 = vrot.slane %v3914, 4
  %v3916 = vadd.f32 %v3914, %v3915
  %v3917 = vrot.slane %v3916, 2
  %v3918 = vadd.f32 %v3916, %v3917
  %v3919 = vrot.slane %v3918, 1
  %v3920 = vadd.f32 %v3918, %v3919
  %v3921 = vmul.f32 %v3783, %v3783
  %v3922 = vmul.f32 %v3786, %v3786
  %v3923 = vmul.f32 %v3791, %v3791
  %v3924 = vmul.f32 %v3794, %v3794
  %v3925 = vadd.f32 %v3921, %v3922
  %v3926 = vadd.f32 %v3925, %v3923
  %v3927 = vadd.f32 %v3926, %v3924
  %v3928 = vrot.slane %v3927, 4
  %v3929 = vadd.f32 %v3927, %v3928
  %v3930 = vrot.slane %v3929, 2
  %v3931 = vadd.f32 %v3929, %v3930
  %v3932 = vrot.slane %v3931, 1
  %v3933 = vadd.f32 %v3931, %v3932
  %v3934 = vmul.f32 %v3920, 0.03125
  %v3935 = vmul.f32 %v3933, 0.03125
  %v3936 = vmul.f32 %v3934, %v3934
  %v3937 = vsub.f32 %v3935, %v3936
  %v3938 = vmax.f32 %v3937, 0.0
  %v3939 = vadd.f32 %v3938, 1e-05
  %v3940 = vrsqrt.pop %v3939
  %v3941 = vmul.f32 %v3934, %v3940
  %v3942 = vsub.f32 0.001, %v3941
  %v3943 = vmul.f32 %v3783, %v3940
  %v3944 = vmul.f32 %v3786, %v3940
  %v3945 = vmul.f32 %v3791, %v3940
  %v3946 = vmul.f32 %v3794, %v3940
  %v3947 = vadd.f32 %v3943, %v3942
  %v3948 = vadd.f32 %v3944, %v3942
  %v3949 = vadd.f32 %v3945, %v3942
  %v3950 = vadd.f32 %v3946, %v3942
  %v3951 = vmax.f32 %v3947, 0.0
  %v3952 = vmax.f32 %v3948, 0.0
  %v3953 = vmax.f32 %v3949, 0.0
  %v3954 = vmax.f32 %v3950, 0.0
  %v3955 = vpack.c.bf16 %v3952, %v3951
  %v3956 = vpack.c.bf16 %v3954, %v3953
  %v3959 = vunpack.c.l.b16 %v3955
  %v3960 = vunpack.c.h.b16 %v3955
  %v3961 = vunpack.c.l.b16 %v3956
  %v3962 = vunpack.c.h.b16 %v3956
  %v3963 = vpack.c.b16 %v3959, %v3959
  %v3964 = vpack.c.b16 %v3960, %v3960
  %v3965 = vpack.c.b16 %v3961, %v3961
  %v3966 = vpack.c.b16 %v3962, %v3962
  %3971 = vst [vmem:[#allocation2 + $0x8] sm:$0xf] %v3963
  %3972 = vst [vmem:[#allocation2 + $0xc] sm:$0xf] %v3964
  %3973 = vst [vmem:[#allocation2 + $0x20] sm:$0xf] %v3965
  %3974 = vst [vmem:[#allocation2 + $0x24] sm:$0xf] %v3966
  %v3975 = vld [vmem:[#allocation2 + $0x4] sm:$0x8]
  %v3976 = vld [vmem:[#allocation2 + $0x8] sm:$0xf]
  %v3977 = vld [vmem:[#allocation2 + $0xc] sm:$0xf]
  %v3978 = vld [vmem:[#allocation2 + $0x1c] sm:$0x8]
  %v3979 = vld [vmem:[#allocation2 + $0x20] sm:$0xf]
  %v3980 = vld [vmem:[#allocation2 + $0x24] sm:$0xf]
  %v3981 = vld [vmem:[#allocation2 + $0x10] sm:$0x1]
  %v3982 = vld [vmem:[#allocation2 + $0x28] sm:$0x1]
  %v3989 = vunpack.c.l.b16 %v3975
  %v3990 = vunpack.c.l.b16 %v3976
  %v3991 = vunpack.c.l.b16 %v3977
  %v3992 = vunpack.c.l.b16 %v3978
  %v3993 = vunpack.c.l.b16 %v3979
  %v3994 = vunpack.c.l.b16 %v3980
  %v3995 = vpack.c.b16 %v3990, %v3989
  %v3996 = vpack.c.b16 %v3991, %v3991
  %v3997 = vpack.c.b16 %v3993, %v3992
  %v3998 = vpack.c.b16 %v3994, %v3994
  %v3999 = vpack.c.b16 %v3991, %v3990
  %v4000 = vpack.c.b16 %v3994, %v3993
  %v4002 = vshrl.u32 %v3999, 16
  %v4004 = vrot.slane %v4002, 4
  %v4005 = vshll.u32 %v3999, 16
  %v4007 = vrot.slane %v4005, 5
  %v4008 = vor.u32 %v4004, %v4007
  %v4010 = vshrl.u32 %v4000, 16
  %v4012 = vrot.slane %v4010, 4
  %v4013 = vshll.u32 %v4000, 16
  %v4015 = vrot.slane %v4013, 5
  %v4016 = vor.u32 %v4012, %v4015
  %v4019 = vunpack.c.l.b16 %v3981
  %v4020 = vunpack.c.l.b16 %v3982
  %v4021 = vpack.c.b16 %v4019, %v4019
  %v4022 = vpack.c.b16 %v4020, %v4020
  %v4023 = vrot.slane %v3999, 5
  %v4024 = vrot.slane %v4021, 5
  %v4025 = vsel %vm266, %v4023, %v4024
  %v4026 = vrot.slane %v4000, 5
  %v4027 = vrot.slane %v4022, 5
  %v4028 = vsel %vm266, %v4026, %v4027
  %v4030 = vshrl.u32 %v3995, 16
  %v4032 = vrot.slane %v4030, 3
  %v4033 = vshll.u32 %v3995, 16
  %v4035 = vrot.slane %v4033, 4
  %v4036 = vor.u32 %v4032, %v4035
  %v4038 = vshrl.u32 %v3996, 16
  %v4040 = vrot.slane %v4038, 3
  %v4041 = vshll.u32 %v3996, 16
  %v4043 = vrot.slane %v4041, 4
  %v4044 = vor.u32 %v4040, %v4043
  %v4045 = vsel %vm273, %v4036, %v4044
  %v4047 = vshrl.u32 %v4008, 16
  %v4049 = vrot.slane %v4047, 3
  %v4050 = vshll.u32 %v4008, 16
  %v4052 = vrot.slane %v4050, 4
  %v4053 = vor.u32 %v4049, %v4052
  %v4054 = vsel %vm273, %v4053, %v4053
  %v4056 = vshrl.u32 %v4023, 16
  %v4058 = vrot.slane %v4056, 3
  %v4059 = vshll.u32 %v4023, 16
  %v4061 = vrot.slane %v4059, 4
  %v4062 = vor.u32 %v4058, %v4061
  %v4064 = vshrl.u32 %v4025, 16
  %v4066 = vrot.slane %v4064, 3
  %v4067 = vshll.u32 %v4025, 16
  %v4069 = vrot.slane %v4067, 4
  %v4070 = vor.u32 %v4066, %v4069
  %v4071 = vsel %vm273, %v4062, %v4070
  %v4073 = vshrl.u32 %v3997, 16
  %v4075 = vrot.slane %v4073, 3
  %v4076 = vshll.u32 %v3997, 16
  %v4078 = vrot.slane %v4076, 4
  %v4079 = vor.u32 %v4075, %v4078
  %v4081 = vshrl.u32 %v3998, 16
  %v4083 = vrot.slane %v4081, 3
  %v4084 = vshll.u32 %v3998, 16
  %v4086 = vrot.slane %v4084, 4
  %v4087 = vor.u32 %v4083, %v4086
  %v4088 = vsel %vm273, %v4079, %v4087
  %v4090 = vshrl.u32 %v4016, 16
  %v4092 = vrot.slane %v4090, 3
  %v4093 = vshll.u32 %v4016, 16
  %v4095 = vrot.slane %v4093, 4
  %v4096 = vor.u32 %v4092, %v4095
  %v4097 = vsel %vm273, %v4096, %v4096
  %v4099 = vshrl.u32 %v4026, 16
  %v4101 = vrot.slane %v4099, 3
  %v4102 = vshll.u32 %v4026, 16
  %v4104 = vrot.slane %v4102, 4
  %v4105 = vor.u32 %v4101, %v4104
  %v4107 = vshrl.u32 %v4028, 16
  %v4109 = vrot.slane %v4107, 3
  %v4110 = vshll.u32 %v4028, 16
  %v4112 = vrot.slane %v4110, 4
  %v4113 = vor.u32 %v4109, %v4112
  %v4114 = vsel %vm273, %v4105, %v4113
  %v4169 = vunpack.c.l.b16 %v3293
  %v4170 = vunpack.c.l.b16 %v3294
  %v4171 = vunpack.c.l.b16 %v3295
  %v4172 = vunpack.c.l.b16 %v3296
  %v4173 = vunpack.c.l.b16 %v3297
  %v4174 = vunpack.c.l.b16 %v3298
  %v4175 = vunpack.c.l.b16 %v3299
  %v4176 = vunpack.c.l.b16 %v3300
  %v4177 = vunpack.c.l.b16 %v3301
  %v4178 = vunpack.c.l.b16 %v3302
  %v4179 = vunpack.c.l.b16 %v3303
  %v4180 = vunpack.c.l.b16 %v3304
  %v4181 = vunpack.c.l.b16 %v3305
  %v4182 = vunpack.c.l.b16 %v3306
  %v4183 = vunpack.c.l.b16 %v3307
  %v4184 = vunpack.c.l.b16 %v3308
  %v4185 = vunpack.c.l.b16 %v3309
  %v4186 = vunpack.c.l.b16 %v3310
  %v4187 = vunpack.c.l.b16 %v3311
  %v4188 = vunpack.c.l.b16 %v3312
  %v4189 = vunpack.c.l.b16 %v3313
  %v4190 = vunpack.c.l.b16 %v3314
  %v4191 = vunpack.c.l.b16 %v3315
  %v4192 = vunpack.c.l.b16 %v3316
  %v4193 = vunpack.c.l.b16 %v3317
  %v4194 = vunpack.c.l.b16 %v3318
  %v4195 = vunpack.c.l.b16 %v3319
  %v4196 = vunpack.c.l.b16 %v3320
  %v4197 = vunpack.c.l.b16 %v3321
  %v4198 = vunpack.c.l.b16 %v3322
  %v4199 = vunpack.c.l.b16 %v3323
  %v4200 = vunpack.c.l.b16 %v3324
  %v4201 = vunpack.c.l.b16 %v3325
  %v4202 = vunpack.c.l.b16 %v3326
  %v4203 = vunpack.c.l.b16 %v3327
  %v4204 = vunpack.c.l.b16 %v3328
  %v4205 = vunpack.c.l.b16 %v3329
  %v4206 = vunpack.c.l.b16 %v3330
  %v4207 = vunpack.c.l.b16 %v3331
  %v4208 = vunpack.c.l.b16 %v3332
  %v4209 = vunpack.c.l.b16 %v3333
  %v4210 = vunpack.c.l.b16 %v3334
  %v4211 = vunpack.c.l.b16 %v3335
  %v4212 = vunpack.c.l.b16 %v3336
  %v4213 = vunpack.c.l.b16 %v3337
  %v4214 = vunpack.c.l.b16 %v3338
  %v4215 = vunpack.c.l.b16 %v3339
  %v4216 = vunpack.c.l.b16 %v3340
  %v4217 = vpack.c.b16 %v4170, %v4169
  %v4218 = vpack.c.b16 %v4172, %v4171
  %v4219 = vpack.c.b16 %v4174, %v4173
  %v4220 = vpack.c.b16 %v4176, %v4175
  %v4221 = vpack.c.b16 %v4178, %v4177
  %v4222 = vpack.c.b16 %v4180, %v4179
  %v4223 = vpack.c.b16 %v4182, %v4181
  %v4224 = vpack.c.b16 %v4184, %v4183
  %v4225 = vpack.c.b16 %v4186, %v4185
  %v4226 = vpack.c.b16 %v4188, %v4187
  %v4227 = vpack.c.b16 %v4190, %v4189
  %v4228 = vpack.c.b16 %v4192, %v4191
  %v4229 = vpack.c.b16 %v4194, %v4193
  %v4230 = vpack.c.b16 %v4196, %v4195
  %v4231 = vpack.c.b16 %v4198, %v4197
  %v4232 = vpack.c.b16 %v4200, %v4199
  %v4233 = vpack.c.b16 %v4202, %v4201
  %v4234 = vpack.c.b16 %v4204, %v4203
  %v4235 = vpack.c.b16 %v4206, %v4205
  %v4236 = vpack.c.b16 %v4208, %v4207
  %v4237 = vpack.c.b16 %v4210, %v4209
  %v4238 = vpack.c.b16 %v4212, %v4211
  %v4239 = vpack.c.b16 %v4214, %v4213
  %v4240 = vpack.c.b16 %v4216, %v4215
  %4265 = vmatprep.subr.bf16.mxu0 0
  %4266 = vmatpush1.bf16.msra.mxu0 %v4224
  %4267 = vmatprep.subr.bf16.mxu0 0
  %4268 = vmatpush1.bf16.msra.mxu0 %v4223
  %4269 = vmatprep.subr.bf16.mxu0 0
  %4270 = vmatpush1.bf16.msra.mxu0 %v4222
  %4271 = vmatprep.subr.bf16.mxu0 0
  %4272 = vmatpush1.bf16.msra.mxu0 %v4221
  %4273 = vmatprep.subr.bf16.mxu0 0
  %4274 = vmatpush1.bf16.msra.mxu0 %v4220
  %4275 = vmatprep.subr.bf16.mxu0 0
  %4276 = vmatpush1.bf16.msra.mxu0 %v4219
  %4277 = vmatprep.subr.bf16.mxu0 0
  %4278 = vmatpush1.bf16.msra.mxu0 %v4218
  %4279 = vmatprep.subr.bf16.mxu0 0
  %4280 = vmatpush1.bf16.msra.mxu0 %v4217
  %4281 = vmatprep.subr.bf16.mxu0 0
  %4282 = vmatpush2.bf16.msra.mxu0 %v4232
  %4283 = vmatprep.subr.bf16.mxu0 0
  %4284 = vmatpush2.bf16.msra.mxu0 %v4231
  %4285 = vmatprep.subr.bf16.mxu0 0
  %4286 = vmatpush2.bf16.msra.mxu0 %v4230
  %4287 = vmatprep.subr.bf16.mxu0 0
  %4288 = vmatpush2.bf16.msra.mxu0 %v4229
  %4289 = vmatprep.subr.bf16.mxu0 0
  %4290 = vmatpush2.bf16.msra.mxu0 %v4228
  %4291 = vmatprep.subr.bf16.mxu0 0
  %4292 = vmatpush2.bf16.msra.mxu0 %v4227
  %4293 = vmatprep.subr.bf16.mxu0 0
  %4294 = vmatpush2.bf16.msra.mxu0 %v4226
  %4295 = vmatprep.subr.bf16.mxu0 0
  %4296 = vmatpush2.bf16.msra.mxu0 %v4225
  %4297 = vmatprep.mubr.bf16.mxu0 %v4054
  %4298 = vmatmul.mubr.bf16.gmra.mxu0 %v4045
  %v4299 = vpop.f32.mrf.mxu0
  %v4300 = vadd.f32 0.0, %v4299
  %v4301 = vpop.f32.mrf.mxu0
  %v4302 = vpop.f32.mrf.mxu0
  %v4303 = vadd.f32 0.0, %v4302
  %v4304 = vpop.f32.mrf.mxu0
  %4305 = vmatprep.mubr.bf16.mxu0 %v4097
  %4306 = vmatmul.mubr.bf16.gmra.mxu0 %v4088
  %v4307 = vpop.f32.mrf.mxu0
  %v4308 = vadd.f32 0.0, %v4307
  %v4309 = vpop.f32.mrf.mxu0
  %v4310 = vpop.f32.mrf.mxu0
  %v4311 = vadd.f32 0.0, %v4310
  %v4312 = vpop.f32.mrf.mxu0
  %4313 = vdwg.mxu0
  %4314 = vmatprep.subr.bf16.mxu0 0
  %4315 = vmatpush1.bf16.msra.mxu0 %v4240
  %4316 = vmatprep.subr.bf16.mxu0 0
  %4317 = vmatpush1.bf16.msra.mxu0 %v4239
  %4318 = vmatprep.subr.bf16.mxu0 0
  %4319 = vmatpush1.bf16.msra.mxu0 %v4238
  %4320 = vmatprep.subr.bf16.mxu0 0
  %4321 = vmatpush1.bf16.msra.mxu0 %v4237
  %4322 = vmatprep.subr.bf16.mxu0 0
  %4323 = vmatpush1.bf16.msra.mxu0 %v4236
  %4324 = vmatprep.subr.bf16.mxu0 0
  %4325 = vmatpush1.bf16.msra.mxu0 %v4235
  %4326 = vmatprep.subr.bf16.mxu0 0
  %4327 = vmatpush1.bf16.msra.mxu0 %v4234
  %4328 = vmatprep.subr.bf16.mxu0 0
  %4329 = vmatpush1.bf16.msra.mxu0 %v4233
  %4330 = vmatprep.subr.bf16.mxu0 0
  %4331 = vmatpush2.bf16.msra.mxu0 0
  %4332 = vmatprep.subr.bf16.mxu0 0
  %4333 = vmatpush2.bf16.msra.mxu0 0
  %4334 = vmatprep.subr.bf16.mxu0 0
  %4335 = vmatpush2.bf16.msra.mxu0 0
  %4336 = vmatprep.subr.bf16.mxu0 0
  %4337 = vmatpush2.bf16.msra.mxu0 0
  %4338 = vmatprep.subr.bf16.mxu0 0
  %4339 = vmatpush2.bf16.msra.mxu0 0
  %4340 = vmatprep.subr.bf16.mxu0 0
  %4341 = vmatpush2.bf16.msra.mxu0 0
  %4342 = vmatprep.subr.bf16.mxu0 0
  %4343 = vmatpush2.bf16.msra.mxu0 0
  %4344 = vmatprep.subr.bf16.mxu0 0
  %4345 = vmatpush2.bf16.msra.mxu0 0
  %4346 = vmatprep.mubr.bf16.mxu0 0
  %4347 = vmatmul.mubr.bf16.gmra.mxu0 %v4071
  %v4348 = vpop.f32.mrf.mxu0
  %v4349 = vadd.f32 %v4300, %v4348
  %v4350 = vpop.f32.mrf.mxu0
  %v4351 = vpop.f32.mrf.mxu0
  %v4352 = vadd.f32 %v4303, %v4351
  %v4353 = vpop.f32.mrf.mxu0
  %4354 = vmatprep.mubr.bf16.mxu0 0
  %4355 = vmatmul.mubr.bf16.gmra.mxu0 %v4114
  %v4356 = vpop.f32.mrf.mxu0
  %v4357 = vadd.f32 %v4308, %v4356
  %v4358 = vpop.f32.mrf.mxu0
  %v4359 = vpop.f32.mrf.mxu0
  %v4360 = vadd.f32 %v4311, %v4359
  %v4361 = vpop.f32.mrf.mxu0
  %4362 = vdwg.mxu0
  %v4363 = vadd.f32 %v4349, %v4352
  %v4364 = vadd.f32 %v4363, %v4357
  %v4365 = vadd.f32 %v4364, %v4360
  %v4366 = vrot.slane %v4365, 4
  %v4367 = vadd.f32 %v4365, %v4366
  %v4368 = vrot.slane %v4367, 2
  %v4369 = vadd.f32 %v4367, %v4368
  %v4370 = vrot.slane %v4369, 1
  %v4371 = vadd.f32 %v4369, %v4370
  %v4372 = vmul.f32 %v4349, %v4349
  %v4373 = vmul.f32 %v4352, %v4352
  %v4374 = vmul.f32 %v4357, %v4357
  %v4375 = vmul.f32 %v4360, %v4360
  %v4376 = vadd.f32 %v4372, %v4373
  %v4377 = vadd.f32 %v4376, %v4374
  %v4378 = vadd.f32 %v4377, %v4375
  %v4379 = vrot.slane %v4378, 4
  %v4380 = vadd.f32 %v4378, %v4379
  %v4381 = vrot.slane %v4380, 2
  %v4382 = vadd.f32 %v4380, %v4381
  %v4383 = vrot.slane %v4382, 1
  %v4384 = vadd.f32 %v4382, %v4383
  %v4385 = vmul.f32 %v4371, 0.03125
  %v4386 = vmul.f32 %v4384, 0.03125
  %v4387 = vmul.f32 %v4385, %v4385
  %v4388 = vsub.f32 %v4386, %v4387
  %v4389 = vmax.f32 %v4388, 0.0
  %v4390 = vadd.f32 %v4389, 1e-05
  %v4391 = vrsqrt.pop %v4390
  %v4392 = vmul.f32 %v4385, %v4391
  %v4393 = vsub.f32 0.001, %v4392
  %v4394 = vmul.f32 %v4349, %v4391
  %v4395 = vmul.f32 %v4352, %v4391
  %v4396 = vmul.f32 %v4357, %v4391
  %v4397 = vmul.f32 %v4360, %v4391
  %v4398 = vadd.f32 %v4394, %v4393
  %v4399 = vadd.f32 %v4395, %v4393
  %v4400 = vadd.f32 %v4396, %v4393
  %v4401 = vadd.f32 %v4397, %v4393
  %v4402 = vmax.f32 %v4398, 0.0
  %v4403 = vmax.f32 %v4399, 0.0
  %v4404 = vmax.f32 %v4400, 0.0
  %v4405 = vmax.f32 %v4401, 0.0
  %v4406 = vpack.c.bf16 %v4403, %v4402
  %v4407 = vpack.c.bf16 %v4405, %v4404
  %v4410 = vunpack.c.l.b16 %v4406
  %v4411 = vunpack.c.h.b16 %v4406
  %v4412 = vunpack.c.l.b16 %v4407
  %v4413 = vunpack.c.h.b16 %v4407
  %v4414 = vpack.c.b16 %v4410, %v4410
  %v4415 = vpack.c.b16 %v4411, %v4411
  %v4416 = vpack.c.b16 %v4412, %v4412
  %v4417 = vpack.c.b16 %v4413, %v4413
  %4422 = vst [vmem:[#allocation2 + $0x8] sm:$0xf] %v4414
  %4423 = vst [vmem:[#allocation2 + $0xc] sm:$0xf] %v4415
  %4424 = vst [vmem:[#allocation2 + $0x20] sm:$0xf] %v4416
  %4425 = vst [vmem:[#allocation2 + $0x24] sm:$0xf] %v4417
  %v4426 = vld [vmem:[#allocation2 + $0x4] sm:$0x8]
  %v4427 = vld [vmem:[#allocation2 + $0x8] sm:$0xf]
  %v4428 = vld [vmem:[#allocation2 + $0xc] sm:$0xf]
  %v4429 = vld [vmem:[#allocation2 + $0x1c] sm:$0x8]
  %v4430 = vld [vmem:[#allocation2 + $0x20] sm:$0xf]
  %v4431 = vld [vmem:[#allocation2 + $0x24] sm:$0xf]
  %v4432 = vld [vmem:[#allocation2 + $0x10] sm:$0x1]
  %v4433 = vld [vmem:[#allocation2 + $0x28] sm:$0x1]
  %v4440 = vunpack.c.l.b16 %v4426
  %v4441 = vunpack.c.l.b16 %v4427
  %v4442 = vunpack.c.l.b16 %v4428
  %v4443 = vunpack.c.l.b16 %v4429
  %v4444 = vunpack.c.l.b16 %v4430
  %v4445 = vunpack.c.l.b16 %v4431
  %v4446 = vpack.c.b16 %v4441, %v4440
  %v4447 = vpack.c.b16 %v4442, %v4442
  %v4448 = vpack.c.b16 %v4444, %v4443
  %v4449 = vpack.c.b16 %v4445, %v4445
  %v4450 = vpack.c.b16 %v4442, %v4441
  %v4451 = vpack.c.b16 %v4445, %v4444
  %v4453 = vshrl.u32 %v4450, 16
  %v4455 = vrot.slane %v4453, 4
  %v4456 = vshll.u32 %v4450, 16
  %v4458 = vrot.slane %v4456, 5
  %v4459 = vor.u32 %v4455, %v4458
  %v4461 = vshrl.u32 %v4451, 16
  %v4463 = vrot.slane %v4461, 4
  %v4464 = vshll.u32 %v4451, 16
  %v4466 = vrot.slane %v4464, 5
  %v4467 = vor.u32 %v4463, %v4466
  %v4470 = vunpack.c.l.b16 %v4432
  %v4471 = vunpack.c.l.b16 %v4433
  %v4472 = vpack.c.b16 %v4470, %v4470
  %v4473 = vpack.c.b16 %v4471, %v4471
  %v4474 = vrot.slane %v4450, 5
  %v4475 = vrot.slane %v4472, 5
  %v4476 = vsel %vm266, %v4474, %v4475
  %v4477 = vrot.slane %v4451, 5
  %v4478 = vrot.slane %v4473, 5
  %v4479 = vsel %vm266, %v4477, %v4478
  %v4481 = vshrl.u32 %v4446, 16
  %v4483 = vrot.slane %v4481, 3
  %v4484 = vshll.u32 %v4446, 16
  %v4486 = vrot.slane %v4484, 4
  %v4487 = vor.u32 %v4483, %v4486
  %v4489 = vshrl.u32 %v4447, 16
  %v4491 = vrot.slane %v4489, 3
  %v4492 = vshll.u32 %v4447, 16
  %v4494 = vrot.slane %v4492, 4
  %v4495 = vor.u32 %v4491, %v4494
  %v4496 = vsel %vm273, %v4487, %v4495
  %v4498 = vshrl.u32 %v4459, 16
  %v4500 = vrot.slane %v4498, 3
  %v4501 = vshll.u32 %v4459, 16
  %v4503 = vrot.slane %v4501, 4
  %v4504 = vor.u32 %v4500, %v4503
  %v4505 = vsel %vm273, %v4504, %v4504
  %v4507 = vshrl.u32 %v4474, 16
  %v4509 = vrot.slane %v4507, 3
  %v4510 = vshll.u32 %v4474, 16
  %v4512 = vrot.slane %v4510, 4
  %v4513 = vor.u32 %v4509, %v4512
  %v4515 = vshrl.u32 %v4476, 16
  %v4517 = vrot.slane %v4515, 3
  %v4518 = vshll.u32 %v4476, 16
  %v4520 = vrot.slane %v4518, 4
  %v4521 = vor.u32 %v4517, %v4520
  %v4522 = vsel %vm273, %v4513, %v4521
  %v4524 = vshrl.u32 %v4448, 16
  %v4526 = vrot.slane %v4524, 3
  %v4527 = vshll.u32 %v4448, 16
  %v4529 = vrot.slane %v4527, 4
  %v4530 = vor.u32 %v4526, %v4529
  %v4532 = vshrl.u32 %v4449, 16
  %v4534 = vrot.slane %v4532, 3
  %v4535 = vshll.u32 %v4449, 16
  %v4537 = vrot.slane %v4535, 4
  %v4538 = vor.u32 %v4534, %v4537
  %v4539 = vsel %vm273, %v4530, %v4538
  %v4541 = vshrl.u32 %v4467, 16
  %v4543 = vrot.slane %v4541, 3
  %v4544 = vshll.u32 %v4467, 16
  %v4546 = vrot.slane %v4544, 4
  %v4547 = vor.u32 %v4543, %v4546
  %v4548 = vsel %vm273, %v4547, %v4547
  %v4550 = vshrl.u32 %v4477, 16
  %v4552 = vrot.slane %v4550, 3
  %v4553 = vshll.u32 %v4477, 16
  %v4555 = vrot.slane %v4553, 4
  %v4556 = vor.u32 %v4552, %v4555
  %v4558 = vshrl.u32 %v4479, 16
  %v4560 = vrot.slane %v4558, 3
  %v4561 = vshll.u32 %v4479, 16
  %v4563 = vrot.slane %v4561, 4
  %v4564 = vor.u32 %v4560, %v4563
  %v4565 = vsel %vm273, %v4556, %v4564
  %v4620 = vunpack.c.l.b16 %v3341
  %v4621 = vunpack.c.l.b16 %v3342
  %v4622 = vunpack.c.l.b16 %v3343
  %v4623 = vunpack.c.l.b16 %v3344
  %v4624 = vunpack.c.l.b16 %v3345
  %v4625 = vunpack.c.l.b16 %v3346
  %v4626 = vunpack.c.l.b16 %v3347
  %v4627 = vunpack.c.l.b16 %v3348
  %v4628 = vunpack.c.l.b16 %v3349
  %v4629 = vunpack.c.l.b16 %v3350
  %v4630 = vunpack.c.l.b16 %v3351
  %v4631 = vunpack.c.l.b16 %v3352
  %v4632 = vunpack.c.l.b16 %v3353
  %v4633 = vunpack.c.l.b16 %v3354
  %v4634 = vunpack.c.l.b16 %v3355
  %v4635 = vunpack.c.l.b16 %v3356
  %v4636 = vunpack.c.l.b16 %v3357
  %v4637 = vunpack.c.l.b16 %v3358
  %v4638 = vunpack.c.l.b16 %v3359
  %v4639 = vunpack.c.l.b16 %v3360
  %v4640 = vunpack.c.l.b16 %v3361
  %v4641 = vunpack.c.l.b16 %v3362
  %v4642 = vunpack.c.l.b16 %v3363
  %v4643 = vunpack.c.l.b16 %v3364
  %v4644 = vunpack.c.l.b16 %v3365
  %v4645 = vunpack.c.l.b16 %v3366
  %v4646 = vunpack.c.l.b16 %v3367
  %v4647 = vunpack.c.l.b16 %v3368
  %v4648 = vunpack.c.l.b16 %v3369
  %v4649 = vunpack.c.l.b16 %v3370
  %v4650 = vunpack.c.l.b16 %v3371
  %v4651 = vunpack.c.l.b16 %v3372
  %v4652 = vunpack.c.l.b16 %v3373
  %v4653 = vunpack.c.l.b16 %v3374
  %v4654 = vunpack.c.l.b16 %v3375
  %v4655 = vunpack.c.l.b16 %v3376
  %v4656 = vunpack.c.l.b16 %v3377
  %v4657 = vunpack.c.l.b16 %v3378
  %v4658 = vunpack.c.l.b16 %v3379
  %v4659 = vunpack.c.l.b16 %v3380
  %v4660 = vunpack.c.l.b16 %v3381
  %v4661 = vunpack.c.l.b16 %v3382
  %v4662 = vunpack.c.l.b16 %v3383
  %v4663 = vunpack.c.l.b16 %v3384
  %v4664 = vunpack.c.l.b16 %v3385
  %v4665 = vunpack.c.l.b16 %v3386
  %v4666 = vunpack.c.l.b16 %v3387
  %v4667 = vunpack.c.l.b16 %v3388
  %v4668 = vpack.c.b16 %v4621, %v4620
  %v4669 = vpack.c.b16 %v4623, %v4622
  %v4670 = vpack.c.b16 %v4625, %v4624
  %v4671 = vpack.c.b16 %v4627, %v4626
  %v4672 = vpack.c.b16 %v4629, %v4628
  %v4673 = vpack.c.b16 %v4631, %v4630
  %v4674 = vpack.c.b16 %v4633, %v4632
  %v4675 = vpack.c.b16 %v4635, %v4634
  %v4676 = vpack.c.b16 %v4637, %v4636
  %v4677 = vpack.c.b16 %v4639, %v4638
  %v4678 = vpack.c.b16 %v4641, %v4640
  %v4679 = vpack.c.b16 %v4643, %v4642
  %v4680 = vpack.c.b16 %v4645, %v4644
  %v4681 = vpack.c.b16 %v4647, %v4646
  %v4682 = vpack.c.b16 %v4649, %v4648
  %v4683 = vpack.c.b16 %v4651, %v4650
  %v4684 = vpack.c.b16 %v4653, %v4652
  %v4685 = vpack.c.b16 %v4655, %v4654
  %v4686 = vpack.c.b16 %v4657, %v4656
  %v4687 = vpack.c.b16 %v4659, %v4658
  %v4688 = vpack.c.b16 %v4661, %v4660
  %v4689 = vpack.c.b16 %v4663, %v4662
  %v4690 = vpack.c.b16 %v4665, %v4664
  %v4691 = vpack.c.b16 %v4667, %v4666
  %4716 = vmatprep.subr.bf16.mxu0 0
  %4717 = vmatpush1.bf16.msra.mxu0 %v4675
  %4718 = vmatprep.subr.bf16.mxu0 0
  %4719 = vmatpush1.bf16.msra.mxu0 %v4674
  %4720 = vmatprep.subr.bf16.mxu0 0
  %4721 = vmatpush1.bf16.msra.mxu0 %v4673
  %4722 = vmatprep.subr.bf16.mxu0 0
  %4723 = vmatpush1.bf16.msra.mxu0 %v4672
  %4724 = vmatprep.subr.bf16.mxu0 0
  %4725 = vmatpush1.bf16.msra.mxu0 %v4671
  %4726 = vmatprep.subr.bf16.mxu0 0
  %4727 = vmatpush1.bf16.msra.mxu0 %v4670
  %4728 = vmatprep.subr.bf16.mxu0 0
  %4729 = vmatpush1.bf16.msra.mxu0 %v4669
  %4730 = vmatprep.subr.bf16.mxu0 0
  %4731 = vmatpush1.bf16.msra.mxu0 %v4668
  %4732 = vmatprep.subr.bf16.mxu0 0
  %4733 = vmatpush2.bf16.msra.mxu0 %v4683
  %4734 = vmatprep.subr.bf16.mxu0 0
  %4735 = vmatpush2.bf16.msra.mxu0 %v4682
  %4736 = vmatprep.subr.bf16.mxu0 0
  %4737 = vmatpush2.bf16.msra.mxu0 %v4681
  %4738 = vmatprep.subr.bf16.mxu0 0
  %4739 = vmatpush2.bf16.msra.mxu0 %v4680
  %4740 = vmatprep.subr.bf16.mxu0 0
  %4741 = vmatpush2.bf16.msra.mxu0 %v4679
  %4742 = vmatprep.subr.bf16.mxu0 0
  %4743 = vmatpush2.bf16.msra.mxu0 %v4678
  %4744 = vmatprep.subr.bf16.mxu0 0
  %4745 = vmatpush2.bf16.msra.mxu0 %v4677
  %4746 = vmatprep.subr.bf16.mxu0 0
  %4747 = vmatpush2.bf16.msra.mxu0 %v4676
  %4748 = vmatprep.mubr.bf16.mxu0 %v4505
  %4749 = vmatmul.mubr.bf16.gmra.mxu0 %v4496
  %v4750 = vpop.f32.mrf.mxu0
  %v4751 = vadd.f32 0.0, %v4750
  %v4752 = vpop.f32.mrf.mxu0
  %v4753 = vpop.f32.mrf.mxu0
  %v4754 = vadd.f32 0.0, %v4753
  %v4755 = vpop.f32.mrf.mxu0
  %4756 = vmatprep.mubr.bf16.mxu0 %v4548
  %4757 = vmatmul.mubr.bf16.gmra.mxu0 %v4539
  %v4758 = vpop.f32.mrf.mxu0
  %v4759 = vadd.f32 0.0, %v4758
  %v4760 = vpop.f32.mrf.mxu0
  %v4761 = vpop.f32.mrf.mxu0
  %v4762 = vadd.f32 0.0, %v4761
  %v4763 = vpop.f32.mrf.mxu0
  %4764 = vdwg.mxu0
  %4765 = vmatprep.subr.bf16.mxu0 0
  %4766 = vmatpush1.bf16.msra.mxu0 %v4691
  %4767 = vmatprep.subr.bf16.mxu0 0
  %4768 = vmatpush1.bf16.msra.mxu0 %v4690
  %4769 = vmatprep.subr.bf16.mxu0 0
  %4770 = vmatpush1.bf16.msra.mxu0 %v4689
  %4771 = vmatprep.subr.bf16.mxu0 0
  %4772 = vmatpush1.bf16.msra.mxu0 %v4688
  %4773 = vmatprep.subr.bf16.mxu0 0
  %4774 = vmatpush1.bf16.msra.mxu0 %v4687
  %4775 = vmatprep.subr.bf16.mxu0 0
  %4776 = vmatpush1.bf16.msra.mxu0 %v4686
  %4777 = vmatprep.subr.bf16.mxu0 0
  %4778 = vmatpush1.bf16.msra.mxu0 %v4685
  %4779 = vmatprep.subr.bf16.mxu0 0
  %4780 = vmatpush1.bf16.msra.mxu0 %v4684
  %4781 = vmatprep.subr.bf16.mxu0 0
  %4782 = vmatpush2.bf16.msra.mxu0 0
  %4783 = vmatprep.subr.bf16.mxu0 0
  %4784 = vmatpush2.bf16.msra.mxu0 0
  %4785 = vmatprep.subr.bf16.mxu0 0
  %4786 = vmatpush2.bf16.msra.mxu0 0
  %4787 = vmatprep.subr.bf16.mxu0 0
  %4788 = vmatpush2.bf16.msra.mxu0 0
  %4789 = vmatprep.subr.bf16.mxu0 0
  %4790 = vmatpush2.bf16.msra.mxu0 0
  %4791 = vmatprep.subr.bf16.mxu0 0
  %4792 = vmatpush2.bf16.msra.mxu0 0
  %4793 = vmatprep.subr.bf16.mxu0 0
  %4794 = vmatpush2.bf16.msra.mxu0 0
  %4795 = vmatprep.subr.bf16.mxu0 0
  %4796 = vmatpush2.bf16.msra.mxu0 0
  %4797 = vmatprep.mubr.bf16.mxu0 0
  %4798 = vmatmul.mubr.bf16.gmra.mxu0 %v4522
  %v4799 = vpop.f32.mrf.mxu0
  %v4800 = vadd.f32 %v4751, %v4799
  %v4801 = vpop.f32.mrf.mxu0
  %v4802 = vpop.f32.mrf.mxu0
  %v4803 = vadd.f32 %v4754, %v4802
  %v4804 = vpop.f32.mrf.mxu0
  %4805 = vmatprep.mubr.bf16.mxu0 0
  %4806 = vmatmul.mubr.bf16.gmra.mxu0 %v4565
  %v4807 = vpop.f32.mrf.mxu0
  %v4808 = vadd.f32 %v4759, %v4807
  %v4809 = vpop.f32.mrf.mxu0
  %v4810 = vpop.f32.mrf.mxu0
  %v4811 = vadd.f32 %v4762, %v4810
  %v4812 = vpop.f32.mrf.mxu0
  %4813 = vdwg.mxu0
  %v4814 = vadd.f32 %v4800, %v4803
  %v4815 = vadd.f32 %v4814, %v4808
  %v4816 = vadd.f32 %v4815, %v4811
  %v4817 = vrot.slane %v4816, 4
  %v4818 = vadd.f32 %v4816, %v4817
  %v4819 = vrot.slane %v4818, 2
  %v4820 = vadd.f32 %v4818, %v4819
  %v4821 = vrot.slane %v4820, 1
  %v4822 = vadd.f32 %v4820, %v4821
  %v4823 = vmul.f32 %v4800, %v4800
  %v4824 = vmul.f32 %v4803, %v4803
  %v4825 = vmul.f32 %v4808, %v4808
  %v4826 = vmul.f32 %v4811, %v4811
  %v4827 = vadd.f32 %v4823, %v4824
  %v4828 = vadd.f32 %v4827, %v4825
  %v4829 = vadd.f32 %v4828, %v4826
  %v4830 = vrot.slane %v4829, 4
  %v4831 = vadd.f32 %v4829, %v4830
  %v4832 = vrot.slane %v4831, 2
  %v4833 = vadd.f32 %v4831, %v4832
  %v4834 = vrot.slane %v4833, 1
  %v4835 = vadd.f32 %v4833, %v4834
  %v4836 = vmul.f32 %v4822, 0.03125
  %v4837 = vmul.f32 %v4835, 0.03125
  %v4838 = vmul.f32 %v4836, %v4836
  %v4839 = vsub.f32 %v4837, %v4838
  %v4840 = vmax.f32 %v4839, 0.0
  %v4841 = vadd.f32 %v4840, 1e-05
  %v4842 = vrsqrt.pop %v4841
  %v4843 = vmul.f32 %v4836, %v4842
  %v4844 = vsub.f32 0.001, %v4843
  %v4845 = vadd.f32 %v3898, %v3901
  %v4846 = vadd.f32 %v4845, %v3906
  %v4847 = vadd.f32 %v4846, %v3909
  %v4848 = vrot.slane %v4847, 4
  %v4849 = vadd.f32 %v4847, %v4848
  %v4850 = vrot.slane %v4849, 2
  %v4851 = vadd.f32 %v4849, %v4850
  %v4852 = vrot.slane %v4851, 1
  %v4853 = vadd.f32 %v4851, %v4852
  %v4854 = vmul.f32 %v3898, %v3898
  %v4855 = vmul.f32 %v3901, %v3901
  %v4856 = vmul.f32 %v3906, %v3906
  %v4857 = vmul.f32 %v3909, %v3909
  %v4858 = vadd.f32 %v4854, %v4855
  %v4859 = vadd.f32 %v4858, %v4856
  %v4860 = vadd.f32 %v4859, %v4857
  %v4861 = vrot.slane %v4860, 4
  %v4862 = vadd.f32 %v4860, %v4861
  %v4863 = vrot.slane %v4862, 2
  %v4864 = vadd.f32 %v4862, %v4863
  %v4865 = vrot.slane %v4864, 1
  %v4866 = vadd.f32 %v4864, %v4865
  %v4867 = vmul.f32 %v4853, 0.03125
  %v4868 = vmul.f32 %v4866, 0.03125
  %v4869 = vmul.f32 %v4867, %v4867
  %v4870 = vsub.f32 %v4868, %v4869
  %v4871 = vmax.f32 %v4870, 0.0
  %v4872 = vadd.f32 %v4871, 1e-05
  %v4873 = vrsqrt.pop %v4872
  %v4874 = vmul.f32 %v4867, %v4873
  %v4875 = vsub.f32 0.001, %v4874
  %v4876 = vmul.f32 %v4800, %v4842
  %v4877 = vmul.f32 %v4803, %v4842
  %v4878 = vmul.f32 %v4808, %v4842
  %v4879 = vmul.f32 %v4811, %v4842
  %v4880 = vmul.f32 %v3898, %v4873
  %v4881 = vmul.f32 %v3901, %v4873
  %v4882 = vmul.f32 %v3906, %v4873
  %v4883 = vmul.f32 %v3909, %v4873
  %v4884 = vadd.f32 %v4876, %v4880
  %v4885 = vadd.f32 %v4877, %v4881
  %v4886 = vadd.f32 %v4878, %v4882
  %v4887 = vadd.f32 %v4879, %v4883
  %v4888 = vadd.f32 %v4844, %v4875
  %v4889 = vadd.f32 %v4884, %v4888
  %v4890 = vadd.f32 %v4885, %v4888
  %v4891 = vadd.f32 %v4886, %v4888
  %v4892 = vadd.f32 %v4887, %v4888
  %v4893 = vmax.f32 %v4889, 0.0
  %v4894 = vmax.f32 %v4890, 0.0
  %v4895 = vmax.f32 %v4891, 0.0
  %v4896 = vmax.f32 %v4892, 0.0
  %4897 = vst [vmem:[%s12] sm:$0xff] %v4893
  %4898 = vst [vmem:[%s12 + $0x8] sm:$0xff] %v4894
  %4899 = vst [vmem:[%s12 + $0x10] sm:$0xff] %v4895
  %4900 = vst [vmem:[%s12 + $0x18] sm:$0xff] %v4896
  // Predicated region
  $region50: #{resconvnet_forward.1} parent=0 // pred_check
    _
  $region51: #{resconvnet_forward.1} parent=0 // pred_check_branch
    %4902 = sbr.rel (0) target = $region53
  $region52: #{resconvnet_forward.1} parent=0 // pred_region
    _
  $region53: #{resconvnet_forward.1} parent=0 // pred_fallthru
    _
  // Predicated region
  $region54: #{resconvnet_forward.1} parent=0 // pred_check
    _
  $region55: #{resconvnet_forward.1} parent=0 // pred_check_branch
    %4904 = sbr.rel (0) target = $region57
  $region56: #{resconvnet_forward.1} parent=0 // pred_region
    _
  $region57: #{resconvnet_forward.1} parent=0 // pred_fallthru
    _

</llo_original>
